<compile_context>
chip_gen: v5e
topology: v5e:2x2
jax: 0.10.0
libtpu: 0.0.40
codegen_flags: <defaults>
</compile_context>

<pallas_src>
import jax
import jax.numpy as jnp
from jax import lax
from jax.experimental import pallas as pl
from jax.experimental.pallas import tpu as pltpu


# ----------------------------------------------------------------------------
# Fused kernel
# ----------------------------------------------------------------------------

def _make_fused_kernel(B, T, Cin, H, num_layers, O):
    H2, H8 = 2 * H, 8 * H
    f32 = jnp.float32
    bf16 = jnp.bfloat16
    n_lstm = 3 * num_layers

    def kernel(*refs):
        x_ref, wc0_ref, wc1_ref, wc2_ref, cb_ref = refs[0:5]
        lstm_refs = refs[5:5 + n_lstm]
        (attw_ref, attb_ref, fc1w_ref, fc1b_ref,
         fc2w_ref, fc2b_ref) = refs[5 + n_lstm:5 + n_lstm + 6]
        out_ref = refs[5 + n_lstm + 6]
        gx_scr, lo_scr = refs[5 + n_lstm + 7:]

        # ---- Conv1d(k=3, pad=1) + folded BatchNorm (eval) + ReLU -------------------
        # Three shifted-slab matmuls on the single time-major (T*B, Cin) input:
        #   out[t] = x[t-1] @ W0 + x[t] @ W1 + x[t+1] @ W2   (zero padding at both ends)
        x0 = x_ref[...]                                               # (T*B, Cin) f32
        hc = jnp.dot(x0.astype(bf16), wc1_ref[...], preferred_element_type=f32)
        hl = jnp.dot(x0[0:(T - 1) * B, :].astype(bf16), wc0_ref[...],
                     preferred_element_type=f32)                      # -> rows B:T*B
        hr = jnp.dot(x0[B:T * B, :].astype(bf16), wc2_ref[...],
                     preferred_element_type=f32)                      # -> rows 0:(T-1)*B
        zrow = jnp.zeros((B, H), f32)
        h0 = (hc + jnp.concatenate([zrow, hl], axis=0)
              + jnp.concatenate([hr, zrow], axis=0) + cb_ref[...])
        x_flat = jnp.maximum(h0, 0.0)                                 # (T*B, H), time-major

        # Hoisted lane constants (JAX does not CSE broadcasts -> build once, reuse).
        lane = lax.broadcasted_iota(jnp.int32, (B, H8), 1)
        is_g = (lane >= 4 * H) & (lane < 6 * H)          # g-gate lanes (plain tanh)
        is_fwd = (lane % H2) < H                         # fwd-direction lanes in each gate block
        act_scale = jnp.where(is_g, 1.0, 0.5).astype(f32)   # sigmoid-via-tanh fix-up
        act_shift = jnp.where(is_g, 0.0, 0.5).astype(f32)
        z0 = jnp.zeros((B, H2), f32)

        # ---- Bidirectional LSTM layers (both directions fused per layer) -----------
        for l in range(num_layers):
            w_ref, bias_ref, whh_ref = lstm_refs[3 * l:3 * l + 3]

            # ONE dense input projection for all timesteps, BOTH directions (no zero
            # columns), hoisted out of the recurrence.
            xb = x_flat.astype(bf16)
            gall = jnp.dot(xb, w_ref[...], preferred_element_type=f32)     # (T*B, 8H)
            bias = jnp.broadcast_to(bias_ref[...], (B, H8))                # hoisted

            # Pre-combine fwd (row s) and bwd (row T-1-s) gate rows + bias ONCE, so the
            # serial recurrence reads a single (B,8H) block per step.
            for s in range(T):
                gx_scr[s * B:(s + 1) * B, :] = jnp.where(
                    is_fwd,
                    gall[s * B:(s + 1) * B, :],
                    gall[(T - 1 - s) * B:(T - s) * B, :]) + bias

            whh = whh_ref[...]                      # (2H, 8H) block-diag, bf16
            h = z0                                  # (B, 2H) = [h_fwd | h_bwd], f32
            c = z0

            # Fully-unrolled time loop (T static & tiny): one block-diagonal recurrent
            # matmul + one tanh over the full (B,8H) tile per step.
            for s in range(T):
                gates = gx_scr[s * B:(s + 1) * B, :] + jnp.dot(
                    h.astype(bf16), whh, preferred_element_type=f32)
                # i/f/o columns were pre-scaled by 0.5 host-side, so a single tanh gives
                # tanh on g lanes and (after scale/shift) sigmoid on i/f/o lanes.
                act = jnp.tanh(gates) * act_scale + act_shift
                i_g = act[:, 0 * H2:1 * H2]
                f_g = act[:, 1 * H2:2 * H2]
                g_g = act[:, 2 * H2:3 * H2]
                o_g = act[:, 3 * H2:4 * H2]
                c = f_g * c + i_g * g_g
                h = o_g * jnp.tanh(c)
                # Write straight into the single layer-output scratch (no concat later).
                lo_scr[s * B:(s + 1) * B, 0:H] = h[:, 0:H]                 # fwd @ time s
                lo_scr[(T - 1 - s) * B:(T - s) * B, H:H2] = h[:, H:H2]     # bwd @ time T-1-s

            x_flat = lo_scr[...]                    # (T*B, 2H), torch cat order [fwd|bwd]

        lo_flat = x_flat                            # (T*B, 2H), f32

        # ---- Attention: tanh(score) -> softmax over time -> linear-cost weighted sum
        lo3 = lo_flat.reshape(T, B, H2)
        s3 = jnp.sum(lo3 * attw_ref[...].reshape(1, 1, H2), axis=-1, keepdims=True)
        s3 = jnp.tanh(s3 + attb_ref[...].reshape(1, 1, 1))                 # (T, B, 1)
        m = jnp.max(s3, axis=0, keepdims=True)
        e = jnp.exp(s3 - m)
        den = jnp.sum(e, axis=0, keepdims=True)
        w3 = e * pl.reciprocal(den, approx=True)                           # softmax over T
        context = jnp.sum(w3 * lo3, axis=0)                                # (B, 2H), f32

        # ---- fc1 + folded BatchNorm (eval) + ReLU + fc2 (dropout = identity) -------
        h1 = jnp.dot(context.astype(bf16), fc1w_ref[...],
                     preferred_element_type=f32) + fc1b_ref[...]
        h1 = jnp.maximum(h1, 0.0)
        out = jnp.dot(h1.astype(bf16), fc2w_ref[...],
                      preferred_element_type=f32) + fc2b_ref[...]
        out_ref[...] = out.astype(out_ref.dtype)

    return kernel


# ----------------------------------------------------------------------------
# Wrapper
# ----------------------------------------------------------------------------

def bilstm_classifier_forward(x, params, *, hidden_dim, num_layers, output_dim):
    """x: (B, T, input_dim) f32.  params: flat list from make_params."""
    B, T, Cin = x.shape
    H, O = hidden_dim, output_dim

    # Pad batch to a full sublane tile (8) so every (B,·) tile is unmasked; batch rows are
    # fully independent throughout the network, so padded rows are simply sliced off.
    Bp = ((B + 7) // 8) * 8
    x_tm = jnp.transpose(x, (1, 0, 2))                                 # (T, B, Cin) time-major
    x_tm = jnp.pad(x_tm, ((0, 0), (0, Bp - B), (0, 0)))
    x_flat = x_tm.reshape(T * Bp, Cin)                                 # single slab (no 3x im2col)

    kernel = _make_fused_kernel(Bp, T, Cin, H, num_layers, O)
    n_in = 5 + 3 * num_layers + 6
    out = pl.pallas_call(
        kernel,
        out_shape=jax.ShapeDtypeStruct((Bp, O), jnp.float32),
        in_specs=[pl.BlockSpec(memory_space=pltpu.MemorySpace.VMEM)] * n_in,
        out_specs=pl.BlockSpec(memory_space=pltpu.MemorySpace.VMEM),
        scratch_shapes=[
            pltpu.VMEM((T * Bp, 8 * H), jnp.float32),   # pre-combined gates gx (both dirs)
            pltpu.VMEM((T * Bp, 2 * H), jnp.float32),   # layer output [fwd | bwd], time-major
        ],
        compiler_params=pltpu.CompilerParams(vmem_limit_bytes=32 * 1024 * 1024),
    )(x_flat, *params)
    return out[:B]


# ----------------------------------------------------------------------------
# Deterministic parameter construction (PyTorch-equivalent shapes, pre-packed)
# ----------------------------------------------------------------------------

def make_params(key, input_dim, hidden_dim, num_layers, output_dim):
    H, O, Cin = hidden_dim, output_dim, input_dim
    H2, H4, H8 = 2 * H, 4 * H, 8 * H
    eps = 1e-5
    keys = iter(jax.random.split(key, 256))
    f32, bf16 = jnp.float32, jnp.bfloat16

    def rnd(shape, scale=0.1):
        return (scale * jax.random.normal(next(keys), shape)).astype(f32)

    def bn_fold(n):
        gamma = 1.0 + rnd((n,))
        beta = rnd((n,))
        mean = rnd((n,))
        var = 1.0 + jnp.abs(rnd((n,)))
        scale = gamma / jnp.sqrt(var + eps)
        shift = beta - mean * scale
        return scale, shift

    # conv1: torch weight (H, Cin, 3) -> three per-tap (Cin, H) weights, BN scale folded in.
    conv_w = rnd((H, Cin, 3))
    conv_b = rnd((H,))
    bn1_s, bn1_sh = bn_fold(H)
    wc_taps = [(conv_w[:, :, k].T * bn1_s[None, :]).astype(bf16) for k in range(3)]
    conv_bias = (conv_b * bn1_s + bn1_sh).reshape(1, H)

    # sigmoid(z) = 0.5*tanh(z/2)+0.5 -> pre-fold z/2 into the i/f/o (non-g) columns of the
    # packed weights/bias so the kernel needs a single tanh per recurrence step.
    col = jnp.arange(H8)
    col_scale = jnp.where((col >= 4 * H) & (col < 6 * H), 1.0, 0.5).astype(f32)

    def interleave(mf, mb):
        """Scatter per-direction gate blocks [i f g o] into the shared gate-major layout
        [i_f i_b | f_f f_b | g_f g_b | o_f o_b] along the last axis."""
        blocks = []
        for k in range(4):
            blocks.append(mf[:, k * H:(k + 1) * H])
            blocks.append(mb[:, k * H:(k + 1) * H])
        return jnp.concatenate(blocks, axis=-1)

    lstm = []
    for l in range(num_layers):
        Din = H if l == 0 else H2
        w_ih_f = rnd((H4, Din)); w_hh_f = rnd((H4, H)); b_f = rnd((H4,)) + rnd((H4,))
        w_ih_b = rnd((H4, Din)); w_hh_b = rnd((H4, H)); b_b = rnd((H4,)) + rnd((H4,))

        # Dense combined input projection (Din, 8H): both directions, no zero columns.
        w_comb = interleave(w_ih_f.T, w_ih_b.T) * col_scale[None, :]
        # Combined bias (b_ih + b_hh as in torch), both directions.
        bias8 = interleave(b_f.reshape(1, H4), b_b.reshape(1, H4)) * col_scale[None, :]
        # Block-diagonal recurrent weight (2H, 8H): rows = [h_fwd | h_bwd].
        whh = jnp.concatenate(
            [interleave(w_hh_f.T, jnp.zeros((H, H4), f32)),
             interleave(jnp.zeros((H, H4), f32), w_hh_b.T)], axis=0) * col_scale[None, :]

        lstm.append((w_comb.astype(bf16), bias8.astype(f32), whh.astype(bf16)))

    # Attention + classifier head (fc1 BatchNorm folded; weights pre-transposed).
    att_w = rnd((1, H2))                       # torch Linear(2H, 1).weight
    att_b = rnd((1,)).reshape(1, 1)
    fc1_w = rnd((H, H2)); fc1_b = rnd((H,))
    bnf_s, bnf_sh = bn_fold(H)
    fc2_w = rnd((O, H)); fc2_b = rnd((O,))

    fc1_wT = (fc1_w.T * bnf_s[None, :]).astype(bf16)      # (2H, H)
    fc1_bf = (fc1_b * bnf_s + bnf_sh).reshape(1, H)
    fc2_wT = fc2_w.T.astype(bf16)                          # (H, O)
    fc2_bf = fc2_b.reshape(1, O)

    flat = [*wc_taps, conv_bias]
    for layer in lstm:
        flat.extend(layer)
    flat += [att_w, att_b, fc1_wT, fc1_bf, fc2_wT, fc2_bf]
    return flat


# ----------------------------------------------------------------------------
# Main
# ----------------------------------------------------------------------------

if __name__ == "__main__":
    B, T = 2, 8
    input_dim, hidden_dim, num_layers, output_dim = 16, 32, 2, 4

    key = jax.random.PRNGKey(0)
    k_x, k_p = jax.random.split(key)
    x = jax.random.normal(k_x, (B, T, input_dim), dtype=jnp.float32)
    params = make_params(k_p, input_dim, hidden_dim, num_layers, output_dim)

    fwd = jax.jit(lambda xx, pp: bilstm_classifier_forward(
        xx, pp, hidden_dim=hidden_dim, num_layers=num_layers, output_dim=output_dim))

    out = jax.block_until_ready(fwd(x, params))

    assert out.shape == (B, output_dim), out.shape
    assert bool(jnp.all(jnp.isfinite(out)))
    print("KERNEL_OK")
</pallas_src>

<mosaic_0001>
module attributes {stable_mosaic.version = 11 : i64} {
  func.func @kernel(%arg0: memref<64x16xf32, #tpu.memory_space<vmem>>, %arg1: memref<16x32xbf16, #tpu.memory_space<vmem>>, %arg2: memref<16x32xbf16, #tpu.memory_space<vmem>>, %arg3: memref<16x32xbf16, #tpu.memory_space<vmem>>, %arg4: memref<1x32xf32, #tpu.memory_space<vmem>>, %arg5: memref<32x256xbf16, #tpu.memory_space<vmem>>, %arg6: memref<1x256xf32, #tpu.memory_space<vmem>>, %arg7: memref<64x256xbf16, #tpu.memory_space<vmem>>, %arg8: memref<64x256xbf16, #tpu.memory_space<vmem>>, %arg9: memref<1x256xf32, #tpu.memory_space<vmem>>, %arg10: memref<64x256xbf16, #tpu.memory_space<vmem>>, %arg11: memref<1x64xf32, #tpu.memory_space<vmem>>, %arg12: memref<1x1xf32, #tpu.memory_space<vmem>>, %arg13: memref<64x32xbf16, #tpu.memory_space<vmem>>, %arg14: memref<1x32xf32, #tpu.memory_space<vmem>>, %arg15: memref<32x4xbf16, #tpu.memory_space<vmem>>, %arg16: memref<1x4xf32, #tpu.memory_space<vmem>>, %arg17: memref<8x4xf32, #tpu.memory_space<vmem>>, %arg18: memref<64x256xf32, #tpu.memory_space<vmem>>, %arg19: memref<64x64xf32, #tpu.memory_space<vmem>>) attributes {dimension_semantics = [], scalar_prefetch = 0 : i64, scratch_operands = 2 : i64, tpu.core_type = #tpu.core_type<tc>} {
    %c0 = arith.constant 0 : index
    %c0_0 = arith.constant 0 : index
    %0 = vector.load %arg0[%c0, %c0_0] : memref<64x16xf32, #tpu.memory_space<vmem>>, vector<64x16xf32>
    %1 = arith.truncf %0 : vector<64x16xf32> to vector<64x16xbf16>
    %c0_1 = arith.constant 0 : index
    %c0_2 = arith.constant 0 : index
    %2 = vector.load %arg2[%c0_1, %c0_2] : memref<16x32xbf16, #tpu.memory_space<vmem>>, vector<16x32xbf16>
    %cst = arith.constant dense<0.000000e+00> : vector<64x32xf32>
    %3 = tpu.matmul %1, %2, %cst {dimension_numbers = #tpu.dot_dimension_numbers<[1], [0], [0], [1], [0, 0, 1, 1], [], []>} : vector<64x16xbf16>, vector<16x32xbf16>, vector<64x32xf32> -> vector<64x32xf32>
    %4 = vector.extract_strided_slice %0 {offsets = [0, 0], sizes = [56, 16], strides = [1, 1]} : vector<64x16xf32> to vector<56x16xf32>
    %5 = arith.truncf %4 : vector<56x16xf32> to vector<56x16xbf16>
    %c0_3 = arith.constant 0 : index
    %c0_4 = arith.constant 0 : index
    %6 = vector.load %arg1[%c0_3, %c0_4] : memref<16x32xbf16, #tpu.memory_space<vmem>>, vector<16x32xbf16>
    %cst_5 = arith.constant dense<0.000000e+00> : vector<56x32xf32>
    %7 = tpu.matmul %5, %6, %cst_5 {dimension_numbers = #tpu.dot_dimension_numbers<[1], [0], [0], [1], [0, 0, 1, 1], [], []>} : vector<56x16xbf16>, vector<16x32xbf16>, vector<56x32xf32> -> vector<56x32xf32>
    %8 = vector.extract_strided_slice %0 {offsets = [8, 0], sizes = [56, 16], strides = [1, 1]} : vector<64x16xf32> to vector<56x16xf32>
    %9 = arith.truncf %8 : vector<56x16xf32> to vector<56x16xbf16>
    %c0_6 = arith.constant 0 : index
    %c0_7 = arith.constant 0 : index
    %10 = vector.load %arg3[%c0_6, %c0_7] : memref<16x32xbf16, #tpu.memory_space<vmem>>, vector<16x32xbf16>
    %cst_8 = arith.constant dense<0.000000e+00> : vector<56x32xf32>
    %11 = tpu.matmul %9, %10, %cst_8 {dimension_numbers = #tpu.dot_dimension_numbers<[1], [0], [0], [1], [0, 0, 1, 1], [], []>} : vector<56x16xbf16>, vector<16x32xbf16>, vector<56x32xf32> -> vector<56x32xf32>
    %cst_9 = arith.constant 0.000000e+00 : f32
    %12 = vector.broadcast %cst_9 : f32 to vector<8x32xf32>
    %13 = tpu.concatenate %12, %7 in 0 : vector<8x32xf32>, vector<56x32xf32> -> vector<64x32xf32>
    %14 = arith.addf %3, %13 : vector<64x32xf32>
    %15 = tpu.concatenate %11, %12 in 0 : vector<56x32xf32>, vector<8x32xf32> -> vector<64x32xf32>
    %16 = arith.addf %14, %15 : vector<64x32xf32>
    %c0_10 = arith.constant 0 : index
    %c0_11 = arith.constant 0 : index
    %17 = vector.load %arg4[%c0_10, %c0_11] : memref<1x32xf32, #tpu.memory_space<vmem>>, vector<1x32xf32>
    %18 = vector.broadcast %17 : vector<1x32xf32> to vector<64x32xf32>
    %19 = arith.addf %16, %18 : vector<64x32xf32>
    %cst_12 = arith.constant 0.000000e+00 : f32
    %20 = vector.broadcast %cst_12 : f32 to vector<64x32xf32>
    %21 = arith.maximumf %19, %20 : vector<64x32xf32>
    %22 = tpu.iota {dimensions = array<i32: 1>} : vector<8x256xi32>
    %c128_i32 = arith.constant 128 : i32
    %23 = vector.broadcast %c128_i32 : i32 to vector<8x256xi32>
    %24 = arith.cmpi sge, %22, %23 : vector<8x256xi32>
    %c192_i32 = arith.constant 192 : i32
    %25 = vector.broadcast %c192_i32 : i32 to vector<8x256xi32>
    %26 = arith.cmpi slt, %22, %25 : vector<8x256xi32>
    %27 = arith.andi %24, %26 : vector<8x256xi1>
    %c64_i32 = arith.constant 64 : i32
    %c0_i32 = arith.constant 0 : i32
    %28 = arith.cmpi eq, %c64_i32, %c0_i32 : i32
    %c1_i32 = arith.constant 1 : i32
    %29 = arith.select %28, %c1_i32, %c64_i32 : i32
    %30 = vector.broadcast %29 : i32 to vector<8x256xi32>
    %31 = arith.remsi %22, %30 : vector<8x256xi32>
    %c0_i32_13 = arith.constant 0 : i32
    %32 = vector.broadcast %c0_i32_13 : i32 to vector<8x256xi32>
    %33 = arith.cmpi ne, %31, %32 : vector<8x256xi32>
    %c0_i32_14 = arith.constant 0 : i32
    %34 = vector.broadcast %c0_i32_14 : i32 to vector<8x256xi32>
    %35 = arith.cmpi slt, %31, %34 : vector<8x256xi32>
    %c0_i32_15 = arith.constant 0 : i32
    %36 = arith.cmpi slt, %29, %c0_i32_15 : i32
    %37 = vector.broadcast %36 : i1 to vector<8x256xi1>
    %38 = vector.broadcast %37 : vector<8x256xi1> to vector<8x256xi1>
    %39 = arith.xori %35, %38 : vector<8x256xi1>
    %40 = arith.andi %39, %33 : vector<8x256xi1>
    %41 = vector.broadcast %29 : i32 to vector<8x256xi32>
    %42 = arith.addi %31, %41 : vector<8x256xi32>
    %43 = arith.select %40, %42, %31 : vector<8x256xi1>, vector<8x256xi32>
    %c32_i32 = arith.constant 32 : i32
    %44 = vector.broadcast %c32_i32 : i32 to vector<8x256xi32>
    %45 = arith.cmpi slt, %43, %44 : vector<8x256xi32>
    %cst_16 = arith.constant 1.000000e+00 : f32
    %cst_17 = arith.constant 5.000000e-01 : f32
    %46 = vector.broadcast %cst_16 : f32 to vector<8x256xf32>
    %47 = vector.broadcast %cst_17 : f32 to vector<8x256xf32>
    %48 = arith.select %27, %46, %47 : vector<8x256xi1>, vector<8x256xf32>
    %cst_18 = arith.constant 0.000000e+00 : f32
    %cst_19 = arith.constant 5.000000e-01 : f32
    %49 = vector.broadcast %cst_18 : f32 to vector<8x256xf32>
    %50 = vector.broadcast %cst_19 : f32 to vector<8x256xf32>
    %51 = arith.select %27, %49, %50 : vector<8x256xi1>, vector<8x256xf32>
    %cst_20 = arith.constant 0.000000e+00 : f32
    %52 = vector.broadcast %cst_20 : f32 to vector<8x64xf32>
    %53 = arith.truncf %21 : vector<64x32xf32> to vector<64x32xbf16>
    %c0_21 = arith.constant 0 : index
    %c0_22 = arith.constant 0 : index
    %54 = vector.load %arg5[%c0_21, %c0_22] : memref<32x256xbf16, #tpu.memory_space<vmem>>, vector<32x256xbf16>
    %cst_23 = arith.constant dense<0.000000e+00> : vector<64x256xf32>
    %55 = tpu.matmul %53, %54, %cst_23 {dimension_numbers = #tpu.dot_dimension_numbers<[1], [0], [0], [1], [0, 0, 1, 1], [], []>} : vector<64x32xbf16>, vector<32x256xbf16>, vector<64x256xf32> -> vector<64x256xf32>
    %c0_24 = arith.constant 0 : index
    %c0_25 = arith.constant 0 : index
    %56 = vector.load %arg6[%c0_24, %c0_25] : memref<1x256xf32, #tpu.memory_space<vmem>>, vector<1x256xf32>
    %57 = vector.shape_cast %56 : vector<1x256xf32> to vector<1x256xf32>
    %58 = vector.broadcast %57 : vector<1x256xf32> to vector<8x256xf32>
    %59 = vector.extract_strided_slice %55 {offsets = [0, 0], sizes = [8, 256], strides = [1, 1]} : vector<64x256xf32> to vector<8x256xf32>
    %60 = vector.extract_strided_slice %55 {offsets = [56, 0], sizes = [8, 256], strides = [1, 1]} : vector<64x256xf32> to vector<8x256xf32>
    %61 = arith.select %45, %59, %60 : vector<8x256xi1>, vector<8x256xf32>
    %62 = arith.addf %61, %58 : vector<8x256xf32>
    %c0_26 = arith.constant 0 : index
    %c0_27 = arith.constant 0 : index
    %63 = vector.load %arg18[%c0_26, %c0_27] : memref<64x256xf32, #tpu.memory_space<vmem>>, vector<8x256xf32>
    tpu.vector_store %arg18[%c0_26, %c0_27], %62 {strides = array<i32>} : memref<64x256xf32, #tpu.memory_space<vmem>>, vector<8x256xf32>,
    %64 = vector.extract_strided_slice %55 {offsets = [8, 0], sizes = [8, 256], strides = [1, 1]} : vector<64x256xf32> to vector<8x256xf32>
    %65 = vector.extract_strided_slice %55 {offsets = [48, 0], sizes = [8, 256], strides = [1, 1]} : vector<64x256xf32> to vector<8x256xf32>
    %66 = arith.select %45, %64, %65 : vector<8x256xi1>, vector<8x256xf32>
    %67 = arith.addf %66, %58 : vector<8x256xf32>
    %c8 = arith.constant 8 : index
    %c0_28 = arith.constant 0 : index
    %68 = vector.load %arg18[%c8, %c0_28] : memref<64x256xf32, #tpu.memory_space<vmem>>, vector<8x256xf32>
    tpu.vector_store %arg18[%c8, %c0_28], %67 {strides = array<i32>} : memref<64x256xf32, #tpu.memory_space<vmem>>, vector<8x256xf32>,
    %69 = vector.extract_strided_slice %55 {offsets = [16, 0], sizes = [8, 256], strides = [1, 1]} : vector<64x256xf32> to vector<8x256xf32>
    %70 = vector.extract_strided_slice %55 {offsets = [40, 0], sizes = [8, 256], strides = [1, 1]} : vector<64x256xf32> to vector<8x256xf32>
    %71 = arith.select %45, %69, %70 : vector<8x256xi1>, vector<8x256xf32>
    %72 = arith.addf %71, %58 : vector<8x256xf32>
    %c16 = arith.constant 16 : index
    %c0_29 = arith.constant 0 : index
    %73 = vector.load %arg18[%c16, %c0_29] : memref<64x256xf32, #tpu.memory_space<vmem>>, vector<8x256xf32>
    tpu.vector_store %arg18[%c16, %c0_29], %72 {strides = array<i32>} : memref<64x256xf32, #tpu.memory_space<vmem>>, vector<8x256xf32>,
    %74 = vector.extract_strided_slice %55 {offsets = [24, 0], sizes = [8, 256], strides = [1, 1]} : vector<64x256xf32> to vector<8x256xf32>
    %75 = vector.extract_strided_slice %55 {offsets = [32, 0], sizes = [8, 256], strides = [1, 1]} : vector<64x256xf32> to vector<8x256xf32>
    %76 = arith.select %45, %74, %75 : vector<8x256xi1>, vector<8x256xf32>
    %77 = arith.addf %76, %58 : vector<8x256xf32>
    %c24 = arith.constant 24 : index
    %c0_30 = arith.constant 0 : index
    %78 = vector.load %arg18[%c24, %c0_30] : memref<64x256xf32, #tpu.memory_space<vmem>>, vector<8x256xf32>
    tpu.vector_store %arg18[%c24, %c0_30], %77 {strides = array<i32>} : memref<64x256xf32, #tpu.memory_space<vmem>>, vector<8x256xf32>,
    %79 = vector.extract_strided_slice %55 {offsets = [32, 0], sizes = [8, 256], strides = [1, 1]} : vector<64x256xf32> to vector<8x256xf32>
    %80 = vector.extract_strided_slice %55 {offsets = [24, 0], sizes = [8, 256], strides = [1, 1]} : vector<64x256xf32> to vector<8x256xf32>
    %81 = arith.select %45, %79, %80 : vector<8x256xi1>, vector<8x256xf32>
    %82 = arith.addf %81, %58 : vector<8x256xf32>
    %c32 = arith.constant 32 : index
    %c0_31 = arith.constant 0 : index
    %83 = vector.load %arg18[%c32, %c0_31] : memref<64x256xf32, #tpu.memory_space<vmem>>, vector<8x256xf32>
    tpu.vector_store %arg18[%c32, %c0_31], %82 {strides = array<i32>} : memref<64x256xf32, #tpu.memory_space<vmem>>, vector<8x256xf32>,
    %84 = vector.extract_strided_slice %55 {offsets = [40, 0], sizes = [8, 256], strides = [1, 1]} : vector<64x256xf32> to vector<8x256xf32>
    %85 = vector.extract_strided_slice %55 {offsets = [16, 0], sizes = [8, 256], strides = [1, 1]} : vector<64x256xf32> to vector<8x256xf32>
    %86 = arith.select %45, %84, %85 : vector<8x256xi1>, vector<8x256xf32>
    %87 = arith.addf %86, %58 : vector<8x256xf32>
    %c40 = arith.constant 40 : index
    %c0_32 = arith.constant 0 : index
    %88 = vector.load %arg18[%c40, %c0_32] : memref<64x256xf32, #tpu.memory_space<vmem>>, vector<8x256xf32>
    tpu.vector_store %arg18[%c40, %c0_32], %87 {strides = array<i32>} : memref<64x256xf32, #tpu.memory_space<vmem>>, vector<8x256xf32>,
    %89 = vector.extract_strided_slice %55 {offsets = [48, 0], sizes = [8, 256], strides = [1, 1]} : vector<64x256xf32> to vector<8x256xf32>
    %90 = vector.extract_strided_slice %55 {offsets = [8, 0], sizes = [8, 256], strides = [1, 1]} : vector<64x256xf32> to vector<8x256xf32>
    %91 = arith.select %45, %89, %90 : vector<8x256xi1>, vector<8x256xf32>
    %92 = arith.addf %91, %58 : vector<8x256xf32>
    %c48 = arith.constant 48 : index
    %c0_33 = arith.constant 0 : index
    %93 = vector.load %arg18[%c48, %c0_33] : memref<64x256xf32, #tpu.memory_space<vmem>>, vector<8x256xf32>
    tpu.vector_store %arg18[%c48, %c0_33], %92 {strides = array<i32>} : memref<64x256xf32, #tpu.memory_space<vmem>>, vector<8x256xf32>,
    %94 = vector.extract_strided_slice %55 {offsets = [56, 0], sizes = [8, 256], strides = [1, 1]} : vector<64x256xf32> to vector<8x256xf32>
    %95 = vector.extract_strided_slice %55 {offsets = [0, 0], sizes = [8, 256], strides = [1, 1]} : vector<64x256xf32> to vector<8x256xf32>
    %96 = arith.select %45, %94, %95 : vector<8x256xi1>, vector<8x256xf32>
    %97 = arith.addf %96, %58 : vector<8x256xf32>
    %c56 = arith.constant 56 : index
    %c0_34 = arith.constant 0 : index
    %98 = vector.load %arg18[%c56, %c0_34] : memref<64x256xf32, #tpu.memory_space<vmem>>, vector<8x256xf32>
    tpu.vector_store %arg18[%c56, %c0_34], %97 {strides = array<i32>} : memref<64x256xf32, #tpu.memory_space<vmem>>, vector<8x256xf32>,
    %c0_35 = arith.constant 0 : index
    %c0_36 = arith.constant 0 : index
    %99 = vector.load %arg7[%c0_35, %c0_36] : memref<64x256xbf16, #tpu.memory_space<vmem>>, vector<64x256xbf16>
    %c0_37 = arith.constant 0 : index
    %c0_38 = arith.constant 0 : index
    %100 = vector.load %arg18[%c0_37, %c0_38] : memref<64x256xf32, #tpu.memory_space<vmem>>, vector<8x256xf32>
    %101 = arith.truncf %52 : vector<8x64xf32> to vector<8x64xbf16>
    %cst_39 = arith.constant dense<0.000000e+00> : vector<8x256xf32>
    %102 = tpu.matmul %101, %99, %cst_39 {dimension_numbers = #tpu.dot_dimension_numbers<[1], [0], [0], [1], [0, 0, 1, 1], [], []>} : vector<8x64xbf16>, vector<64x256xbf16>, vector<8x256xf32> -> vector<8x256xf32>
    %103 = arith.addf %100, %102 : vector<8x256xf32>
    %104 = math.tanh %103 : vector<8x256xf32>
    %105 = arith.mulf %104, %48 : vector<8x256xf32>
    %106 = arith.addf %105, %51 : vector<8x256xf32>
    %107 = vector.extract_strided_slice %106 {offsets = [0, 0], sizes = [8, 64], strides = [1, 1]} : vector<8x256xf32> to vector<8x64xf32>
    %108 = vector.extract_strided_slice %106 {offsets = [0, 64], sizes = [8, 64], strides = [1, 1]} : vector<8x256xf32> to vector<8x64xf32>
    %109 = vector.extract_strided_slice %106 {offsets = [0, 128], sizes = [8, 64], strides = [1, 1]} : vector<8x256xf32> to vector<8x64xf32>
    %110 = vector.extract_strided_slice %106 {offsets = [0, 192], sizes = [8, 64], strides = [1, 1]} : vector<8x256xf32> to vector<8x64xf32>
    %111 = arith.mulf %108, %52 : vector<8x64xf32>
    %112 = arith.mulf %107, %109 : vector<8x64xf32>
    %113 = arith.addf %111, %112 : vector<8x64xf32>
    %114 = math.tanh %113 : vector<8x64xf32>
    %115 = arith.mulf %110, %114 : vector<8x64xf32>
    %116 = vector.extract_strided_slice %115 {offsets = [0, 0], sizes = [8, 32], strides = [1, 1]} : vector<8x64xf32> to vector<8x32xf32>
    %c0_40 = arith.constant 0 : index
    %c0_41 = arith.constant 0 : index
    %117 = vector.load %arg19[%c0_40, %c0_41] : memref<64x64xf32, #tpu.memory_space<vmem>>, vector<8x32xf32>
    tpu.vector_store %arg19[%c0_40, %c0_41], %116 {strides = array<i32>} : memref<64x64xf32, #tpu.memory_space<vmem>>, vector<8x32xf32>,
    %118 = vector.extract_strided_slice %115 {offsets = [0, 32], sizes = [8, 32], strides = [1, 1]} : vector<8x64xf32> to vector<8x32xf32>
    %c56_42 = arith.constant 56 : index
    %c32_43 = arith.constant 32 : index
    %119 = vector.load %arg19[%c56_42, %c32_43] : memref<64x64xf32, #tpu.memory_space<vmem>>, vector<8x32xf32>
    tpu.vector_store %arg19[%c56_42, %c32_43], %118 {strides = array<i32>} : memref<64x64xf32, #tpu.memory_space<vmem>>, vector<8x32xf32>,
    %c8_44 = arith.constant 8 : index
    %c0_45 = arith.constant 0 : index
    %120 = vector.load %arg18[%c8_44, %c0_45] : memref<64x256xf32, #tpu.memory_space<vmem>>, vector<8x256xf32>
    %121 = arith.truncf %115 : vector<8x64xf32> to vector<8x64xbf16>
    %cst_46 = arith.constant dense<0.000000e+00> : vector<8x256xf32>
    %122 = tpu.matmul %121, %99, %cst_46 {dimension_numbers = #tpu.dot_dimension_numbers<[1], [0], [0], [1], [0, 0, 1, 1], [], []>} : vector<8x64xbf16>, vector<64x256xbf16>, vector<8x256xf32> -> vector<8x256xf32>
    %123 = arith.addf %120, %122 : vector<8x256xf32>
    %124 = math.tanh %123 : vector<8x256xf32>
    %125 = arith.mulf %124, %48 : vector<8x256xf32>
    %126 = arith.addf %125, %51 : vector<8x256xf32>
    %127 = vector.extract_strided_slice %126 {offsets = [0, 0], sizes = [8, 64], strides = [1, 1]} : vector<8x256xf32> to vector<8x64xf32>
    %128 = vector.extract_strided_slice %126 {offsets = [0, 64], sizes = [8, 64], strides = [1, 1]} : vector<8x256xf32> to vector<8x64xf32>
    %129 = vector.extract_strided_slice %126 {offsets = [0, 128], sizes = [8, 64], strides = [1, 1]} : vector<8x256xf32> to vector<8x64xf32>
    %130 = vector.extract_strided_slice %126 {offsets = [0, 192], sizes = [8, 64], strides = [1, 1]} : vector<8x256xf32> to vector<8x64xf32>
    %131 = arith.mulf %128, %113 : vector<8x64xf32>
    %132 = arith.mulf %127, %129 : vector<8x64xf32>
    %133 = arith.addf %131, %132 : vector<8x64xf32>
    %134 = math.tanh %133 : vector<8x64xf32>
    %135 = arith.mulf %130, %134 : vector<8x64xf32>
    %136 = vector.extract_strided_slice %135 {offsets = [0, 0], sizes = [8, 32], strides = [1, 1]} : vector<8x64xf32> to vector<8x32xf32>
    %c8_47 = arith.constant 8 : index
    %c0_48 = arith.constant 0 : index
    %137 = vector.load %arg19[%c8_47, %c0_48] : memref<64x64xf32, #tpu.memory_space<vmem>>, vector<8x32xf32>
    tpu.vector_store %arg19[%c8_47, %c0_48], %136 {strides = array<i32>} : memref<64x64xf32, #tpu.memory_space<vmem>>, vector<8x32xf32>,
    %138 = vector.extract_strided_slice %135 {offsets = [0, 32], sizes = [8, 32], strides = [1, 1]} : vector<8x64xf32> to vector<8x32xf32>
    %c48_49 = arith.constant 48 : index
    %c32_50 = arith.constant 32 : index
    %139 = vector.load %arg19[%c48_49, %c32_50] : memref<64x64xf32, #tpu.memory_space<vmem>>, vector<8x32xf32>
    tpu.vector_store %arg19[%c48_49, %c32_50], %138 {strides = array<i32>} : memref<64x64xf32, #tpu.memory_space<vmem>>, vector<8x32xf32>,
    %c16_51 = arith.constant 16 : index
    %c0_52 = arith.constant 0 : index
    %140 = vector.load %arg18[%c16_51, %c0_52] : memref<64x256xf32, #tpu.memory_space<vmem>>, vector<8x256xf32>
    %141 = arith.truncf %135 : vector<8x64xf32> to vector<8x64xbf16>
    %cst_53 = arith.constant dense<0.000000e+00> : vector<8x256xf32>
    %142 = tpu.matmul %141, %99, %cst_53 {dimension_numbers = #tpu.dot_dimension_numbers<[1], [0], [0], [1], [0, 0, 1, 1], [], []>} : vector<8x64xbf16>, vector<64x256xbf16>, vector<8x256xf32> -> vector<8x256xf32>
    %143 = arith.addf %140, %142 : vector<8x256xf32>
    %144 = math.tanh %143 : vector<8x256xf32>
    %145 = arith.mulf %144, %48 : vector<8x256xf32>
    %146 = arith.addf %145, %51 : vector<8x256xf32>
    %147 = vector.extract_strided_slice %146 {offsets = [0, 0], sizes = [8, 64], strides = [1, 1]} : vector<8x256xf32> to vector<8x64xf32>
    %148 = vector.extract_strided_slice %146 {offsets = [0, 64], sizes = [8, 64], strides = [1, 1]} : vector<8x256xf32> to vector<8x64xf32>
    %149 = vector.extract_strided_slice %146 {offsets = [0, 128], sizes = [8, 64], strides = [1, 1]} : vector<8x256xf32> to vector<8x64xf32>
    %150 = vector.extract_strided_slice %146 {offsets = [0, 192], sizes = [8, 64], strides = [1, 1]} : vector<8x256xf32> to vector<8x64xf32>
    %151 = arith.mulf %148, %133 : vector<8x64xf32>
    %152 = arith.mulf %147, %149 : vector<8x64xf32>
    %153 = arith.addf %151, %152 : vector<8x64xf32>
    %154 = math.tanh %153 : vector<8x64xf32>
    %155 = arith.mulf %150, %154 : vector<8x64xf32>
    %156 = vector.extract_strided_slice %155 {offsets = [0, 0], sizes = [8, 32], strides = [1, 1]} : vector<8x64xf32> to vector<8x32xf32>
    %c16_54 = arith.constant 16 : index
    %c0_55 = arith.constant 0 : index
    %157 = vector.load %arg19[%c16_54, %c0_55] : memref<64x64xf32, #tpu.memory_space<vmem>>, vector<8x32xf32>
    tpu.vector_store %arg19[%c16_54, %c0_55], %156 {strides = array<i32>} : memref<64x64xf32, #tpu.memory_space<vmem>>, vector<8x32xf32>,
    %158 = vector.extract_strided_slice %155 {offsets = [0, 32], sizes = [8, 32], strides = [1, 1]} : vector<8x64xf32> to vector<8x32xf32>
    %c40_56 = arith.constant 40 : index
    %c32_57 = arith.constant 32 : index
    %159 = vector.load %arg19[%c40_56, %c32_57] : memref<64x64xf32, #tpu.memory_space<vmem>>, vector<8x32xf32>
    tpu.vector_store %arg19[%c40_56, %c32_57], %158 {strides = array<i32>} : memref<64x64xf32, #tpu.memory_space<vmem>>, vector<8x32xf32>,
    %c24_58 = arith.constant 24 : index
    %c0_59 = arith.constant 0 : index
    %160 = vector.load %arg18[%c24_58, %c0_59] : memref<64x256xf32, #tpu.memory_space<vmem>>, vector<8x256xf32>
    %161 = arith.truncf %155 : vector<8x64xf32> to vector<8x64xbf16>
    %cst_60 = arith.constant dense<0.000000e+00> : vector<8x256xf32>
    %162 = tpu.matmul %161, %99, %cst_60 {dimension_numbers = #tpu.dot_dimension_numbers<[1], [0], [0], [1], [0, 0, 1, 1], [], []>} : vector<8x64xbf16>, vector<64x256xbf16>, vector<8x256xf32> -> vector<8x256xf32>
    %163 = arith.addf %160, %162 : vector<8x256xf32>
    %164 = math.tanh %163 : vector<8x256xf32>
    %165 = arith.mulf %164, %48 : vector<8x256xf32>
    %166 = arith.addf %165, %51 : vector<8x256xf32>
    %167 = vector.extract_strided_slice %166 {offsets = [0, 0], sizes = [8, 64], strides = [1, 1]} : vector<8x256xf32> to vector<8x64xf32>
    %168 = vector.extract_strided_slice %166 {offsets = [0, 64], sizes = [8, 64], strides = [1, 1]} : vector<8x256xf32> to vector<8x64xf32>
    %169 = vector.extract_strided_slice %166 {offsets = [0, 128], sizes = [8, 64], strides = [1, 1]} : vector<8x256xf32> to vector<8x64xf32>
    %170 = vector.extract_strided_slice %166 {offsets = [0, 192], sizes = [8, 64], strides = [1, 1]} : vector<8x256xf32> to vector<8x64xf32>
    %171 = arith.mulf %168, %153 : vector<8x64xf32>
    %172 = arith.mulf %167, %169 : vector<8x64xf32>
    %173 = arith.addf %171, %172 : vector<8x64xf32>
    %174 = math.tanh %173 : vector<8x64xf32>
    %175 = arith.mulf %170, %174 : vector<8x64xf32>
    %176 = vector.extract_strided_slice %175 {offsets = [0, 0], sizes = [8, 32], strides = [1, 1]} : vector<8x64xf32> to vector<8x32xf32>
    %c24_61 = arith.constant 24 : index
    %c0_62 = arith.constant 0 : index
    %177 = vector.load %arg19[%c24_61, %c0_62] : memref<64x64xf32, #tpu.memory_space<vmem>>, vector<8x32xf32>
    tpu.vector_store %arg19[%c24_61, %c0_62], %176 {strides = array<i32>} : memref<64x64xf32, #tpu.memory_space<vmem>>, vector<8x32xf32>,
    %178 = vector.extract_strided_slice %175 {offsets = [0, 32], sizes = [8, 32], strides = [1, 1]} : vector<8x64xf32> to vector<8x32xf32>
    %c32_63 = arith.constant 32 : index
    %c32_64 = arith.constant 32 : index
    %179 = vector.load %arg19[%c32_63, %c32_64] : memref<64x64xf32, #tpu.memory_space<vmem>>, vector<8x32xf32>
    tpu.vector_store %arg19[%c32_63, %c32_64], %178 {strides = array<i32>} : memref<64x64xf32, #tpu.memory_space<vmem>>, vector<8x32xf32>,
    %c32_65 = arith.constant 32 : index
    %c0_66 = arith.constant 0 : index
    %180 = vector.load %arg18[%c32_65, %c0_66] : memref<64x256xf32, #tpu.memory_space<vmem>>, vector<8x256xf32>
    %181 = arith.truncf %175 : vector<8x64xf32> to vector<8x64xbf16>
    %cst_67 = arith.constant dense<0.000000e+00> : vector<8x256xf32>
    %182 = tpu.matmul %181, %99, %cst_67 {dimension_numbers = #tpu.dot_dimension_numbers<[1], [0], [0], [1], [0, 0, 1, 1], [], []>} : vector<8x64xbf16>, vector<64x256xbf16>, vector<8x256xf32> -> vector<8x256xf32>
    %183 = arith.addf %180, %182 : vector<8x256xf32>
    %184 = math.tanh %183 : vector<8x256xf32>
    %185 = arith.mulf %184, %48 : vector<8x256xf32>
    %186 = arith.addf %185, %51 : vector<8x256xf32>
    %187 = vector.extract_strided_slice %186 {offsets = [0, 0], sizes = [8, 64], strides = [1, 1]} : vector<8x256xf32> to vector<8x64xf32>
    %188 = vector.extract_strided_slice %186 {offsets = [0, 64], sizes = [8, 64], strides = [1, 1]} : vector<8x256xf32> to vector<8x64xf32>
    %189 = vector.extract_strided_slice %186 {offsets = [0, 128], sizes = [8, 64], strides = [1, 1]} : vector<8x256xf32> to vector<8x64xf32>
    %190 = vector.extract_strided_slice %186 {offsets = [0, 192], sizes = [8, 64], strides = [1, 1]} : vector<8x256xf32> to vector<8x64xf32>
    %191 = arith.mulf %188, %173 : vector<8x64xf32>
    %192 = arith.mulf %187, %189 : vector<8x64xf32>
    %193 = arith.addf %191, %192 : vector<8x64xf32>
    %194 = math.tanh %193 : vector<8x64xf32>
    %195 = arith.mulf %190, %194 : vector<8x64xf32>
    %196 = vector.extract_strided_slice %195 {offsets = [0, 0], sizes = [8, 32], strides = [1, 1]} : vector<8x64xf32> to vector<8x32xf32>
    %c32_68 = arith.constant 32 : index
    %c0_69 = arith.constant 0 : index
    %197 = vector.load %arg19[%c32_68, %c0_69] : memref<64x64xf32, #tpu.memory_space<vmem>>, vector<8x32xf32>
    tpu.vector_store %arg19[%c32_68, %c0_69], %196 {strides = array<i32>} : memref<64x64xf32, #tpu.memory_space<vmem>>, vector<8x32xf32>,
    %198 = vector.extract_strided_slice %195 {offsets = [0, 32], sizes = [8, 32], strides = [1, 1]} : vector<8x64xf32> to vector<8x32xf32>
    %c24_70 = arith.constant 24 : index
    %c32_71 = arith.constant 32 : index
    %199 = vector.load %arg19[%c24_70, %c32_71] : memref<64x64xf32, #tpu.memory_space<vmem>>, vector<8x32xf32>
    tpu.vector_store %arg19[%c24_70, %c32_71], %198 {strides = array<i32>} : memref<64x64xf32, #tpu.memory_space<vmem>>, vector<8x32xf32>,
    %c40_72 = arith.constant 40 : index
    %c0_73 = arith.constant 0 : index
    %200 = vector.load %arg18[%c40_72, %c0_73] : memref<64x256xf32, #tpu.memory_space<vmem>>, vector<8x256xf32>
    %201 = arith.truncf %195 : vector<8x64xf32> to vector<8x64xbf16>
    %cst_74 = arith.constant dense<0.000000e+00> : vector<8x256xf32>
    %202 = tpu.matmul %201, %99, %cst_74 {dimension_numbers = #tpu.dot_dimension_numbers<[1], [0], [0], [1], [0, 0, 1, 1], [], []>} : vector<8x64xbf16>, vector<64x256xbf16>, vector<8x256xf32> -> vector<8x256xf32>
    %203 = arith.addf %200, %202 : vector<8x256xf32>
    %204 = math.tanh %203 : vector<8x256xf32>
    %205 = arith.mulf %204, %48 : vector<8x256xf32>
    %206 = arith.addf %205, %51 : vector<8x256xf32>
    %207 = vector.extract_strided_slice %206 {offsets = [0, 0], sizes = [8, 64], strides = [1, 1]} : vector<8x256xf32> to vector<8x64xf32>
    %208 = vector.extract_strided_slice %206 {offsets = [0, 64], sizes = [8, 64], strides = [1, 1]} : vector<8x256xf32> to vector<8x64xf32>
    %209 = vector.extract_strided_slice %206 {offsets = [0, 128], sizes = [8, 64], strides = [1, 1]} : vector<8x256xf32> to vector<8x64xf32>
    %210 = vector.extract_strided_slice %206 {offsets = [0, 192], sizes = [8, 64], strides = [1, 1]} : vector<8x256xf32> to vector<8x64xf32>
    %211 = arith.mulf %208, %193 : vector<8x64xf32>
    %212 = arith.mulf %207, %209 : vector<8x64xf32>
    %213 = arith.addf %211, %212 : vector<8x64xf32>
    %214 = math.tanh %213 : vector<8x64xf32>
    %215 = arith.mulf %210, %214 : vector<8x64xf32>
    %216 = vector.extract_strided_slice %215 {offsets = [0, 0], sizes = [8, 32], strides = [1, 1]} : vector<8x64xf32> to vector<8x32xf32>
    %c40_75 = arith.constant 40 : index
    %c0_76 = arith.constant 0 : index
    %217 = vector.load %arg19[%c40_75, %c0_76] : memref<64x64xf32, #tpu.memory_space<vmem>>, vector<8x32xf32>
    tpu.vector_store %arg19[%c40_75, %c0_76], %216 {strides = array<i32>} : memref<64x64xf32, #tpu.memory_space<vmem>>, vector<8x32xf32>,
    %218 = vector.extract_strided_slice %215 {offsets = [0, 32], sizes = [8, 32], strides = [1, 1]} : vector<8x64xf32> to vector<8x32xf32>
    %c16_77 = arith.constant 16 : index
    %c32_78 = arith.constant 32 : index
    %219 = vector.load %arg19[%c16_77, %c32_78] : memref<64x64xf32, #tpu.memory_space<vmem>>, vector<8x32xf32>
    tpu.vector_store %arg19[%c16_77, %c32_78], %218 {strides = array<i32>} : memref<64x64xf32, #tpu.memory_space<vmem>>, vector<8x32xf32>,
    %c48_79 = arith.constant 48 : index
    %c0_80 = arith.constant 0 : index
    %220 = vector.load %arg18[%c48_79, %c0_80] : memref<64x256xf32, #tpu.memory_space<vmem>>, vector<8x256xf32>
    %221 = arith.truncf %215 : vector<8x64xf32> to vector<8x64xbf16>
    %cst_81 = arith.constant dense<0.000000e+00> : vector<8x256xf32>
    %222 = tpu.matmul %221, %99, %cst_81 {dimension_numbers = #tpu.dot_dimension_numbers<[1], [0], [0], [1], [0, 0, 1, 1], [], []>} : vector<8x64xbf16>, vector<64x256xbf16>, vector<8x256xf32> -> vector<8x256xf32>
    %223 = arith.addf %220, %222 : vector<8x256xf32>
    %224 = math.tanh %223 : vector<8x256xf32>
    %225 = arith.mulf %224, %48 : vector<8x256xf32>
    %226 = arith.addf %225, %51 : vector<8x256xf32>
    %227 = vector.extract_strided_slice %226 {offsets = [0, 0], sizes = [8, 64], strides = [1, 1]} : vector<8x256xf32> to vector<8x64xf32>
    %228 = vector.extract_strided_slice %226 {offsets = [0, 64], sizes = [8, 64], strides = [1, 1]} : vector<8x256xf32> to vector<8x64xf32>
    %229 = vector.extract_strided_slice %226 {offsets = [0, 128], sizes = [8, 64], strides = [1, 1]} : vector<8x256xf32> to vector<8x64xf32>
    %230 = vector.extract_strided_slice %226 {offsets = [0, 192], sizes = [8, 64], strides = [1, 1]} : vector<8x256xf32> to vector<8x64xf32>
    %231 = arith.mulf %228, %213 : vector<8x64xf32>
    %232 = arith.mulf %227, %229 : vector<8x64xf32>
    %233 = arith.addf %231, %232 : vector<8x64xf32>
    %234 = math.tanh %233 : vector<8x64xf32>
    %235 = arith.mulf %230, %234 : vector<8x64xf32>
    %236 = vector.extract_strided_slice %235 {offsets = [0, 0], sizes = [8, 32], strides = [1, 1]} : vector<8x64xf32> to vector<8x32xf32>
    %c48_82 = arith.constant 48 : index
    %c0_83 = arith.constant 0 : index
    %237 = vector.load %arg19[%c48_82, %c0_83] : memref<64x64xf32, #tpu.memory_space<vmem>>, vector<8x32xf32>
    tpu.vector_store %arg19[%c48_82, %c0_83], %236 {strides = array<i32>} : memref<64x64xf32, #tpu.memory_space<vmem>>, vector<8x32xf32>,
    %238 = vector.extract_strided_slice %235 {offsets = [0, 32], sizes = [8, 32], strides = [1, 1]} : vector<8x64xf32> to vector<8x32xf32>
    %c8_84 = arith.constant 8 : index
    %c32_85 = arith.constant 32 : index
    %239 = vector.load %arg19[%c8_84, %c32_85] : memref<64x64xf32, #tpu.memory_space<vmem>>, vector<8x32xf32>
    tpu.vector_store %arg19[%c8_84, %c32_85], %238 {strides = array<i32>} : memref<64x64xf32, #tpu.memory_space<vmem>>, vector<8x32xf32>,
    %c56_86 = arith.constant 56 : index
    %c0_87 = arith.constant 0 : index
    %240 = vector.load %arg18[%c56_86, %c0_87] : memref<64x256xf32, #tpu.memory_space<vmem>>, vector<8x256xf32>
    %241 = arith.truncf %235 : vector<8x64xf32> to vector<8x64xbf16>
    %cst_88 = arith.constant dense<0.000000e+00> : vector<8x256xf32>
    %242 = tpu.matmul %241, %99, %cst_88 {dimension_numbers = #tpu.dot_dimension_numbers<[1], [0], [0], [1], [0, 0, 1, 1], [], []>} : vector<8x64xbf16>, vector<64x256xbf16>, vector<8x256xf32> -> vector<8x256xf32>
    %243 = arith.addf %240, %242 : vector<8x256xf32>
    %244 = math.tanh %243 : vector<8x256xf32>
    %245 = arith.mulf %244, %48 : vector<8x256xf32>
    %246 = arith.addf %245, %51 : vector<8x256xf32>
    %247 = vector.extract_strided_slice %246 {offsets = [0, 0], sizes = [8, 64], strides = [1, 1]} : vector<8x256xf32> to vector<8x64xf32>
    %248 = vector.extract_strided_slice %246 {offsets = [0, 64], sizes = [8, 64], strides = [1, 1]} : vector<8x256xf32> to vector<8x64xf32>
    %249 = vector.extract_strided_slice %246 {offsets = [0, 128], sizes = [8, 64], strides = [1, 1]} : vector<8x256xf32> to vector<8x64xf32>
    %250 = vector.extract_strided_slice %246 {offsets = [0, 192], sizes = [8, 64], strides = [1, 1]} : vector<8x256xf32> to vector<8x64xf32>
    %251 = arith.mulf %248, %233 : vector<8x64xf32>
    %252 = arith.mulf %247, %249 : vector<8x64xf32>
    %253 = arith.addf %251, %252 : vector<8x64xf32>
    %254 = math.tanh %253 : vector<8x64xf32>
    %255 = arith.mulf %250, %254 : vector<8x64xf32>
    %256 = vector.extract_strided_slice %255 {offsets = [0, 0], sizes = [8, 32], strides = [1, 1]} : vector<8x64xf32> to vector<8x32xf32>
    %c56_89 = arith.constant 56 : index
    %c0_90 = arith.constant 0 : index
    %257 = vector.load %arg19[%c56_89, %c0_90] : memref<64x64xf32, #tpu.memory_space<vmem>>, vector<8x32xf32>
    tpu.vector_store %arg19[%c56_89, %c0_90], %256 {strides = array<i32>} : memref<64x64xf32, #tpu.memory_space<vmem>>, vector<8x32xf32>,
    %258 = vector.extract_strided_slice %255 {offsets = [0, 32], sizes = [8, 32], strides = [1, 1]} : vector<8x64xf32> to vector<8x32xf32>
    %c0_91 = arith.constant 0 : index
    %c32_92 = arith.constant 32 : index
    %259 = vector.load %arg19[%c0_91, %c32_92] : memref<64x64xf32, #tpu.memory_space<vmem>>, vector<8x32xf32>
    tpu.vector_store %arg19[%c0_91, %c32_92], %258 {strides = array<i32>} : memref<64x64xf32, #tpu.memory_space<vmem>>, vector<8x32xf32>,
    %c0_93 = arith.constant 0 : index
    %c0_94 = arith.constant 0 : index
    %260 = vector.load %arg19[%c0_93, %c0_94] : memref<64x64xf32, #tpu.memory_space<vmem>>, vector<64x64xf32>
    %261 = arith.truncf %260 : vector<64x64xf32> to vector<64x64xbf16>
    %c0_95 = arith.constant 0 : index
    %c0_96 = arith.constant 0 : index
    %262 = vector.load %arg8[%c0_95, %c0_96] : memref<64x256xbf16, #tpu.memory_space<vmem>>, vector<64x256xbf16>
    %cst_97 = arith.constant dense<0.000000e+00> : vector<64x256xf32>
    %263 = tpu.matmul %261, %262, %cst_97 {dimension_numbers = #tpu.dot_dimension_numbers<[1], [0], [0], [1], [0, 0, 1, 1], [], []>} : vector<64x64xbf16>, vector<64x256xbf16>, vector<64x256xf32> -> vector<64x256xf32>
    %c0_98 = arith.constant 0 : index
    %c0_99 = arith.constant 0 : index
    %264 = vector.load %arg9[%c0_98, %c0_99] : memref<1x256xf32, #tpu.memory_space<vmem>>, vector<1x256xf32>
    %265 = vector.shape_cast %264 : vector<1x256xf32> to vector<1x256xf32>
    %266 = vector.broadcast %265 : vector<1x256xf32> to vector<8x256xf32>
    %267 = vector.extract_strided_slice %263 {offsets = [0, 0], sizes = [8, 256], strides = [1, 1]} : vector<64x256xf32> to vector<8x256xf32>
    %268 = vector.extract_strided_slice %263 {offsets = [56, 0], sizes = [8, 256], strides = [1, 1]} : vector<64x256xf32> to vector<8x256xf32>
    %269 = arith.select %45, %267, %268 : vector<8x256xi1>, vector<8x256xf32>
    %270 = arith.addf %269, %266 : vector<8x256xf32>
    %c0_100 = arith.constant 0 : index
    %c0_101 = arith.constant 0 : index
    %271 = vector.load %arg18[%c0_100, %c0_101] : memref<64x256xf32, #tpu.memory_space<vmem>>, vector<8x256xf32>
    tpu.vector_store %arg18[%c0_100, %c0_101], %270 {strides = array<i32>} : memref<64x256xf32, #tpu.memory_space<vmem>>, vector<8x256xf32>,
    %272 = vector.extract_strided_slice %263 {offsets = [8, 0], sizes = [8, 256], strides = [1, 1]} : vector<64x256xf32> to vector<8x256xf32>
    %273 = vector.extract_strided_slice %263 {offsets = [48, 0], sizes = [8, 256], strides = [1, 1]} : vector<64x256xf32> to vector<8x256xf32>
    %274 = arith.select %45, %272, %273 : vector<8x256xi1>, vector<8x256xf32>
    %275 = arith.addf %274, %266 : vector<8x256xf32>
    %c8_102 = arith.constant 8 : index
    %c0_103 = arith.constant 0 : index
    %276 = vector.load %arg18[%c8_102, %c0_103] : memref<64x256xf32, #tpu.memory_space<vmem>>, vector<8x256xf32>
    tpu.vector_store %arg18[%c8_102, %c0_103], %275 {strides = array<i32>} : memref<64x256xf32, #tpu.memory_space<vmem>>, vector<8x256xf32>,
    %277 = vector.extract_strided_slice %263 {offsets = [16, 0], sizes = [8, 256], strides = [1, 1]} : vector<64x256xf32> to vector<8x256xf32>
    %278 = vector.extract_strided_slice %263 {offsets = [40, 0], sizes = [8, 256], strides = [1, 1]} : vector<64x256xf32> to vector<8x256xf32>
    %279 = arith.select %45, %277, %278 : vector<8x256xi1>, vector<8x256xf32>
    %280 = arith.addf %279, %266 : vector<8x256xf32>
    %c16_104 = arith.constant 16 : index
    %c0_105 = arith.constant 0 : index
    %281 = vector.load %arg18[%c16_104, %c0_105] : memref<64x256xf32, #tpu.memory_space<vmem>>, vector<8x256xf32>
    tpu.vector_store %arg18[%c16_104, %c0_105], %280 {strides = array<i32>} : memref<64x256xf32, #tpu.memory_space<vmem>>, vector<8x256xf32>,
    %282 = vector.extract_strided_slice %263 {offsets = [24, 0], sizes = [8, 256], strides = [1, 1]} : vector<64x256xf32> to vector<8x256xf32>
    %283 = vector.extract_strided_slice %263 {offsets = [32, 0], sizes = [8, 256], strides = [1, 1]} : vector<64x256xf32> to vector<8x256xf32>
    %284 = arith.select %45, %282, %283 : vector<8x256xi1>, vector<8x256xf32>
    %285 = arith.addf %284, %266 : vector<8x256xf32>
    %c24_106 = arith.constant 24 : index
    %c0_107 = arith.constant 0 : index
    %286 = vector.load %arg18[%c24_106, %c0_107] : memref<64x256xf32, #tpu.memory_space<vmem>>, vector<8x256xf32>
    tpu.vector_store %arg18[%c24_106, %c0_107], %285 {strides = array<i32>} : memref<64x256xf32, #tpu.memory_space<vmem>>, vector<8x256xf32>,
    %287 = vector.extract_strided_slice %263 {offsets = [32, 0], sizes = [8, 256], strides = [1, 1]} : vector<64x256xf32> to vector<8x256xf32>
    %288 = vector.extract_strided_slice %263 {offsets = [24, 0], sizes = [8, 256], strides = [1, 1]} : vector<64x256xf32> to vector<8x256xf32>
    %289 = arith.select %45, %287, %288 : vector<8x256xi1>, vector<8x256xf32>
    %290 = arith.addf %289, %266 : vector<8x256xf32>
    %c32_108 = arith.constant 32 : index
    %c0_109 = arith.constant 0 : index
    %291 = vector.load %arg18[%c32_108, %c0_109] : memref<64x256xf32, #tpu.memory_space<vmem>>, vector<8x256xf32>
    tpu.vector_store %arg18[%c32_108, %c0_109], %290 {strides = array<i32>} : memref<64x256xf32, #tpu.memory_space<vmem>>, vector<8x256xf32>,
    %292 = vector.extract_strided_slice %263 {offsets = [40, 0], sizes = [8, 256], strides = [1, 1]} : vector<64x256xf32> to vector<8x256xf32>
    %293 = vector.extract_strided_slice %263 {offsets = [16, 0], sizes = [8, 256], strides = [1, 1]} : vector<64x256xf32> to vector<8x256xf32>
    %294 = arith.select %45, %292, %293 : vector<8x256xi1>, vector<8x256xf32>
    %295 = arith.addf %294, %266 : vector<8x256xf32>
    %c40_110 = arith.constant 40 : index
    %c0_111 = arith.constant 0 : index
    %296 = vector.load %arg18[%c40_110, %c0_111] : memref<64x256xf32, #tpu.memory_space<vmem>>, vector<8x256xf32>
    tpu.vector_store %arg18[%c40_110, %c0_111], %295 {strides = array<i32>} : memref<64x256xf32, #tpu.memory_space<vmem>>, vector<8x256xf32>,
    %297 = vector.extract_strided_slice %263 {offsets = [48, 0], sizes = [8, 256], strides = [1, 1]} : vector<64x256xf32> to vector<8x256xf32>
    %298 = vector.extract_strided_slice %263 {offsets = [8, 0], sizes = [8, 256], strides = [1, 1]} : vector<64x256xf32> to vector<8x256xf32>
    %299 = arith.select %45, %297, %298 : vector<8x256xi1>, vector<8x256xf32>
    %300 = arith.addf %299, %266 : vector<8x256xf32>
    %c48_112 = arith.constant 48 : index
    %c0_113 = arith.constant 0 : index
    %301 = vector.load %arg18[%c48_112, %c0_113] : memref<64x256xf32, #tpu.memory_space<vmem>>, vector<8x256xf32>
    tpu.vector_store %arg18[%c48_112, %c0_113], %300 {strides = array<i32>} : memref<64x256xf32, #tpu.memory_space<vmem>>, vector<8x256xf32>,
    %302 = vector.extract_strided_slice %263 {offsets = [56, 0], sizes = [8, 256], strides = [1, 1]} : vector<64x256xf32> to vector<8x256xf32>
    %303 = vector.extract_strided_slice %263 {offsets = [0, 0], sizes = [8, 256], strides = [1, 1]} : vector<64x256xf32> to vector<8x256xf32>
    %304 = arith.select %45, %302, %303 : vector<8x256xi1>, vector<8x256xf32>
    %305 = arith.addf %304, %266 : vector<8x256xf32>
    %c56_114 = arith.constant 56 : index
    %c0_115 = arith.constant 0 : index
    %306 = vector.load %arg18[%c56_114, %c0_115] : memref<64x256xf32, #tpu.memory_space<vmem>>, vector<8x256xf32>
    tpu.vector_store %arg18[%c56_114, %c0_115], %305 {strides = array<i32>} : memref<64x256xf32, #tpu.memory_space<vmem>>, vector<8x256xf32>,
    %c0_116 = arith.constant 0 : index
    %c0_117 = arith.constant 0 : index
    %307 = vector.load %arg10[%c0_116, %c0_117] : memref<64x256xbf16, #tpu.memory_space<vmem>>, vector<64x256xbf16>
    %c0_118 = arith.constant 0 : index
    %c0_119 = arith.constant 0 : index
    %308 = vector.load %arg18[%c0_118, %c0_119] : memref<64x256xf32, #tpu.memory_space<vmem>>, vector<8x256xf32>
    %309 = arith.truncf %52 : vector<8x64xf32> to vector<8x64xbf16>
    %cst_120 = arith.constant dense<0.000000e+00> : vector<8x256xf32>
    %310 = tpu.matmul %309, %307, %cst_120 {dimension_numbers = #tpu.dot_dimension_numbers<[1], [0], [0], [1], [0, 0, 1, 1], [], []>} : vector<8x64xbf16>, vector<64x256xbf16>, vector<8x256xf32> -> vector<8x256xf32>
    %311 = arith.addf %308, %310 : vector<8x256xf32>
    %312 = math.tanh %311 : vector<8x256xf32>
    %313 = arith.mulf %312, %48 : vector<8x256xf32>
    %314 = arith.addf %313, %51 : vector<8x256xf32>
    %315 = vector.extract_strided_slice %314 {offsets = [0, 0], sizes = [8, 64], strides = [1, 1]} : vector<8x256xf32> to vector<8x64xf32>
    %316 = vector.extract_strided_slice %314 {offsets = [0, 64], sizes = [8, 64], strides = [1, 1]} : vector<8x256xf32> to vector<8x64xf32>
    %317 = vector.extract_strided_slice %314 {offsets = [0, 128], sizes = [8, 64], strides = [1, 1]} : vector<8x256xf32> to vector<8x64xf32>
    %318 = vector.extract_strided_slice %314 {offsets = [0, 192], sizes = [8, 64], strides = [1, 1]} : vector<8x256xf32> to vector<8x64xf32>
    %319 = arith.mulf %316, %52 : vector<8x64xf32>
    %320 = arith.mulf %315, %317 : vector<8x64xf32>
    %321 = arith.addf %319, %320 : vector<8x64xf32>
    %322 = math.tanh %321 : vector<8x64xf32>
    %323 = arith.mulf %318, %322 : vector<8x64xf32>
    %324 = vector.extract_strided_slice %323 {offsets = [0, 0], sizes = [8, 32], strides = [1, 1]} : vector<8x64xf32> to vector<8x32xf32>
    %c0_121 = arith.constant 0 : index
    %c0_122 = arith.constant 0 : index
    %325 = vector.load %arg19[%c0_121, %c0_122] : memref<64x64xf32, #tpu.memory_space<vmem>>, vector<8x32xf32>
    tpu.vector_store %arg19[%c0_121, %c0_122], %324 {strides = array<i32>} : memref<64x64xf32, #tpu.memory_space<vmem>>, vector<8x32xf32>,
    %326 = vector.extract_strided_slice %323 {offsets = [0, 32], sizes = [8, 32], strides = [1, 1]} : vector<8x64xf32> to vector<8x32xf32>
    %c56_123 = arith.constant 56 : index
    %c32_124 = arith.constant 32 : index
    %327 = vector.load %arg19[%c56_123, %c32_124] : memref<64x64xf32, #tpu.memory_space<vmem>>, vector<8x32xf32>
    tpu.vector_store %arg19[%c56_123, %c32_124], %326 {strides = array<i32>} : memref<64x64xf32, #tpu.memory_space<vmem>>, vector<8x32xf32>,
    %c8_125 = arith.constant 8 : index
    %c0_126 = arith.constant 0 : index
    %328 = vector.load %arg18[%c8_125, %c0_126] : memref<64x256xf32, #tpu.memory_space<vmem>>, vector<8x256xf32>
    %329 = arith.truncf %323 : vector<8x64xf32> to vector<8x64xbf16>
    %cst_127 = arith.constant dense<0.000000e+00> : vector<8x256xf32>
    %330 = tpu.matmul %329, %307, %cst_127 {dimension_numbers = #tpu.dot_dimension_numbers<[1], [0], [0], [1], [0, 0, 1, 1], [], []>} : vector<8x64xbf16>, vector<64x256xbf16>, vector<8x256xf32> -> vector<8x256xf32>
    %331 = arith.addf %328, %330 : vector<8x256xf32>
    %332 = math.tanh %331 : vector<8x256xf32>
    %333 = arith.mulf %332, %48 : vector<8x256xf32>
    %334 = arith.addf %333, %51 : vector<8x256xf32>
    %335 = vector.extract_strided_slice %334 {offsets = [0, 0], sizes = [8, 64], strides = [1, 1]} : vector<8x256xf32> to vector<8x64xf32>
    %336 = vector.extract_strided_slice %334 {offsets = [0, 64], sizes = [8, 64], strides = [1, 1]} : vector<8x256xf32> to vector<8x64xf32>
    %337 = vector.extract_strided_slice %334 {offsets = [0, 128], sizes = [8, 64], strides = [1, 1]} : vector<8x256xf32> to vector<8x64xf32>
    %338 = vector.extract_strided_slice %334 {offsets = [0, 192], sizes = [8, 64], strides = [1, 1]} : vector<8x256xf32> to vector<8x64xf32>
    %339 = arith.mulf %336, %321 : vector<8x64xf32>
    %340 = arith.mulf %335, %337 : vector<8x64xf32>
    %341 = arith.addf %339, %340 : vector<8x64xf32>
    %342 = math.tanh %341 : vector<8x64xf32>
    %343 = arith.mulf %338, %342 : vector<8x64xf32>
    %344 = vector.extract_strided_slice %343 {offsets = [0, 0], sizes = [8, 32], strides = [1, 1]} : vector<8x64xf32> to vector<8x32xf32>
    %c8_128 = arith.constant 8 : index
    %c0_129 = arith.constant 0 : index
    %345 = vector.load %arg19[%c8_128, %c0_129] : memref<64x64xf32, #tpu.memory_space<vmem>>, vector<8x32xf32>
    tpu.vector_store %arg19[%c8_128, %c0_129], %344 {strides = array<i32>} : memref<64x64xf32, #tpu.memory_space<vmem>>, vector<8x32xf32>,
    %346 = vector.extract_strided_slice %343 {offsets = [0, 32], sizes = [8, 32], strides = [1, 1]} : vector<8x64xf32> to vector<8x32xf32>
    %c48_130 = arith.constant 48 : index
    %c32_131 = arith.constant 32 : index
    %347 = vector.load %arg19[%c48_130, %c32_131] : memref<64x64xf32, #tpu.memory_space<vmem>>, vector<8x32xf32>
    tpu.vector_store %arg19[%c48_130, %c32_131], %346 {strides = array<i32>} : memref<64x64xf32, #tpu.memory_space<vmem>>, vector<8x32xf32>,
    %c16_132 = arith.constant 16 : index
    %c0_133 = arith.constant 0 : index
    %348 = vector.load %arg18[%c16_132, %c0_133] : memref<64x256xf32, #tpu.memory_space<vmem>>, vector<8x256xf32>
    %349 = arith.truncf %343 : vector<8x64xf32> to vector<8x64xbf16>
    %cst_134 = arith.constant dense<0.000000e+00> : vector<8x256xf32>
    %350 = tpu.matmul %349, %307, %cst_134 {dimension_numbers = #tpu.dot_dimension_numbers<[1], [0], [0], [1], [0, 0, 1, 1], [], []>} : vector<8x64xbf16>, vector<64x256xbf16>, vector<8x256xf32> -> vector<8x256xf32>
    %351 = arith.addf %348, %350 : vector<8x256xf32>
    %352 = math.tanh %351 : vector<8x256xf32>
    %353 = arith.mulf %352, %48 : vector<8x256xf32>
    %354 = arith.addf %353, %51 : vector<8x256xf32>
    %355 = vector.extract_strided_slice %354 {offsets = [0, 0], sizes = [8, 64], strides = [1, 1]} : vector<8x256xf32> to vector<8x64xf32>
    %356 = vector.extract_strided_slice %354 {offsets = [0, 64], sizes = [8, 64], strides = [1, 1]} : vector<8x256xf32> to vector<8x64xf32>
    %357 = vector.extract_strided_slice %354 {offsets = [0, 128], sizes = [8, 64], strides = [1, 1]} : vector<8x256xf32> to vector<8x64xf32>
    %358 = vector.extract_strided_slice %354 {offsets = [0, 192], sizes = [8, 64], strides = [1, 1]} : vector<8x256xf32> to vector<8x64xf32>
    %359 = arith.mulf %356, %341 : vector<8x64xf32>
    %360 = arith.mulf %355, %357 : vector<8x64xf32>
    %361 = arith.addf %359, %360 : vector<8x64xf32>
    %362 = math.tanh %361 : vector<8x64xf32>
    %363 = arith.mulf %358, %362 : vector<8x64xf32>
    %364 = vector.extract_strided_slice %363 {offsets = [0, 0], sizes = [8, 32], strides = [1, 1]} : vector<8x64xf32> to vector<8x32xf32>
    %c16_135 = arith.constant 16 : index
    %c0_136 = arith.constant 0 : index
    %365 = vector.load %arg19[%c16_135, %c0_136] : memref<64x64xf32, #tpu.memory_space<vmem>>, vector<8x32xf32>
    tpu.vector_store %arg19[%c16_135, %c0_136], %364 {strides = array<i32>} : memref<64x64xf32, #tpu.memory_space<vmem>>, vector<8x32xf32>,
    %366 = vector.extract_strided_slice %363 {offsets = [0, 32], sizes = [8, 32], strides = [1, 1]} : vector<8x64xf32> to vector<8x32xf32>
    %c40_137 = arith.constant 40 : index
    %c32_138 = arith.constant 32 : index
    %367 = vector.load %arg19[%c40_137, %c32_138] : memref<64x64xf32, #tpu.memory_space<vmem>>, vector<8x32xf32>
    tpu.vector_store %arg19[%c40_137, %c32_138], %366 {strides = array<i32>} : memref<64x64xf32, #tpu.memory_space<vmem>>, vector<8x32xf32>,
    %c24_139 = arith.constant 24 : index
    %c0_140 = arith.constant 0 : index
    %368 = vector.load %arg18[%c24_139, %c0_140] : memref<64x256xf32, #tpu.memory_space<vmem>>, vector<8x256xf32>
    %369 = arith.truncf %363 : vector<8x64xf32> to vector<8x64xbf16>
    %cst_141 = arith.constant dense<0.000000e+00> : vector<8x256xf32>
    %370 = tpu.matmul %369, %307, %cst_141 {dimension_numbers = #tpu.dot_dimension_numbers<[1], [0], [0], [1], [0, 0, 1, 1], [], []>} : vector<8x64xbf16>, vector<64x256xbf16>, vector<8x256xf32> -> vector<8x256xf32>
    %371 = arith.addf %368, %370 : vector<8x256xf32>
    %372 = math.tanh %371 : vector<8x256xf32>
    %373 = arith.mulf %372, %48 : vector<8x256xf32>
    %374 = arith.addf %373, %51 : vector<8x256xf32>
    %375 = vector.extract_strided_slice %374 {offsets = [0, 0], sizes = [8, 64], strides = [1, 1]} : vector<8x256xf32> to vector<8x64xf32>
    %376 = vector.extract_strided_slice %374 {offsets = [0, 64], sizes = [8, 64], strides = [1, 1]} : vector<8x256xf32> to vector<8x64xf32>
    %377 = vector.extract_strided_slice %374 {offsets = [0, 128], sizes = [8, 64], strides = [1, 1]} : vector<8x256xf32> to vector<8x64xf32>
    %378 = vector.extract_strided_slice %374 {offsets = [0, 192], sizes = [8, 64], strides = [1, 1]} : vector<8x256xf32> to vector<8x64xf32>
    %379 = arith.mulf %376, %361 : vector<8x64xf32>
    %380 = arith.mulf %375, %377 : vector<8x64xf32>
    %381 = arith.addf %379, %380 : vector<8x64xf32>
    %382 = math.tanh %381 : vector<8x64xf32>
    %383 = arith.mulf %378, %382 : vector<8x64xf32>
    %384 = vector.extract_strided_slice %383 {offsets = [0, 0], sizes = [8, 32], strides = [1, 1]} : vector<8x64xf32> to vector<8x32xf32>
    %c24_142 = arith.constant 24 : index
    %c0_143 = arith.constant 0 : index
    %385 = vector.load %arg19[%c24_142, %c0_143] : memref<64x64xf32, #tpu.memory_space<vmem>>, vector<8x32xf32>
    tpu.vector_store %arg19[%c24_142, %c0_143], %384 {strides = array<i32>} : memref<64x64xf32, #tpu.memory_space<vmem>>, vector<8x32xf32>,
    %386 = vector.extract_strided_slice %383 {offsets = [0, 32], sizes = [8, 32], strides = [1, 1]} : vector<8x64xf32> to vector<8x32xf32>
    %c32_144 = arith.constant 32 : index
    %c32_145 = arith.constant 32 : index
    %387 = vector.load %arg19[%c32_144, %c32_145] : memref<64x64xf32, #tpu.memory_space<vmem>>, vector<8x32xf32>
    tpu.vector_store %arg19[%c32_144, %c32_145], %386 {strides = array<i32>} : memref<64x64xf32, #tpu.memory_space<vmem>>, vector<8x32xf32>,
    %c32_146 = arith.constant 32 : index
    %c0_147 = arith.constant 0 : index
    %388 = vector.load %arg18[%c32_146, %c0_147] : memref<64x256xf32, #tpu.memory_space<vmem>>, vector<8x256xf32>
    %389 = arith.truncf %383 : vector<8x64xf32> to vector<8x64xbf16>
    %cst_148 = arith.constant dense<0.000000e+00> : vector<8x256xf32>
    %390 = tpu.matmul %389, %307, %cst_148 {dimension_numbers = #tpu.dot_dimension_numbers<[1], [0], [0], [1], [0, 0, 1, 1], [], []>} : vector<8x64xbf16>, vector<64x256xbf16>, vector<8x256xf32> -> vector<8x256xf32>
    %391 = arith.addf %388, %390 : vector<8x256xf32>
    %392 = math.tanh %391 : vector<8x256xf32>
    %393 = arith.mulf %392, %48 : vector<8x256xf32>
    %394 = arith.addf %393, %51 : vector<8x256xf32>
    %395 = vector.extract_strided_slice %394 {offsets = [0, 0], sizes = [8, 64], strides = [1, 1]} : vector<8x256xf32> to vector<8x64xf32>
    %396 = vector.extract_strided_slice %394 {offsets = [0, 64], sizes = [8, 64], strides = [1, 1]} : vector<8x256xf32> to vector<8x64xf32>
    %397 = vector.extract_strided_slice %394 {offsets = [0, 128], sizes = [8, 64], strides = [1, 1]} : vector<8x256xf32> to vector<8x64xf32>
    %398 = vector.extract_strided_slice %394 {offsets = [0, 192], sizes = [8, 64], strides = [1, 1]} : vector<8x256xf32> to vector<8x64xf32>
    %399 = arith.mulf %396, %381 : vector<8x64xf32>
    %400 = arith.mulf %395, %397 : vector<8x64xf32>
    %401 = arith.addf %399, %400 : vector<8x64xf32>
    %402 = math.tanh %401 : vector<8x64xf32>
    %403 = arith.mulf %398, %402 : vector<8x64xf32>
    %404 = vector.extract_strided_slice %403 {offsets = [0, 0], sizes = [8, 32], strides = [1, 1]} : vector<8x64xf32> to vector<8x32xf32>
    %c32_149 = arith.constant 32 : index
    %c0_150 = arith.constant 0 : index
    %405 = vector.load %arg19[%c32_149, %c0_150] : memref<64x64xf32, #tpu.memory_space<vmem>>, vector<8x32xf32>
    tpu.vector_store %arg19[%c32_149, %c0_150], %404 {strides = array<i32>} : memref<64x64xf32, #tpu.memory_space<vmem>>, vector<8x32xf32>,
    %406 = vector.extract_strided_slice %403 {offsets = [0, 32], sizes = [8, 32], strides = [1, 1]} : vector<8x64xf32> to vector<8x32xf32>
    %c24_151 = arith.constant 24 : index
    %c32_152 = arith.constant 32 : index
    %407 = vector.load %arg19[%c24_151, %c32_152] : memref<64x64xf32, #tpu.memory_space<vmem>>, vector<8x32xf32>
    tpu.vector_store %arg19[%c24_151, %c32_152], %406 {strides = array<i32>} : memref<64x64xf32, #tpu.memory_space<vmem>>, vector<8x32xf32>,
    %c40_153 = arith.constant 40 : index
    %c0_154 = arith.constant 0 : index
    %408 = vector.load %arg18[%c40_153, %c0_154] : memref<64x256xf32, #tpu.memory_space<vmem>>, vector<8x256xf32>
    %409 = arith.truncf %403 : vector<8x64xf32> to vector<8x64xbf16>
    %cst_155 = arith.constant dense<0.000000e+00> : vector<8x256xf32>
    %410 = tpu.matmul %409, %307, %cst_155 {dimension_numbers = #tpu.dot_dimension_numbers<[1], [0], [0], [1], [0, 0, 1, 1], [], []>} : vector<8x64xbf16>, vector<64x256xbf16>, vector<8x256xf32> -> vector<8x256xf32>
    %411 = arith.addf %408, %410 : vector<8x256xf32>
    %412 = math.tanh %411 : vector<8x256xf32>
    %413 = arith.mulf %412, %48 : vector<8x256xf32>
    %414 = arith.addf %413, %51 : vector<8x256xf32>
    %415 = vector.extract_strided_slice %414 {offsets = [0, 0], sizes = [8, 64], strides = [1, 1]} : vector<8x256xf32> to vector<8x64xf32>
    %416 = vector.extract_strided_slice %414 {offsets = [0, 64], sizes = [8, 64], strides = [1, 1]} : vector<8x256xf32> to vector<8x64xf32>
    %417 = vector.extract_strided_slice %414 {offsets = [0, 128], sizes = [8, 64], strides = [1, 1]} : vector<8x256xf32> to vector<8x64xf32>
    %418 = vector.extract_strided_slice %414 {offsets = [0, 192], sizes = [8, 64], strides = [1, 1]} : vector<8x256xf32> to vector<8x64xf32>
    %419 = arith.mulf %416, %401 : vector<8x64xf32>
    %420 = arith.mulf %415, %417 : vector<8x64xf32>
    %421 = arith.addf %419, %420 : vector<8x64xf32>
    %422 = math.tanh %421 : vector<8x64xf32>
    %423 = arith.mulf %418, %422 : vector<8x64xf32>
    %424 = vector.extract_strided_slice %423 {offsets = [0, 0], sizes = [8, 32], strides = [1, 1]} : vector<8x64xf32> to vector<8x32xf32>
    %c40_156 = arith.constant 40 : index
    %c0_157 = arith.constant 0 : index
    %425 = vector.load %arg19[%c40_156, %c0_157] : memref<64x64xf32, #tpu.memory_space<vmem>>, vector<8x32xf32>
    tpu.vector_store %arg19[%c40_156, %c0_157], %424 {strides = array<i32>} : memref<64x64xf32, #tpu.memory_space<vmem>>, vector<8x32xf32>,
    %426 = vector.extract_strided_slice %423 {offsets = [0, 32], sizes = [8, 32], strides = [1, 1]} : vector<8x64xf32> to vector<8x32xf32>
    %c16_158 = arith.constant 16 : index
    %c32_159 = arith.constant 32 : index
    %427 = vector.load %arg19[%c16_158, %c32_159] : memref<64x64xf32, #tpu.memory_space<vmem>>, vector<8x32xf32>
    tpu.vector_store %arg19[%c16_158, %c32_159], %426 {strides = array<i32>} : memref<64x64xf32, #tpu.memory_space<vmem>>, vector<8x32xf32>,
    %c48_160 = arith.constant 48 : index
    %c0_161 = arith.constant 0 : index
    %428 = vector.load %arg18[%c48_160, %c0_161] : memref<64x256xf32, #tpu.memory_space<vmem>>, vector<8x256xf32>
    %429 = arith.truncf %423 : vector<8x64xf32> to vector<8x64xbf16>
    %cst_162 = arith.constant dense<0.000000e+00> : vector<8x256xf32>
    %430 = tpu.matmul %429, %307, %cst_162 {dimension_numbers = #tpu.dot_dimension_numbers<[1], [0], [0], [1], [0, 0, 1, 1], [], []>} : vector<8x64xbf16>, vector<64x256xbf16>, vector<8x256xf32> -> vector<8x256xf32>
    %431 = arith.addf %428, %430 : vector<8x256xf32>
    %432 = math.tanh %431 : vector<8x256xf32>
    %433 = arith.mulf %432, %48 : vector<8x256xf32>
    %434 = arith.addf %433, %51 : vector<8x256xf32>
    %435 = vector.extract_strided_slice %434 {offsets = [0, 0], sizes = [8, 64], strides = [1, 1]} : vector<8x256xf32> to vector<8x64xf32>
    %436 = vector.extract_strided_slice %434 {offsets = [0, 64], sizes = [8, 64], strides = [1, 1]} : vector<8x256xf32> to vector<8x64xf32>
    %437 = vector.extract_strided_slice %434 {offsets = [0, 128], sizes = [8, 64], strides = [1, 1]} : vector<8x256xf32> to vector<8x64xf32>
    %438 = vector.extract_strided_slice %434 {offsets = [0, 192], sizes = [8, 64], strides = [1, 1]} : vector<8x256xf32> to vector<8x64xf32>
    %439 = arith.mulf %436, %421 : vector<8x64xf32>
    %440 = arith.mulf %435, %437 : vector<8x64xf32>
    %441 = arith.addf %439, %440 : vector<8x64xf32>
    %442 = math.tanh %441 : vector<8x64xf32>
    %443 = arith.mulf %438, %442 : vector<8x64xf32>
    %444 = vector.extract_strided_slice %443 {offsets = [0, 0], sizes = [8, 32], strides = [1, 1]} : vector<8x64xf32> to vector<8x32xf32>
    %c48_163 = arith.constant 48 : index
    %c0_164 = arith.constant 0 : index
    %445 = vector.load %arg19[%c48_163, %c0_164] : memref<64x64xf32, #tpu.memory_space<vmem>>, vector<8x32xf32>
    tpu.vector_store %arg19[%c48_163, %c0_164], %444 {strides = array<i32>} : memref<64x64xf32, #tpu.memory_space<vmem>>, vector<8x32xf32>,
    %446 = vector.extract_strided_slice %443 {offsets = [0, 32], sizes = [8, 32], strides = [1, 1]} : vector<8x64xf32> to vector<8x32xf32>
    %c8_165 = arith.constant 8 : index
    %c32_166 = arith.constant 32 : index
    %447 = vector.load %arg19[%c8_165, %c32_166] : memref<64x64xf32, #tpu.memory_space<vmem>>, vector<8x32xf32>
    tpu.vector_store %arg19[%c8_165, %c32_166], %446 {strides = array<i32>} : memref<64x64xf32, #tpu.memory_space<vmem>>, vector<8x32xf32>,
    %c56_167 = arith.constant 56 : index
    %c0_168 = arith.constant 0 : index
    %448 = vector.load %arg18[%c56_167, %c0_168] : memref<64x256xf32, #tpu.memory_space<vmem>>, vector<8x256xf32>
    %449 = arith.truncf %443 : vector<8x64xf32> to vector<8x64xbf16>
    %cst_169 = arith.constant dense<0.000000e+00> : vector<8x256xf32>
    %450 = tpu.matmul %449, %307, %cst_169 {dimension_numbers = #tpu.dot_dimension_numbers<[1], [0], [0], [1], [0, 0, 1, 1], [], []>} : vector<8x64xbf16>, vector<64x256xbf16>, vector<8x256xf32> -> vector<8x256xf32>
    %451 = arith.addf %448, %450 : vector<8x256xf32>
    %452 = math.tanh %451 : vector<8x256xf32>
    %453 = arith.mulf %452, %48 : vector<8x256xf32>
    %454 = arith.addf %453, %51 : vector<8x256xf32>
    %455 = vector.extract_strided_slice %454 {offsets = [0, 0], sizes = [8, 64], strides = [1, 1]} : vector<8x256xf32> to vector<8x64xf32>
    %456 = vector.extract_strided_slice %454 {offsets = [0, 64], sizes = [8, 64], strides = [1, 1]} : vector<8x256xf32> to vector<8x64xf32>
    %457 = vector.extract_strided_slice %454 {offsets = [0, 128], sizes = [8, 64], strides = [1, 1]} : vector<8x256xf32> to vector<8x64xf32>
    %458 = vector.extract_strided_slice %454 {offsets = [0, 192], sizes = [8, 64], strides = [1, 1]} : vector<8x256xf32> to vector<8x64xf32>
    %459 = arith.mulf %456, %441 : vector<8x64xf32>
    %460 = arith.mulf %455, %457 : vector<8x64xf32>
    %461 = arith.addf %459, %460 : vector<8x64xf32>
    %462 = math.tanh %461 : vector<8x64xf32>
    %463 = arith.mulf %458, %462 : vector<8x64xf32>
    %464 = vector.extract_strided_slice %463 {offsets = [0, 0], sizes = [8, 32], strides = [1, 1]} : vector<8x64xf32> to vector<8x32xf32>
    %c56_170 = arith.constant 56 : index
    %c0_171 = arith.constant 0 : index
    %465 = vector.load %arg19[%c56_170, %c0_171] : memref<64x64xf32, #tpu.memory_space<vmem>>, vector<8x32xf32>
    tpu.vector_store %arg19[%c56_170, %c0_171], %464 {strides = array<i32>} : memref<64x64xf32, #tpu.memory_space<vmem>>, vector<8x32xf32>,
    %466 = vector.extract_strided_slice %463 {offsets = [0, 32], sizes = [8, 32], strides = [1, 1]} : vector<8x64xf32> to vector<8x32xf32>
    %c0_172 = arith.constant 0 : index
    %c32_173 = arith.constant 32 : index
    %467 = vector.load %arg19[%c0_172, %c32_173] : memref<64x64xf32, #tpu.memory_space<vmem>>, vector<8x32xf32>
    tpu.vector_store %arg19[%c0_172, %c32_173], %466 {strides = array<i32>} : memref<64x64xf32, #tpu.memory_space<vmem>>, vector<8x32xf32>,
    %c0_174 = arith.constant 0 : index
    %c0_175 = arith.constant 0 : index
    %468 = vector.load %arg19[%c0_174, %c0_175] : memref<64x64xf32, #tpu.memory_space<vmem>>, vector<64x64xf32>
    %469 = vector.shape_cast %468 : vector<64x64xf32> to vector<8x8x64xf32>
    %c0_176 = arith.constant 0 : index
    %c0_177 = arith.constant 0 : index
    %470 = vector.load %arg11[%c0_176, %c0_177] : memref<1x64xf32, #tpu.memory_space<vmem>>, vector<1x64xf32>
    %471 = vector.shape_cast %470 : vector<1x64xf32> to vector<1x1x64xf32>
    %472 = vector.broadcast %471 : vector<1x1x64xf32> to vector<8x8x64xf32>
    %473 = arith.mulf %469, %472 : vector<8x8x64xf32>
    %cst_178 = arith.constant dense<0.000000e+00> : vector<8x8xf32>
    %474 = vector.multi_reduction <add>, %473, %cst_178 [2] : vector<8x8x64xf32> to vector<8x8xf32>
    %475 = vector.shape_cast %474 : vector<8x8xf32> to vector<8x8x1xf32>
    %c0_179 = arith.constant 0 : index
    %c0_180 = arith.constant 0 : index
    %476 = vector.load %arg12[%c0_179, %c0_180] : memref<1x1xf32, #tpu.memory_space<vmem>>, vector<1x1xf32>
    %477 = vector.shape_cast %476 : vector<1x1xf32> to vector<1x1x1xf32>
    %478 = vector.broadcast %477 : vector<1x1x1xf32> to vector<8x8x1xf32>
    %479 = arith.addf %475, %478 : vector<8x8x1xf32>
    %480 = math.tanh %479 : vector<8x8x1xf32>
    %cst_181 = arith.constant dense<0xFF800000> : vector<8x1xf32>
    %481 = vector.multi_reduction <maximumf>, %480, %cst_181 [0] : vector<8x8x1xf32> to vector<8x1xf32>
    %482 = vector.shape_cast %481 : vector<8x1xf32> to vector<1x8x1xf32>
    %483 = vector.broadcast %482 : vector<1x8x1xf32> to vector<8x8x1xf32>
    %484 = arith.subf %480, %483 : vector<8x8x1xf32>
    %485 = math.exp %484 : vector<8x8x1xf32>
    %cst_182 = arith.constant dense<0.000000e+00> : vector<8x1xf32>
    %486 = vector.multi_reduction <add>, %485, %cst_182 [0] : vector<8x8x1xf32> to vector<8x1xf32>
    %487 = vector.shape_cast %486 : vector<8x1xf32> to vector<1x8x1xf32>
    %488 = tpu.reciprocal %487 {approx = true} : vector<1x8x1xf32> -> vector<1x8x1xf32>
    %489 = vector.broadcast %488 : vector<1x8x1xf32> to vector<8x8x1xf32>
    %490 = arith.mulf %485, %489 : vector<8x8x1xf32>
    %491 = vector.broadcast %490 : vector<8x8x1xf32> to vector<8x8x64xf32>
    %492 = arith.mulf %491, %469 : vector<8x8x64xf32>
    %cst_183 = arith.constant dense<0.000000e+00> : vector<8x64xf32>
    %493 = vector.multi_reduction <add>, %492, %cst_183 [0] : vector<8x8x64xf32> to vector<8x64xf32>
    %494 = arith.truncf %493 : vector<8x64xf32> to vector<8x64xbf16>
    %c0_184 = arith.constant 0 : index
    %c0_185 = arith.constant 0 : index
    %495 = vector.load %arg13[%c0_184, %c0_185] : memref<64x32xbf16, #tpu.memory_space<vmem>>, vector<64x32xbf16>
    %cst_186 = arith.constant dense<0.000000e+00> : vector<8x32xf32>
    %496 = tpu.matmul %494, %495, %cst_186 {dimension_numbers = #tpu.dot_dimension_numbers<[1], [0], [0], [1], [0, 0, 1, 1], [], []>} : vector<8x64xbf16>, vector<64x32xbf16>, vector<8x32xf32> -> vector<8x32xf32>
    %c0_187 = arith.constant 0 : index
    %c0_188 = arith.constant 0 : index
    %497 = vector.load %arg14[%c0_187, %c0_188] : memref<1x32xf32, #tpu.memory_space<vmem>>, vector<1x32xf32>
    %498 = vector.broadcast %497 : vector<1x32xf32> to vector<8x32xf32>
    %499 = arith.addf %496, %498 : vector<8x32xf32>
    %cst_189 = arith.constant 0.000000e+00 : f32
    %500 = vector.broadcast %cst_189 : f32 to vector<8x32xf32>
    %501 = arith.maximumf %499, %500 : vector<8x32xf32>
    %502 = arith.truncf %501 : vector<8x32xf32> to vector<8x32xbf16>
    %c0_190 = arith.constant 0 : index
    %c0_191 = arith.constant 0 : index
    %503 = vector.load %arg15[%c0_190, %c0_191] : memref<32x4xbf16, #tpu.memory_space<vmem>>, vector<32x4xbf16>
    %cst_192 = arith.constant dense<0.000000e+00> : vector<8x4xf32>
    %504 = tpu.matmul %502, %503, %cst_192 {dimension_numbers = #tpu.dot_dimension_numbers<[1], [0], [0], [1], [0, 0, 1, 1], [], []>} : vector<8x32xbf16>, vector<32x4xbf16>, vector<8x4xf32> -> vector<8x4xf32>
    %c0_193 = arith.constant 0 : index
    %c0_194 = arith.constant 0 : index
    %505 = vector.load %arg16[%c0_193, %c0_194] : memref<1x4xf32, #tpu.memory_space<vmem>>, vector<1x4xf32>
    %506 = vector.broadcast %505 : vector<1x4xf32> to vector<8x4xf32>
    %507 = arith.addf %504, %506 : vector<8x4xf32>
    %c0_195 = arith.constant 0 : index
    %c0_196 = arith.constant 0 : index
    %508 = vector.load %arg17[%c0_195, %c0_196] : memref<8x4xf32, #tpu.memory_space<vmem>>, vector<8x4xf32>
    tpu.vector_store %arg17[%c0_195, %c0_196], %507 {strides = array<i32>} : memref<8x4xf32, #tpu.memory_space<vmem>>, vector<8x4xf32>,
    return
  }
}

</mosaic_0001>

<llo_original>
// kernel: _lambda_.1
$region0: #{_lambda_.1}
  #allocation0 [shape = 'u32[]', space=smem, size = 0x4, offset = 0x4, fixed_abs, tag = 'smem constant byte address 0x4 - core index']
  #allocation1 [shape = 'u32[72,128]{1,0:T(1,128)}', space=vmem, size = 0x9000, scoped, tag = 'internal scratch']
  #allocation2 [shape = 'f32[64,256]{1,0:T(8,128)}', space=vmem, size = 0x10000, scoped, tag = 'scratch operand']
  #allocation3 [shape = 'f32[64,64]{1,0:T(8,128)}', space=vmem, size = 0x8000, scoped, tag = 'scratch operand']
  #allocation4 [shape = 'f32[1,1]{1,0:T(1,128)S(1)}', space=vmem, size = 0x200, scoped, tag = 'scoped memory for _lambda_.1']
  %s0 = inlined_call_operand.vmem [shape: f32[64,16], index: 0, kind: input, shape index: {}]
  %s1 = inlined_call_operand.hbm [shape: bf16[16,32], index: 1, kind: input, shape index: {}]
  %s2 = inlined_call_operand.hbm [shape: bf16[16,32], index: 2, kind: input, shape index: {}]
  %s3 = inlined_call_operand.hbm [shape: bf16[16,32], index: 3, kind: input, shape index: {}]
  %s4 = inlined_call_operand.hbm [shape: f32[1,32], index: 4, kind: input, shape index: {}]
  %s5 = inlined_call_operand.vmem [shape: bf16[32,256], index: 5, kind: input, shape index: {}]
  %s6 = inlined_call_operand.vmem [shape: f32[1,256], index: 6, kind: input, shape index: {}]
  %s7 = inlined_call_operand.vmem [shape: bf16[64,256], index: 7, kind: input, shape index: {}]
  %s8 = inlined_call_operand.vmem [shape: bf16[64,256], index: 8, kind: input, shape index: {}]
  %s9 = inlined_call_operand.hbm [shape: f32[1,256], index: 9, kind: input, shape index: {}]
  %s10 = inlined_call_operand.hbm [shape: bf16[64,256], index: 10, kind: input, shape index: {}]
  %s11 = inlined_call_operand.hbm [shape: f32[1,64], index: 11, kind: input, shape index: {}]
  %s12 = inlined_call_operand.<no memory space> [shape: f32[1,1], index: 12, kind: input, shape index: {}]
  %s13 = inlined_call_operand.vmem [shape: bf16[64,32], index: 13, kind: input, shape index: {}]
  %s14 = inlined_call_operand.hbm [shape: f32[1,32], index: 14, kind: input, shape index: {}]
  %s15 = inlined_call_operand.vmem [shape: bf16[32,4], index: 15, kind: input, shape index: {}]
  %s16 = inlined_call_operand.hbm [shape: f32[1,4], index: 16, kind: input, shape index: {}]
  %s17 = inlined_call_operand.vmem [shape: f32[8,4], index: 17, kind: output, shape index: {}]
  %s18 = sld [smem:[#allocation0]]
  $region114: #{_lambda_.1} parent=0
    _
  %s20 = ssub.s32 1, %s18
  %s21 = scalar_select 0, %s20, %s18
  %v22 = vstv %s12
  %23 = vst [vmem:[#allocation4] sm:$0x1] %v22
  $region1: #{_lambda_.1} parent=0
    #allocation5 [shape = 'u8[4096]{0}', space=vmem, size = 0x1000, scoped, tag = 'input window, operand 1, single buffered']
    #allocation6 [shape = 's32[1]{0}', space=sflag, size = 0x4, scoped, tag = 'scoped memory for _lambda_.1']
    #allocation7 [shape = 'u8[4096]{0}', space=vmem, size = 0x1000, scoped, tag = 'input window, operand 2, single buffered']
    #allocation8 [shape = 's32[1]{0}', space=sflag, size = 0x4, scoped, tag = 'scoped memory for _lambda_.1']
    #allocation9 [shape = 'u8[4096]{0}', space=vmem, size = 0x1000, scoped, tag = 'input window, operand 3, single buffered']
    #allocation10 [shape = 'u8[512]{0}', space=vmem, size = 0x400, scoped, tag = 'input window, operand 4, single buffered']
    #allocation11 [shape = 's32[1]{0}', space=sflag, size = 0x4, scoped, tag = 'scoped memory for _lambda_.1']
    #allocation12 [shape = 'u8[1024]{0}', space=vmem, size = 0x400, scoped, tag = 'input window, operand 9, single buffered']
    #allocation13 [shape = 'u8[32768]{0}', space=vmem, size = 0x8000, scoped, tag = 'input window, operand 10, single buffered']
    #allocation14 [shape = 's32[1]{0}', space=sflag, size = 0x4, scoped, tag = 'scoped memory for _lambda_.1']
    #allocation15 [shape = 'u8[512]{0}', space=vmem, size = 0x400, scoped, tag = 'input window, operand 11, single buffered']
    #allocation16 [shape = 'u8[512]{0}', space=vmem, size = 0x400, scoped, tag = 'input window, operand 14, single buffered']
    #allocation17 [shape = 's32[1]{0}', space=sflag, size = 0x4, scoped, tag = 'scoped memory for _lambda_.1']
    #allocation18 [shape = 'u8[512]{0}', space=vmem, size = 0x400, scoped, tag = 'input window, operand 16, single buffered']
    %24 = vsyncpa [#allocation6], 0
    %25 = vsyncpa [#allocation8], 0
    %26 = vsyncpa [#allocation11], 0
    %27 = vsyncpa [#allocation14], 0
    %28 = vsyncpa [#allocation17], 0
    // Predicated region
    $region2: #{_lambda_.1} parent=1 // pred_check
      _
    $region3: #{_lambda_.1} parent=1 // pred_check_branch
      %30 = sbr.rel (0) target = $region5
    $region4: #{_lambda_.1} parent=1 // pred_region
      _
    $region5: #{_lambda_.1} parent=1 // pred_fallthru
      _
    // Predicated region
    $region6: #{_lambda_.1} parent=1 // pred_check
      _
    $region7: #{_lambda_.1} parent=1 // pred_check_branch
      %32 = sbr.rel (0) target = $region9
    $region8: #{_lambda_.1} parent=1 // pred_region
      %34 = vsyncadd [#allocation6], 0
      %s35 = sshll.u32 %s1, 4
      %s36 = int_to_ptr.hbm [resolvable:$true] %s35
      %s37 = sshll.u32 [#allocation5], 4
      %s38 = int_to_ptr.vmem [resolvable:$true] %s37
      %43 = dma.hbm_to_vmem [thread:$0]  %s36, 128, %s38, [#allocation6], 64, 64, 4
    $region9: #{_lambda_.1} parent=1 // pred_fallthru
      _
    // Predicated region
    $region10: #{_lambda_.1} parent=1 // pred_check
      _
    $region11: #{_lambda_.1} parent=1 // pred_check_branch
      %45 = sbr.rel (0) target = $region13
    $region12: #{_lambda_.1} parent=1 // pred_region
      %47 = vsyncadd [#allocation8], 0
      %s48 = sshll.u32 %s2, 4
      %s49 = int_to_ptr.hbm [resolvable:$true] %s48
      %s50 = sshll.u32 [#allocation7], 4
      %s51 = int_to_ptr.vmem [resolvable:$true] %s50
      %56 = dma.hbm_to_vmem [thread:$0]  %s49, 128, %s51, [#allocation8], 64, 64, 4
    $region13: #{_lambda_.1} parent=1 // pred_fallthru
      _
    // Predicated region
    $region14: #{_lambda_.1} parent=1 // pred_check
      _
    $region15: #{_lambda_.1} parent=1 // pred_check_branch
      %58 = sbr.rel (0) target = $region17
    $region16: #{_lambda_.1} parent=1 // pred_region
      %60 = vsyncadd [#allocation8], 0
      %s61 = sshll.u32 %s3, 4
      %s62 = int_to_ptr.hbm [resolvable:$true] %s61
      %s63 = sshll.u32 [#allocation9], 4
      %s64 = int_to_ptr.vmem [resolvable:$true] %s63
      %69 = dma.hbm_to_vmem [thread:$0]  %s62, 128, %s64, [#allocation8], 64, 64, 4
    $region17: #{_lambda_.1} parent=1 // pred_fallthru
      _
    // Predicated region
    $region18: #{_lambda_.1} parent=1 // pred_check
      _
    $region19: #{_lambda_.1} parent=1 // pred_check_branch
      %71 = sbr.rel (0) target = $region21
    $region20: #{_lambda_.1} parent=1 // pred_region
      %73 = vsyncadd [#allocation11], 0
      %s75 = sshll.u32 %s4, 4
      %s76 = int_to_ptr.hbm [resolvable:$true] %s75
      %s77 = sshll.u32 [#allocation10], 4
      %s78 = int_to_ptr.vmem [resolvable:$true] %s77
      %80 = dma.hbm_to_vmem [thread:$0]  %s76, 16, %s78, [#allocation11]
    $region21: #{_lambda_.1} parent=1 // pred_fallthru
      _
    // Predicated region
    $region22: #{_lambda_.1} parent=1 // pred_check
      _
    $region23: #{_lambda_.1} parent=1 // pred_check_branch
      %82 = sbr.rel (0) target = $region25
    $region24: #{_lambda_.1} parent=1 // pred_region
      _
    $region25: #{_lambda_.1} parent=1 // pred_fallthru
      _
    // Predicated region
    $region26: #{_lambda_.1} parent=1 // pred_check
      _
    $region27: #{_lambda_.1} parent=1 // pred_check_branch
      %84 = sbr.rel (0) target = $region29
    $region28: #{_lambda_.1} parent=1 // pred_region
      _
    $region29: #{_lambda_.1} parent=1 // pred_fallthru
      _
    // Predicated region
    $region30: #{_lambda_.1} parent=1 // pred_check
      _
    $region31: #{_lambda_.1} parent=1 // pred_check_branch
      %86 = sbr.rel (0) target = $region33
    $region32: #{_lambda_.1} parent=1 // pred_region
      _
    $region33: #{_lambda_.1} parent=1 // pred_fallthru
      _
    // Predicated region
    $region34: #{_lambda_.1} parent=1 // pred_check
      _
    $region35: #{_lambda_.1} parent=1 // pred_check_branch
      %88 = sbr.rel (0) target = $region37
    $region36: #{_lambda_.1} parent=1 // pred_region
      _
    $region37: #{_lambda_.1} parent=1 // pred_fallthru
      _
    // Predicated region
    $region38: #{_lambda_.1} parent=1 // pred_check
      _
    $region39: #{_lambda_.1} parent=1 // pred_check_branch
      %90 = sbr.rel (0) target = $region41
    $region40: #{_lambda_.1} parent=1 // pred_region
      %92 = vsyncadd [#allocation11], 0
      %s94 = sshll.u32 %s9, 4
      %s95 = int_to_ptr.hbm [resolvable:$true] %s94
      %s96 = sshll.u32 [#allocation12], 4
      %s97 = int_to_ptr.vmem [resolvable:$true] %s96
      %99 = dma.hbm_to_vmem [thread:$0]  %s95, 32, %s97, [#allocation11]
    $region41: #{_lambda_.1} parent=1 // pred_fallthru
      _
    // Predicated region
    $region42: #{_lambda_.1} parent=1 // pred_check
      _
    $region43: #{_lambda_.1} parent=1 // pred_check_branch
      %101 = sbr.rel (0) target = $region45
    $region44: #{_lambda_.1} parent=1 // pred_region
      %103 = vsyncadd [#allocation14], 0
      %s104 = sshll.u32 %s10, 4
      %s105 = int_to_ptr.hbm [resolvable:$true] %s104
      %s106 = sshll.u32 [#allocation13], 4
      %s107 = int_to_ptr.vmem [resolvable:$true] %s106
      %112 = dma.hbm_to_vmem [thread:$0]  %s105, 1024, %s107, [#allocation14], 128, 128, 8
    $region45: #{_lambda_.1} parent=1 // pred_fallthru
      _
    // Predicated region
    $region46: #{_lambda_.1} parent=1 // pred_check
      _
    $region47: #{_lambda_.1} parent=1 // pred_check_branch
      %114 = sbr.rel (0) target = $region49
    $region48: #{_lambda_.1} parent=1 // pred_region
      %116 = vsyncadd [#allocation14], 0
      %s118 = sshll.u32 %s11, 4
      %s119 = int_to_ptr.hbm [resolvable:$true] %s118
      %s120 = sshll.u32 [#allocation15], 4
      %s121 = int_to_ptr.vmem [resolvable:$true] %s120
      %123 = dma.hbm_to_vmem [thread:$0]  %s119, 16, %s121, [#allocation14]
    $region49: #{_lambda_.1} parent=1 // pred_fallthru
      _
    // Predicated region
    $region50: #{_lambda_.1} parent=1 // pred_check
      _
    $region51: #{_lambda_.1} parent=1 // pred_check_branch
      %125 = sbr.rel (0) target = $region53
    $region52: #{_lambda_.1} parent=1 // pred_region
      _
    $region53: #{_lambda_.1} parent=1 // pred_fallthru
      _
    // Predicated region
    $region54: #{_lambda_.1} parent=1 // pred_check
      _
    $region55: #{_lambda_.1} parent=1 // pred_check_branch
      %127 = sbr.rel (0) target = $region57
    $region56: #{_lambda_.1} parent=1 // pred_region
      _
    $region57: #{_lambda_.1} parent=1 // pred_fallthru
      _
    // Predicated region
    $region58: #{_lambda_.1} parent=1 // pred_check
      _
    $region59: #{_lambda_.1} parent=1 // pred_check_branch
      %129 = sbr.rel (0) target = $region61
    $region60: #{_lambda_.1} parent=1 // pred_region
      %131 = vsyncadd [#allocation17], 0
      %s133 = sshll.u32 %s14, 4
      %s134 = int_to_ptr.hbm [resolvable:$true] %s133
      %s135 = sshll.u32 [#allocation16], 4
      %s136 = int_to_ptr.vmem [resolvable:$true] %s135
      %138 = dma.hbm_to_vmem [thread:$0]  %s134, 16, %s136, [#allocation17]
    $region61: #{_lambda_.1} parent=1 // pred_fallthru
      _
    // Predicated region
    $region62: #{_lambda_.1} parent=1 // pred_check
      _
    $region63: #{_lambda_.1} parent=1 // pred_check_branch
      %140 = sbr.rel (0) target = $region65
    $region64: #{_lambda_.1} parent=1 // pred_region
      _
    $region65: #{_lambda_.1} parent=1 // pred_fallthru
      _
    // Predicated region
    $region66: #{_lambda_.1} parent=1 // pred_check
      _
    $region67: #{_lambda_.1} parent=1 // pred_check_branch
      %142 = sbr.rel (0) target = $region69
    $region68: #{_lambda_.1} parent=1 // pred_region
      %144 = vsyncadd [#allocation17], 0
      %s146 = sshll.u32 %s16, 4
      %s147 = int_to_ptr.hbm [resolvable:$true] %s146
      %s148 = sshll.u32 [#allocation18], 4
      %s149 = int_to_ptr.vmem [resolvable:$true] %s148
      %151 = dma.hbm_to_vmem [thread:$0]  %s147, 16, %s149, [#allocation17]
    $region69: #{_lambda_.1} parent=1 // pred_fallthru
      _
    // Predicated region
    $region70: #{_lambda_.1} parent=1 // pred_check
      _
    $region71: #{_lambda_.1} parent=1 // pred_check_branch
      %153 = sbr.rel (0) target = $region73
    $region72: #{_lambda_.1} parent=1 // pred_region
      %155 = dma.done [#allocation6], 128
    $region73: #{_lambda_.1} parent=1 // pred_fallthru
      _
    // Predicated region
    $region74: #{_lambda_.1} parent=1 // pred_check
      _
    $region75: #{_lambda_.1} parent=1 // pred_check_branch
      %157 = sbr.rel (0) target = $region77
    $region76: #{_lambda_.1} parent=1 // pred_region
      %159 = dma.done [#allocation8], 128
    $region77: #{_lambda_.1} parent=1 // pred_fallthru
      _
    // Predicated region
    $region78: #{_lambda_.1} parent=1 // pred_check
      _
    $region79: #{_lambda_.1} parent=1 // pred_check_branch
      %161 = sbr.rel (0) target = $region81
    $region80: #{_lambda_.1} parent=1 // pred_region
      %163 = dma.done [#allocation8], 128
    $region81: #{_lambda_.1} parent=1 // pred_fallthru
      _
    // Predicated region
    $region82: #{_lambda_.1} parent=1 // pred_check
      _
    $region83: #{_lambda_.1} parent=1 // pred_check_branch
      %165 = sbr.rel (0) target = $region85
    $region84: #{_lambda_.1} parent=1 // pred_region
      %167 = dma.done [#allocation11], 16
    $region85: #{_lambda_.1} parent=1 // pred_fallthru
      _
    // Predicated region
    $region86: #{_lambda_.1} parent=1 // pred_check
      _
    $region87: #{_lambda_.1} parent=1 // pred_check_branch
      %169 = sbr.rel (0) target = $region89
    $region88: #{_lambda_.1} parent=1 // pred_region
      %171 = dma.done [#allocation11], 32
    $region89: #{_lambda_.1} parent=1 // pred_fallthru
      _
    // Predicated region
    $region90: #{_lambda_.1} parent=1 // pred_check
      _
    $region91: #{_lambda_.1} parent=1 // pred_check_branch
      %173 = sbr.rel (0) target = $region93
    $region92: #{_lambda_.1} parent=1 // pred_region
      %175 = dma.done [#allocation14], 1024
    $region93: #{_lambda_.1} parent=1 // pred_fallthru
      _
    // Predicated region
    $region94: #{_lambda_.1} parent=1 // pred_check
      _
    $region95: #{_lambda_.1} parent=1 // pred_check_branch
      %177 = sbr.rel (0) target = $region97
    $region96: #{_lambda_.1} parent=1 // pred_region
      %179 = dma.done [#allocation14], 16
    $region97: #{_lambda_.1} parent=1 // pred_fallthru
      _
    // Predicated region
    $region98: #{_lambda_.1} parent=1 // pred_check
      _
    $region99: #{_lambda_.1} parent=1 // pred_check_branch
      %181 = sbr.rel (0) target = $region101
    $region100: #{_lambda_.1} parent=1 // pred_region
      %183 = dma.done [#allocation17], 16
    $region101: #{_lambda_.1} parent=1 // pred_fallthru
      _
    // Predicated region
    $region102: #{_lambda_.1} parent=1 // pred_check
      _
    $region103: #{_lambda_.1} parent=1 // pred_check_branch
      %185 = sbr.rel (0) target = $region105
    $region104: #{_lambda_.1} parent=1 // pred_region
      %187 = dma.done [#allocation17], 16
    $region105: #{_lambda_.1} parent=1 // pred_fallthru
      _
    %v189 = vld [vmem:[%s0] sm:$0xff]
    %v190 = vld [vmem:[%s0 + $0x8] sm:$0xff]
    %v191 = vld [vmem:[%s0 + $0x10] sm:$0xff]
    %v192 = vld [vmem:[%s0 + $0x18] sm:$0xff]
    %v193 = vld [vmem:[%s0 + $0x20] sm:$0xff]
    %v194 = vld [vmem:[%s0 + $0x28] sm:$0xff]
    %v195 = vld [vmem:[%s0 + $0x30] sm:$0xff]
    %v196 = vld [vmem:[%s0 + $0x38] sm:$0xff]
    %v197 = vpack.c.bf16 %v190, %v189
    %v198 = vpack.c.bf16 %v192, %v191
    %v199 = vpack.c.bf16 %v194, %v193
    %v200 = vpack.c.bf16 %v196, %v195
    %v201 = vld [vmem:[#allocation7] sm:$0xf]
    %v202 = vld [vmem:[#allocation7 + $0x4] sm:$0xf]
    %v203 = vpack.c.bf16 %v195, %v195
    %v204 = vld [vmem:[#allocation5] sm:$0xf]
    %v205 = vld [vmem:[#allocation5 + $0x4] sm:$0xf]
    %v208 = vunpack.c.l.b16 %v204
    %v209 = vunpack.c.l.b16 %v205
    %v210 = vpack.c.b16 %v209, %v208
    %vm212 = vcmask 130048
    %v214 = vsel %vm212, %v197, 0
    %v217 = vsel %vm212, %v198, 0
    %v220 = vsel %vm212, %v199, 0
    %v223 = vsel %vm212, %v203, 0
    %225 = vmatpush.bf16.msra.mxu0 0
    %226 = vmatpush.bf16.msra.mxu0 0
    %227 = vmatpush.bf16.msra.mxu0 0
    %228 = vmatpush.bf16.msra.mxu0 0
    %229 = vmatpush.bf16.msra.mxu0 0
    %230 = vmatpush.bf16.msra.mxu0 0
    %231 = vmatpush.bf16.msra.mxu0 0
    %232 = vmatpush.bf16.msra.mxu0 %v210
    %233 = vmatmul.bf16.gmra.mxu0 %v214
    %v234 = vpop.f32.mrf.mxu0
    %v235 = vadd.f32 0.0, %v234
    %v236 = vpop.f32.mrf.mxu0
    %v237 = vadd.f32 0.0, %v236
    %238 = vmatmul.bf16.gmra.mxu0 %v217
    %v239 = vpop.f32.mrf.mxu0
    %v240 = vadd.f32 0.0, %v239
    %v241 = vpop.f32.mrf.mxu0
    %v242 = vadd.f32 0.0, %v241
    %243 = vmatmul.bf16.gmra.mxu0 %v220
    %v244 = vpop.f32.mrf.mxu0
    %v245 = vadd.f32 0.0, %v244
    %v246 = vpop.f32.mrf.mxu0
    %v247 = vadd.f32 0.0, %v246
    %248 = vmatmul.bf16.gmra.mxu0 %v223
    %v249 = vpop.f32.mrf.mxu0
    %v250 = vadd.f32 0.0, %v249
    %v251 = vpop.f32.mrf.mxu0
    %252 = vdwg.mxu0
    %v253 = vpack.c.bf16 %v191, %v190
    %v254 = vpack.c.bf16 %v193, %v192
    %v255 = vpack.c.bf16 %v195, %v194
    %v256 = vpack.c.bf16 %v196, %v196
    %v257 = vld [vmem:[#allocation9] sm:$0xf]
    %v258 = vld [vmem:[#allocation9 + $0x4] sm:$0xf]
    %v261 = vunpack.c.l.b16 %v257
    %v262 = vunpack.c.l.b16 %v258
    %v263 = vpack.c.b16 %v262, %v261
    %v266 = vsel %vm212, %v253, 0
    %v269 = vsel %vm212, %v254, 0
    %v272 = vsel %vm212, %v255, 0
    %v275 = vsel %vm212, %v256, 0
    %277 = vmatpush.bf16.msra.mxu0 0
    %278 = vmatpush.bf16.msra.mxu0 0
    %279 = vmatpush.bf16.msra.mxu0 0
    %280 = vmatpush.bf16.msra.mxu0 0
    %281 = vmatpush.bf16.msra.mxu0 0
    %282 = vmatpush.bf16.msra.mxu0 0
    %283 = vmatpush.bf16.msra.mxu0 0
    %284 = vmatpush.bf16.msra.mxu0 %v263
    %285 = vmatmul.bf16.gmra.mxu0 %v266
    %v286 = vpop.f32.mrf.mxu0
    %v287 = vadd.f32 0.0, %v286
    %v288 = vpop.f32.mrf.mxu0
    %v289 = vadd.f32 0.0, %v288
    %290 = vmatmul.bf16.gmra.mxu0 %v269
    %v291 = vpop.f32.mrf.mxu0
    %v292 = vadd.f32 0.0, %v291
    %v293 = vpop.f32.mrf.mxu0
    %v294 = vadd.f32 0.0, %v293
    %295 = vmatmul.bf16.gmra.mxu0 %v272
    %v296 = vpop.f32.mrf.mxu0
    %v297 = vadd.f32 0.0, %v296
    %v298 = vpop.f32.mrf.mxu0
    %v299 = vadd.f32 0.0, %v298
    %300 = vmatmul.bf16.gmra.mxu0 %v275
    %v301 = vpop.f32.mrf.mxu0
    %v302 = vadd.f32 0.0, %v301
    %v303 = vpop.f32.mrf.mxu0
    %304 = vdwg.mxu0
    %v307 = vunpack.c.l.b16 %v201
    %v308 = vunpack.c.l.b16 %v202
    %v309 = vpack.c.b16 %v308, %v307
    %v312 = vsel %vm212, %v200, 0
    %314 = vmatpush.bf16.msra.mxu0 0
    %315 = vmatpush.bf16.msra.mxu0 0
    %316 = vmatpush.bf16.msra.mxu0 0
    %317 = vmatpush.bf16.msra.mxu0 0
    %318 = vmatpush.bf16.msra.mxu0 0
    %319 = vmatpush.bf16.msra.mxu0 0
    %320 = vmatpush.bf16.msra.mxu0 0
    %321 = vmatpush.bf16.msra.mxu0 %v309
    %322 = vmatmul.bf16.gmra.mxu0 %v214
    %v323 = vpop.f32.mrf.mxu0
    %v324 = vadd.f32 0.0, %v323
    %v325 = vpop.f32.mrf.mxu0
    %v326 = vadd.f32 %v235, %v325
    %327 = vmatmul.bf16.gmra.mxu0 %v217
    %v328 = vpop.f32.mrf.mxu0
    %v329 = vadd.f32 %v237, %v328
    %v330 = vpop.f32.mrf.mxu0
    %v331 = vadd.f32 %v240, %v330
    %332 = vmatmul.bf16.gmra.mxu0 %v220
    %v333 = vpop.f32.mrf.mxu0
    %v334 = vadd.f32 %v242, %v333
    %v335 = vpop.f32.mrf.mxu0
    %v336 = vadd.f32 %v245, %v335
    %337 = vmatmul.bf16.gmra.mxu0 %v312
    %v338 = vpop.f32.mrf.mxu0
    %v339 = vadd.f32 %v247, %v338
    %v340 = vpop.f32.mrf.mxu0
    %v341 = vadd.f32 %v250, %v340
    %342 = vdwg.mxu0
    %v343 = vadd.f32 %v324, %v287
    %v344 = vadd.f32 %v326, %v289
    %v345 = vadd.f32 %v329, %v292
    %v346 = vadd.f32 %v331, %v294
    %v347 = vadd.f32 %v334, %v297
    %v348 = vadd.f32 %v336, %v299
    %v349 = vadd.f32 %v339, %v302
    %v350 = vadd.f32 %v341, 0.0
    %v351 = vld [vmem:[#allocation10] sm:$0x1]
    %v353 = vperm.slane %v351, 0
    %v355 = vadd.f32 %v343, %v353
    %v356 = vadd.f32 %v344, %v353
    %v357 = vadd.f32 %v345, %v353
    %v358 = vadd.f32 %v346, %v353
    %v359 = vadd.f32 %v347, %v353
    %v360 = vadd.f32 %v348, %v353
    %v361 = vadd.f32 %v349, %v353
    %v362 = vadd.f32 %v350, %v353
    %v363 = vmax.f32 %v355, 0.0
    %v364 = vmax.f32 %v356, 0.0
    %v365 = vmax.f32 %v357, 0.0
    %v366 = vmax.f32 %v358, 0.0
    %v367 = vmax.f32 %v359, 0.0
    %v368 = vmax.f32 %v360, 0.0
    %v369 = vmax.f32 %v361, 0.0
    %v370 = vmax.f32 %v362, 0.0
    %v371 = vlaneseq
    %v372 = vand.u32 %v371, 127
    %v373 = vadd.s32 %v372, 128
    %vm374 = vcmp.ge.s32.totalorder %v372, 128
    %vm375 = vcmp.ge.s32.totalorder %v373, 128
    %vm376 = vcmp.lt.s32.totalorder %v372, 192
    %vm377 = vcmp.lt.s32.totalorder %v373, 192
    %vm378 = vmand %vm374, %vm376
    %vm379 = vmand %vm375, %vm377
    %vm380 = vcmp.lt.s32.totalorder %v372, 0
    %v381 = vsub.s32 0, %v372
    %v382 = vsel %vm380, %v381, %v372
    %v383 = vshrl.u32 %v382, 6
    %v384 = vand.u32 %v382, 63
    %v385 = vsub.s32 0, %v384
    %v386 = vsel %vm380, %v385, %v384
    %vm387 = vcmp.lt.s32.totalorder %v373, 0
    %v388 = vsub.s32 0, %v373
    %v389 = vsel %vm387, %v388, %v373
    %v390 = vshrl.u32 %v389, 6
    %v391 = vand.u32 %v389, 63
    %v392 = vsub.s32 0, %v391
    %v393 = vsel %vm387, %v392, %v391
    %vm394 = vcmp.ne.s32.totalorder %v386, 0
    %vm395 = vcmp.ne.s32.totalorder %v393, 0
    %vm396 = vcmp.lt.s32.totalorder %v386, 0
    %vm397 = vcmp.lt.s32.totalorder %v393, 0
    %vm398 = vmand %vm396, %vm394
    %vm399 = vmand %vm397, %vm395
    %v400 = vadd.s32 %v386, 64
    %v401 = vadd.s32 %v393, 64
    %v402 = vsel %vm398, %v400, %v386
    %v403 = vsel %vm399, %v401, %v393
    %vm404 = vcmp.lt.s32.totalorder %v402, 32
    %vm405 = vcmp.lt.s32.totalorder %v403, 32
    %v406 = vsel %vm378, 1.0, 0.5
    %v407 = vsel %vm379, 1.0, 0.5
    %v408 = vsel %vm378, 0.0, 0.5
    %v409 = vsel %vm379, 0.0, 0.5
    %v410 = vpack.c.bf16 %v364, %v363
    %v411 = vpack.c.bf16 %v366, %v365
    %v412 = vpack.c.bf16 %v368, %v367
    %v413 = vpack.c.bf16 %v370, %v369
    %v414 = vld [vmem:[%s5] sm:$0xff]
    %v415 = vld [vmem:[%s5 + $0x8] sm:$0xff]
    %v416 = vld [vmem:[%s5 + $0x10] sm:$0xff]
    %v417 = vld [vmem:[%s5 + $0x18] sm:$0xff]
    %v422 = vunpack.c.l.b16 %v414
    %v423 = vunpack.c.h.b16 %v414
    %v424 = vunpack.c.l.b16 %v415
    %v425 = vunpack.c.h.b16 %v415
    %v426 = vunpack.c.l.b16 %v416
    %v427 = vunpack.c.h.b16 %v416
    %v428 = vunpack.c.l.b16 %v417
    %v429 = vunpack.c.h.b16 %v417
    %v430 = vpack.c.b16 %v424, %v422
    %v431 = vpack.c.b16 %v425, %v423
    %v432 = vpack.c.b16 %v428, %v426
    %v433 = vpack.c.b16 %v429, %v427
    %vm438 = vcmask 261120
    %v440 = vsel %vm438, %v410, 0
    %v443 = vsel %vm438, %v411, 0
    %v446 = vsel %vm438, %v412, 0
    %v449 = vsel %vm438, %v413, 0
    %451 = vmatpush.bf16.msra.mxu0 0
    %452 = vmatpush.bf16.msra.mxu0 0
    %453 = vmatpush.bf16.msra.mxu0 0
    %454 = vmatpush.bf16.msra.mxu0 0
    %455 = vmatpush.bf16.msra.mxu0 0
    %456 = vmatpush.bf16.msra.mxu0 0
    %457 = vmatpush.bf16.msra.mxu0 %v432
    %458 = vmatpush.bf16.msra.mxu0 %v430
    %459 = vmatmul.bf16.gmra.mxu0 %v440
    %v460 = vpop.f32.mrf.mxu0
    %v461 = vadd.f32 0.0, %v460
    %v462 = vpop.f32.mrf.mxu0
    %v463 = vadd.f32 0.0, %v462
    %464 = vmatmul.bf16.gmra.mxu0 %v443
    %v465 = vpop.f32.mrf.mxu0
    %v466 = vadd.f32 0.0, %v465
    %v467 = vpop.f32.mrf.mxu0
    %v468 = vadd.f32 0.0, %v467
    %469 = vmatmul.bf16.gmra.mxu0 %v446
    %v470 = vpop.f32.mrf.mxu0
    %v471 = vadd.f32 0.0, %v470
    %v472 = vpop.f32.mrf.mxu0
    %v473 = vadd.f32 0.0, %v472
    %474 = vmatmul.bf16.gmra.mxu0 %v449
    %v475 = vpop.f32.mrf.mxu0
    %v476 = vadd.f32 0.0, %v475
    %v477 = vpop.f32.mrf.mxu0
    %v478 = vadd.f32 0.0, %v477
    %479 = vdwg.mxu0
    %480 = vmatpush.bf16.msra.mxu0 0
    %481 = vmatpush.bf16.msra.mxu0 0
    %482 = vmatpush.bf16.msra.mxu0 0
    %483 = vmatpush.bf16.msra.mxu0 0
    %484 = vmatpush.bf16.msra.mxu0 0
    %485 = vmatpush.bf16.msra.mxu0 0
    %486 = vmatpush.bf16.msra.mxu0 %v433
    %487 = vmatpush.bf16.msra.mxu0 %v431
    %488 = vmatmul.bf16.gmra.mxu0 %v440
    %v489 = vpop.f32.mrf.mxu0
    %v490 = vadd.f32 0.0, %v489
    %v491 = vpop.f32.mrf.mxu0
    %v492 = vadd.f32 0.0, %v491
    %493 = vmatmul.bf16.gmra.mxu0 %v443
    %v494 = vpop.f32.mrf.mxu0
    %v495 = vadd.f32 0.0, %v494
    %v496 = vpop.f32.mrf.mxu0
    %v497 = vadd.f32 0.0, %v496
    %498 = vmatmul.bf16.gmra.mxu0 %v446
    %v499 = vpop.f32.mrf.mxu0
    %v500 = vadd.f32 0.0, %v499
    %v501 = vpop.f32.mrf.mxu0
    %v502 = vadd.f32 0.0, %v501
    %503 = vmatmul.bf16.gmra.mxu0 %v449
    %v504 = vpop.f32.mrf.mxu0
    %v505 = vadd.f32 0.0, %v504
    %v506 = vpop.f32.mrf.mxu0
    %v507 = vadd.f32 0.0, %v506
    %508 = vdwg.mxu0
    %v509 = vld [vmem:[%s6] sm:$0x3]
    %v511 = vperm.slane %v509, 0
    %v512 = vperm.slane %v509, 1
    %v515 = vsel %vm404, %v461, %v478
    %v516 = vsel %vm405, %v490, %v507
    %v517 = vadd.f32 %v515, %v511
    %v518 = vadd.f32 %v516, %v512
    %519 = vst [vmem:[#allocation2] sm:$0xff] %v517
    %520 = vst [vmem:[#allocation2 + $0x8] sm:$0xff] %v518
    %v521 = vsel %vm404, %v463, %v476
    %v522 = vsel %vm405, %v492, %v505
    %v523 = vadd.f32 %v521, %v511
    %v524 = vadd.f32 %v522, %v512
    %525 = vst [vmem:[#allocation2 + $0x10] sm:$0xff] %v523
    %526 = vst [vmem:[#allocation2 + $0x18] sm:$0xff] %v524
    %v527 = vsel %vm404, %v466, %v473
    %v528 = vsel %vm405, %v495, %v502
    %v529 = vadd.f32 %v527, %v511
    %v530 = vadd.f32 %v528, %v512
    %531 = vst [vmem:[#allocation2 + $0x20] sm:$0xff] %v529
    %532 = vst [vmem:[#allocation2 + $0x28] sm:$0xff] %v530
    %v533 = vsel %vm404, %v468, %v471
    %v534 = vsel %vm405, %v497, %v500
    %v535 = vadd.f32 %v533, %v511
    %v536 = vadd.f32 %v534, %v512
    %537 = vst [vmem:[#allocation2 + $0x30] sm:$0xff] %v535
    %538 = vst [vmem:[#allocation2 + $0x38] sm:$0xff] %v536
    %v539 = vsel %vm404, %v471, %v468
    %v540 = vsel %vm405, %v500, %v497
    %v541 = vadd.f32 %v539, %v511
    %v542 = vadd.f32 %v540, %v512
    %543 = vst [vmem:[#allocation2 + $0x40] sm:$0xff] %v541
    %544 = vst [vmem:[#allocation2 + $0x48] sm:$0xff] %v542
    %v545 = vsel %vm404, %v473, %v466
    %v546 = vsel %vm405, %v502, %v495
    %v547 = vadd.f32 %v545, %v511
    %v548 = vadd.f32 %v546, %v512
    %549 = vst [vmem:[#allocation2 + $0x50] sm:$0xff] %v547
    %550 = vst [vmem:[#allocation2 + $0x58] sm:$0xff] %v548
    %v551 = vsel %vm404, %v476, %v463
    %v552 = vsel %vm405, %v505, %v492
    %v553 = vadd.f32 %v551, %v511
    %v554 = vadd.f32 %v552, %v512
    %555 = vst [vmem:[#allocation2 + $0x60] sm:$0xff] %v553
    %556 = vst [vmem:[#allocation2 + $0x68] sm:$0xff] %v554
    %v557 = vsel %vm404, %v478, %v461
    %v558 = vsel %vm405, %v507, %v490
    %v559 = vadd.f32 %v557, %v511
    %v560 = vadd.f32 %v558, %v512
    %561 = vst [vmem:[#allocation2 + $0x70] sm:$0xff] %v559
    %562 = vst [vmem:[#allocation2 + $0x78] sm:$0xff] %v560
    %v563 = vld [vmem:[%s7] sm:$0xff]
    %v564 = vld [vmem:[%s7 + $0x8] sm:$0xff]
    %v565 = vld [vmem:[%s7 + $0x10] sm:$0xff]
    %v566 = vld [vmem:[%s7 + $0x18] sm:$0xff]
    %v567 = vld [vmem:[%s7 + $0x20] sm:$0xff]
    %v568 = vld [vmem:[%s7 + $0x28] sm:$0xff]
    %v569 = vld [vmem:[%s7 + $0x30] sm:$0xff]
    %v570 = vld [vmem:[%s7 + $0x38] sm:$0xff]
    %v571 = vld [vmem:[#allocation2] sm:$0xff]
    %v572 = vld [vmem:[#allocation2 + $0x8] sm:$0xff]
    %v581 = vunpack.c.l.b16 %v563
    %v582 = vunpack.c.h.b16 %v563
    %v583 = vunpack.c.l.b16 %v564
    %v584 = vunpack.c.h.b16 %v564
    %v585 = vunpack.c.l.b16 %v565
    %v586 = vunpack.c.h.b16 %v565
    %v587 = vunpack.c.l.b16 %v566
    %v588 = vunpack.c.h.b16 %v566
    %v589 = vunpack.c.l.b16 %v567
    %v590 = vunpack.c.h.b16 %v567
    %v591 = vunpack.c.l.b16 %v568
    %v592 = vunpack.c.h.b16 %v568
    %v593 = vunpack.c.l.b16 %v569
    %v594 = vunpack.c.h.b16 %v569
    %v595 = vunpack.c.l.b16 %v570
    %v596 = vunpack.c.h.b16 %v570
    %v597 = vpack.c.b16 %v583, %v581
    %v598 = vpack.c.b16 %v584, %v582
    %v599 = vpack.c.b16 %v587, %v585
    %v600 = vpack.c.b16 %v588, %v586
    %v601 = vpack.c.b16 %v591, %v589
    %v602 = vpack.c.b16 %v592, %v590
    %v603 = vpack.c.b16 %v595, %v593
    %v604 = vpack.c.b16 %v596, %v594
    %vm613 = vcmask 523264
    %v615 = vsel %vm613, 0, 0
    %617 = vmatpush.bf16.msra.mxu0 0
    %618 = vmatpush.bf16.msra.mxu0 0
    %619 = vmatpush.bf16.msra.mxu0 0
    %620 = vmatpush.bf16.msra.mxu0 0
    %621 = vmatpush.bf16.msra.mxu0 %v603
    %622 = vmatpush.bf16.msra.mxu0 %v601
    %623 = vmatpush.bf16.msra.mxu0 %v599
    %624 = vmatpush.bf16.msra.mxu0 %v597
    %625 = vmatmul.bf16.gmra.mxu0 %v615
    %v626 = vpop.f32.mrf.mxu0
    %v627 = vadd.f32 0.0, %v626
    %v628 = vpop.f32.mrf.mxu0
    %629 = vdwg.mxu0
    %630 = vmatpush.bf16.msra.mxu0 0
    %631 = vmatpush.bf16.msra.mxu0 0
    %632 = vmatpush.bf16.msra.mxu0 0
    %633 = vmatpush.bf16.msra.mxu0 0
    %634 = vmatpush.bf16.msra.mxu0 %v604
    %635 = vmatpush.bf16.msra.mxu0 %v602
    %636 = vmatpush.bf16.msra.mxu0 %v600
    %637 = vmatpush.bf16.msra.mxu0 %v598
    %638 = vmatmul.bf16.gmra.mxu0 %v615
    %v639 = vpop.f32.mrf.mxu0
    %v640 = vadd.f32 0.0, %v639
    %v641 = vpop.f32.mrf.mxu0
    %642 = vdwg.mxu0
    %v643 = vadd.f32 %v571, %v627
    %v644 = vadd.f32 %v572, %v640
    %v645 = vtanh.pop %v643
    %v646 = vtanh.pop %v644
    %v647 = vmul.f32 %v645, %v406
    %v648 = vmul.f32 %v646, %v407
    %v649 = vadd.f32 %v647, %v408
    %v650 = vadd.f32 %v648, %v409
    %v651 = vmul.f32 %v649, 0.0
    %v652 = vmul.f32 %v649, %v650
    %654 = vrot.lane.b32.xlu0 %v652, 64
    %v655 = vpop.permute.xlu0 %654
    %v657 = vadd.f32 %v651, %v655
    %v658 = vtanh.pop %v657
    %v659 = vmul.f32 %v650, %v658
    %661 = vrot.lane.b32.xlu0 %v659, 64
    %v662 = vpop.permute.xlu0 %661
    %664 = vst.msk [vmem:[#allocation3] sm:$0xff] %vm438, %v662
    %vm665 = vcmask 523520
    %666 = vst.msk [vmem:[#allocation3 + $0x38] sm:$0xff] %vm665, %v662
    %v667 = vld [vmem:[#allocation2 + $0x10] sm:$0xff]
    %v668 = vld [vmem:[#allocation2 + $0x18] sm:$0xff]
    %v669 = vpack.c.bf16 %v659, %v659
    %671 = vrot.lane.b32.xlu0 %v669, 64
    %v672 = vpop.permute.xlu0 %671
    %v674 = vsel %vm613, %v672, 0
    %676 = vmatpush.bf16.msra.mxu0 0
    %677 = vmatpush.bf16.msra.mxu0 0
    %678 = vmatpush.bf16.msra.mxu0 0
    %679 = vmatpush.bf16.msra.mxu0 0
    %680 = vmatpush.bf16.msra.mxu0 %v603
    %681 = vmatpush.bf16.msra.mxu0 %v601
    %682 = vmatpush.bf16.msra.mxu0 %v599
    %683 = vmatpush.bf16.msra.mxu0 %v597
    %684 = vmatmul.bf16.gmra.mxu0 %v674
    %v685 = vpop.f32.mrf.mxu0
    %v686 = vadd.f32 0.0, %v685
    %v687 = vpop.f32.mrf.mxu0
    %688 = vdwg.mxu0
    %689 = vmatpush.bf16.msra.mxu0 0
    %690 = vmatpush.bf16.msra.mxu0 0
    %691 = vmatpush.bf16.msra.mxu0 0
    %692 = vmatpush.bf16.msra.mxu0 0
    %693 = vmatpush.bf16.msra.mxu0 %v604
    %694 = vmatpush.bf16.msra.mxu0 %v602
    %695 = vmatpush.bf16.msra.mxu0 %v600
    %696 = vmatpush.bf16.msra.mxu0 %v598
    %697 = vmatmul.bf16.gmra.mxu0 %v674
    %v698 = vpop.f32.mrf.mxu0
    %v699 = vadd.f32 0.0, %v698
    %v700 = vpop.f32.mrf.mxu0
    %701 = vdwg.mxu0
    %v702 = vadd.f32 %v667, %v686
    %v703 = vadd.f32 %v668, %v699
    %v704 = vtanh.pop %v702
    %v705 = vtanh.pop %v703
    %v706 = vmul.f32 %v704, %v406
    %v707 = vmul.f32 %v705, %v407
    %v708 = vadd.f32 %v706, %v408
    %v709 = vadd.f32 %v707, %v409
    %v710 = vmul.f32 %v708, %v657
    %v711 = vmul.f32 %v708, %v709
    %713 = vrot.lane.b32.xlu0 %v711, 64
    %v714 = vpop.permute.xlu0 %713
    %v716 = vadd.f32 %v710, %v714
    %v717 = vtanh.pop %v716
    %v718 = vmul.f32 %v709, %v717
    %720 = vrot.lane.b32.xlu0 %v718, 64
    %v721 = vpop.permute.xlu0 %720
    %723 = vst.msk [vmem:[#allocation3 + $0x8] sm:$0xff] %vm438, %v721
    %724 = vst.msk [vmem:[#allocation3 + $0x30] sm:$0xff] %vm665, %v721
    %v725 = vld [vmem:[#allocation2 + $0x20] sm:$0xff]
    %v726 = vld [vmem:[#allocation2 + $0x28] sm:$0xff]
    %v727 = vpack.c.bf16 %v718, %v718
    %729 = vrot.lane.b32.xlu0 %v727, 64
    %v730 = vpop.permute.xlu0 %729
    %v732 = vsel %vm613, %v730, 0
    %734 = vmatpush.bf16.msra.mxu0 0
    %735 = vmatpush.bf16.msra.mxu0 0
    %736 = vmatpush.bf16.msra.mxu0 0
    %737 = vmatpush.bf16.msra.mxu0 0
    %738 = vmatpush.bf16.msra.mxu0 %v603
    %739 = vmatpush.bf16.msra.mxu0 %v601
    %740 = vmatpush.bf16.msra.mxu0 %v599
    %741 = vmatpush.bf16.msra.mxu0 %v597
    %742 = vmatmul.bf16.gmra.mxu0 %v732
    %v743 = vpop.f32.mrf.mxu0
    %v744 = vadd.f32 0.0, %v743
    %v745 = vpop.f32.mrf.mxu0
    %746 = vdwg.mxu0
    %747 = vmatpush.bf16.msra.mxu0 0
    %748 = vmatpush.bf16.msra.mxu0 0
    %749 = vmatpush.bf16.msra.mxu0 0
    %750 = vmatpush.bf16.msra.mxu0 0
    %751 = vmatpush.bf16.msra.mxu0 %v604
    %752 = vmatpush.bf16.msra.mxu0 %v602
    %753 = vmatpush.bf16.msra.mxu0 %v600
    %754 = vmatpush.bf16.msra.mxu0 %v598
    %755 = vmatmul.bf16.gmra.mxu0 %v732
    %v756 = vpop.f32.mrf.mxu0
    %v757 = vadd.f32 0.0, %v756
    %v758 = vpop.f32.mrf.mxu0
    %759 = vdwg.mxu0
    %v760 = vadd.f32 %v725, %v744
    %v761 = vadd.f32 %v726, %v757
    %v762 = vtanh.pop %v760
    %v763 = vtanh.pop %v761
    %v764 = vmul.f32 %v762, %v406
    %v765 = vmul.f32 %v763, %v407
    %v766 = vadd.f32 %v764, %v408
    %v767 = vadd.f32 %v765, %v409
    %v768 = vmul.f32 %v766, %v716
    %v769 = vmul.f32 %v766, %v767
    %771 = vrot.lane.b32.xlu0 %v769, 64
    %v772 = vpop.permute.xlu0 %771
    %v774 = vadd.f32 %v768, %v772
    %v775 = vtanh.pop %v774
    %v776 = vmul.f32 %v767, %v775
    %778 = vrot.lane.b32.xlu0 %v776, 64
    %v779 = vpop.permute.xlu0 %778
    %781 = vst.msk [vmem:[#allocation3 + $0x10] sm:$0xff] %vm438, %v779
    %782 = vst.msk [vmem:[#allocation3 + $0x28] sm:$0xff] %vm665, %v779
    %v783 = vld [vmem:[#allocation2 + $0x30] sm:$0xff]
    %v784 = vld [vmem:[#allocation2 + $0x38] sm:$0xff]
    %v785 = vpack.c.bf16 %v776, %v776
    %787 = vrot.lane.b32.xlu0 %v785, 64
    %v788 = vpop.permute.xlu0 %787
    %v790 = vsel %vm613, %v788, 0
    %792 = vmatpush.bf16.msra.mxu0 0
    %793 = vmatpush.bf16.msra.mxu0 0
    %794 = vmatpush.bf16.msra.mxu0 0
    %795 = vmatpush.bf16.msra.mxu0 0
    %796 = vmatpush.bf16.msra.mxu0 %v603
    %797 = vmatpush.bf16.msra.mxu0 %v601
    %798 = vmatpush.bf16.msra.mxu0 %v599
    %799 = vmatpush.bf16.msra.mxu0 %v597
    %800 = vmatmul.bf16.gmra.mxu0 %v790
    %v801 = vpop.f32.mrf.mxu0
    %v802 = vadd.f32 0.0, %v801
    %v803 = vpop.f32.mrf.mxu0
    %804 = vdwg.mxu0
    %805 = vmatpush.bf16.msra.mxu0 0
    %806 = vmatpush.bf16.msra.mxu0 0
    %807 = vmatpush.bf16.msra.mxu0 0
    %808 = vmatpush.bf16.msra.mxu0 0
    %809 = vmatpush.bf16.msra.mxu0 %v604
    %810 = vmatpush.bf16.msra.mxu0 %v602
    %811 = vmatpush.bf16.msra.mxu0 %v600
    %812 = vmatpush.bf16.msra.mxu0 %v598
    %813 = vmatmul.bf16.gmra.mxu0 %v790
    %v814 = vpop.f32.mrf.mxu0
    %v815 = vadd.f32 0.0, %v814
    %v816 = vpop.f32.mrf.mxu0
    %817 = vdwg.mxu0
    %v818 = vadd.f32 %v783, %v802
    %v819 = vadd.f32 %v784, %v815
    %v820 = vtanh.pop %v818
    %v821 = vtanh.pop %v819
    %v822 = vmul.f32 %v820, %v406
    %v823 = vmul.f32 %v821, %v407
    %v824 = vadd.f32 %v822, %v408
    %v825 = vadd.f32 %v823, %v409
    %v826 = vmul.f32 %v824, %v774
    %v827 = vmul.f32 %v824, %v825
    %829 = vrot.lane.b32.xlu0 %v827, 64
    %v830 = vpop.permute.xlu0 %829
    %v832 = vadd.f32 %v826, %v830
    %v833 = vtanh.pop %v832
    %v834 = vmul.f32 %v825, %v833
    %836 = vrot.lane.b32.xlu0 %v834, 64
    %v837 = vpop.permute.xlu0 %836
    %839 = vst.msk [vmem:[#allocation3 + $0x18] sm:$0xff] %vm438, %v837
    %840 = vst.msk [vmem:[#allocation3 + $0x20] sm:$0xff] %vm665, %v837
    %v841 = vld [vmem:[#allocation2 + $0x40] sm:$0xff]
    %v842 = vld [vmem:[#allocation2 + $0x48] sm:$0xff]
    %v843 = vpack.c.bf16 %v834, %v834
    %845 = vrot.lane.b32.xlu0 %v843, 64
    %v846 = vpop.permute.xlu0 %845
    %v848 = vsel %vm613, %v846, 0
    %850 = vmatpush.bf16.msra.mxu0 0
    %851 = vmatpush.bf16.msra.mxu0 0
    %852 = vmatpush.bf16.msra.mxu0 0
    %853 = vmatpush.bf16.msra.mxu0 0
    %854 = vmatpush.bf16.msra.mxu0 %v603
    %855 = vmatpush.bf16.msra.mxu0 %v601
    %856 = vmatpush.bf16.msra.mxu0 %v599
    %857 = vmatpush.bf16.msra.mxu0 %v597
    %858 = vmatmul.bf16.gmra.mxu0 %v848
    %v859 = vpop.f32.mrf.mxu0
    %v860 = vadd.f32 0.0, %v859
    %v861 = vpop.f32.mrf.mxu0
    %862 = vdwg.mxu0
    %863 = vmatpush.bf16.msra.mxu0 0
    %864 = vmatpush.bf16.msra.mxu0 0
    %865 = vmatpush.bf16.msra.mxu0 0
    %866 = vmatpush.bf16.msra.mxu0 0
    %867 = vmatpush.bf16.msra.mxu0 %v604
    %868 = vmatpush.bf16.msra.mxu0 %v602
    %869 = vmatpush.bf16.msra.mxu0 %v600
    %870 = vmatpush.bf16.msra.mxu0 %v598
    %871 = vmatmul.bf16.gmra.mxu0 %v848
    %v872 = vpop.f32.mrf.mxu0
    %v873 = vadd.f32 0.0, %v872
    %v874 = vpop.f32.mrf.mxu0
    %875 = vdwg.mxu0
    %v876 = vadd.f32 %v841, %v860
    %v877 = vadd.f32 %v842, %v873
    %v878 = vtanh.pop %v876
    %v879 = vtanh.pop %v877
    %v880 = vmul.f32 %v878, %v406
    %v881 = vmul.f32 %v879, %v407
    %v882 = vadd.f32 %v880, %v408
    %v883 = vadd.f32 %v881, %v409
    %v884 = vmul.f32 %v882, %v832
    %v885 = vmul.f32 %v882, %v883
    %887 = vrot.lane.b32.xlu0 %v885, 64
    %v888 = vpop.permute.xlu0 %887
    %v890 = vadd.f32 %v884, %v888
    %v891 = vtanh.pop %v890
    %v892 = vmul.f32 %v883, %v891
    %894 = vrot.lane.b32.xlu0 %v892, 64
    %v895 = vpop.permute.xlu0 %894
    %897 = vst.msk [vmem:[#allocation3 + $0x20] sm:$0xff] %vm438, %v895
    %898 = vst.msk [vmem:[#allocation3 + $0x18] sm:$0xff] %vm665, %v895
    %v899 = vld [vmem:[#allocation2 + $0x50] sm:$0xff]
    %v900 = vld [vmem:[#allocation2 + $0x58] sm:$0xff]
    %v901 = vpack.c.bf16 %v892, %v892
    %903 = vrot.lane.b32.xlu0 %v901, 64
    %v904 = vpop.permute.xlu0 %903
    %v906 = vsel %vm613, %v904, 0
    %908 = vmatpush.bf16.msra.mxu0 0
    %909 = vmatpush.bf16.msra.mxu0 0
    %910 = vmatpush.bf16.msra.mxu0 0
    %911 = vmatpush.bf16.msra.mxu0 0
    %912 = vmatpush.bf16.msra.mxu0 %v603
    %913 = vmatpush.bf16.msra.mxu0 %v601
    %914 = vmatpush.bf16.msra.mxu0 %v599
    %915 = vmatpush.bf16.msra.mxu0 %v597
    %916 = vmatmul.bf16.gmra.mxu0 %v906
    %v917 = vpop.f32.mrf.mxu0
    %v918 = vadd.f32 0.0, %v917
    %v919 = vpop.f32.mrf.mxu0
    %920 = vdwg.mxu0
    %921 = vmatpush.bf16.msra.mxu0 0
    %922 = vmatpush.bf16.msra.mxu0 0
    %923 = vmatpush.bf16.msra.mxu0 0
    %924 = vmatpush.bf16.msra.mxu0 0
    %925 = vmatpush.bf16.msra.mxu0 %v604
    %926 = vmatpush.bf16.msra.mxu0 %v602
    %927 = vmatpush.bf16.msra.mxu0 %v600
    %928 = vmatpush.bf16.msra.mxu0 %v598
    %929 = vmatmul.bf16.gmra.mxu0 %v906
    %v930 = vpop.f32.mrf.mxu0
    %v931 = vadd.f32 0.0, %v930
    %v932 = vpop.f32.mrf.mxu0
    %933 = vdwg.mxu0
    %v934 = vadd.f32 %v899, %v918
    %v935 = vadd.f32 %v900, %v931
    %v936 = vtanh.pop %v934
    %v937 = vtanh.pop %v935
    %v938 = vmul.f32 %v936, %v406
    %v939 = vmul.f32 %v937, %v407
    %v940 = vadd.f32 %v938, %v408
    %v941 = vadd.f32 %v939, %v409
    %v942 = vmul.f32 %v940, %v890
    %v943 = vmul.f32 %v940, %v941
    %945 = vrot.lane.b32.xlu0 %v943, 64
    %v946 = vpop.permute.xlu0 %945
    %v948 = vadd.f32 %v942, %v946
    %v949 = vtanh.pop %v948
    %v950 = vmul.f32 %v941, %v949
    %952 = vrot.lane.b32.xlu0 %v950, 64
    %v953 = vpop.permute.xlu0 %952
    %955 = vst.msk [vmem:[#allocation3 + $0x28] sm:$0xff] %vm438, %v953
    %956 = vst.msk [vmem:[#allocation3 + $0x10] sm:$0xff] %vm665, %v953
    %v957 = vld [vmem:[#allocation2 + $0x60] sm:$0xff]
    %v958 = vld [vmem:[#allocation2 + $0x68] sm:$0xff]
    %v959 = vpack.c.bf16 %v950, %v950
    %961 = vrot.lane.b32.xlu0 %v959, 64
    %v962 = vpop.permute.xlu0 %961
    %v964 = vsel %vm613, %v962, 0
    %966 = vmatpush.bf16.msra.mxu0 0
    %967 = vmatpush.bf16.msra.mxu0 0
    %968 = vmatpush.bf16.msra.mxu0 0
    %969 = vmatpush.bf16.msra.mxu0 0
    %970 = vmatpush.bf16.msra.mxu0 %v603
    %971 = vmatpush.bf16.msra.mxu0 %v601
    %972 = vmatpush.bf16.msra.mxu0 %v599
    %973 = vmatpush.bf16.msra.mxu0 %v597
    %974 = vmatmul.bf16.gmra.mxu0 %v964
    %v975 = vpop.f32.mrf.mxu0
    %v976 = vadd.f32 0.0, %v975
    %v977 = vpop.f32.mrf.mxu0
    %978 = vdwg.mxu0
    %979 = vmatpush.bf16.msra.mxu0 0
    %980 = vmatpush.bf16.msra.mxu0 0
    %981 = vmatpush.bf16.msra.mxu0 0
    %982 = vmatpush.bf16.msra.mxu0 0
    %983 = vmatpush.bf16.msra.mxu0 %v604
    %984 = vmatpush.bf16.msra.mxu0 %v602
    %985 = vmatpush.bf16.msra.mxu0 %v600
    %986 = vmatpush.bf16.msra.mxu0 %v598
    %987 = vmatmul.bf16.gmra.mxu0 %v964
    %v988 = vpop.f32.mrf.mxu0
    %v989 = vadd.f32 0.0, %v988
    %v990 = vpop.f32.mrf.mxu0
    %991 = vdwg.mxu0
    %v992 = vadd.f32 %v957, %v976
    %v993 = vadd.f32 %v958, %v989
    %v994 = vtanh.pop %v992
    %v995 = vtanh.pop %v993
    %v996 = vmul.f32 %v994, %v406
    %v997 = vmul.f32 %v995, %v407
    %v998 = vadd.f32 %v996, %v408
    %v999 = vadd.f32 %v997, %v409
    %v1000 = vmul.f32 %v998, %v948
    %v1001 = vmul.f32 %v998, %v999
    %1003 = vrot.lane.b32.xlu0 %v1001, 64
    %v1004 = vpop.permute.xlu0 %1003
    %v1006 = vadd.f32 %v1000, %v1004
    %v1007 = vtanh.pop %v1006
    %v1008 = vmul.f32 %v999, %v1007
    %1010 = vrot.lane.b32.xlu0 %v1008, 64
    %v1011 = vpop.permute.xlu0 %1010
    %1013 = vst.msk [vmem:[#allocation3 + $0x30] sm:$0xff] %vm438, %v1011
    %1014 = vst.msk [vmem:[#allocation3 + $0x8] sm:$0xff] %vm665, %v1011
    %v1015 = vld [vmem:[#allocation2 + $0x70] sm:$0xff]
    %v1016 = vld [vmem:[#allocation2 + $0x78] sm:$0xff]
    %v1017 = vpack.c.bf16 %v1008, %v1008
    %1019 = vrot.lane.b32.xlu0 %v1017, 64
    %v1020 = vpop.permute.xlu0 %1019
    %v1022 = vsel %vm613, %v1020, 0
    %1024 = vmatpush.bf16.msra.mxu0 0
    %1025 = vmatpush.bf16.msra.mxu0 0
    %1026 = vmatpush.bf16.msra.mxu0 0
    %1027 = vmatpush.bf16.msra.mxu0 0
    %1028 = vmatpush.bf16.msra.mxu0 %v603
    %1029 = vmatpush.bf16.msra.mxu0 %v601
    %1030 = vmatpush.bf16.msra.mxu0 %v599
    %1031 = vmatpush.bf16.msra.mxu0 %v597
    %1032 = vmatmul.bf16.gmra.mxu0 %v1022
    %v1033 = vpop.f32.mrf.mxu0
    %v1034 = vadd.f32 0.0, %v1033
    %v1035 = vpop.f32.mrf.mxu0
    %1036 = vdwg.mxu0
    %1037 = vmatpush.bf16.msra.mxu0 0
    %1038 = vmatpush.bf16.msra.mxu0 0
    %1039 = vmatpush.bf16.msra.mxu0 0
    %1040 = vmatpush.bf16.msra.mxu0 0
    %1041 = vmatpush.bf16.msra.mxu0 %v604
    %1042 = vmatpush.bf16.msra.mxu0 %v602
    %1043 = vmatpush.bf16.msra.mxu0 %v600
    %1044 = vmatpush.bf16.msra.mxu0 %v598
    %1045 = vmatmul.bf16.gmra.mxu0 %v1022
    %v1046 = vpop.f32.mrf.mxu0
    %v1047 = vadd.f32 0.0, %v1046
    %v1048 = vpop.f32.mrf.mxu0
    %1049 = vdwg.mxu0
    %v1050 = vadd.f32 %v1015, %v1034
    %v1051 = vadd.f32 %v1016, %v1047
    %v1052 = vtanh.pop %v1050
    %v1053 = vtanh.pop %v1051
    %v1054 = vmul.f32 %v1052, %v406
    %v1055 = vmul.f32 %v1053, %v407
    %v1056 = vadd.f32 %v1054, %v408
    %v1057 = vadd.f32 %v1055, %v409
    %v1058 = vmul.f32 %v1056, %v1006
    %v1059 = vmul.f32 %v1056, %v1057
    %1061 = vrot.lane.b32.xlu0 %v1059, 64
    %v1062 = vpop.permute.xlu0 %1061
    %v1064 = vadd.f32 %v1058, %v1062
    %v1065 = vtanh.pop %v1064
    %v1066 = vmul.f32 %v1057, %v1065
    %1068 = vrot.lane.b32.xlu0 %v1066, 64
    %v1069 = vpop.permute.xlu0 %1068
    %1071 = vst.msk [vmem:[#allocation3 + $0x38] sm:$0xff] %vm438, %v1069
    %1072 = vst.msk [vmem:[#allocation3] sm:$0xff] %vm665, %v1069
    %v1073 = vld [vmem:[#allocation3] sm:$0xff]
    %v1074 = vld [vmem:[#allocation3 + $0x8] sm:$0xff]
    %v1075 = vld [vmem:[#allocation3 + $0x10] sm:$0xff]
    %v1076 = vld [vmem:[#allocation3 + $0x18] sm:$0xff]
    %v1077 = vld [vmem:[#allocation3 + $0x20] sm:$0xff]
    %v1078 = vld [vmem:[#allocation3 + $0x28] sm:$0xff]
    %v1079 = vld [vmem:[#allocation3 + $0x30] sm:$0xff]
    %v1080 = vld [vmem:[#allocation3 + $0x38] sm:$0xff]
    %v1081 = vpack.c.bf16 %v1074, %v1073
    %v1082 = vpack.c.bf16 %v1076, %v1075
    %v1083 = vpack.c.bf16 %v1078, %v1077
    %v1084 = vpack.c.bf16 %v1080, %v1079
    %v1085 = vld [vmem:[%s8] sm:$0xff]
    %v1086 = vld [vmem:[%s8 + $0x8] sm:$0xff]
    %v1087 = vld [vmem:[%s8 + $0x10] sm:$0xff]
    %v1088 = vld [vmem:[%s8 + $0x18] sm:$0xff]
    %v1089 = vld [vmem:[%s8 + $0x20] sm:$0xff]
    %v1090 = vld [vmem:[%s8 + $0x28] sm:$0xff]
    %v1091 = vld [vmem:[%s8 + $0x30] sm:$0xff]
    %v1092 = vld [vmem:[%s8 + $0x38] sm:$0xff]
    %v1101 = vunpack.c.l.b16 %v1085
    %v1102 = vunpack.c.h.b16 %v1085
    %v1103 = vunpack.c.l.b16 %v1086
    %v1104 = vunpack.c.h.b16 %v1086
    %v1105 = vunpack.c.l.b16 %v1087
    %v1106 = vunpack.c.h.b16 %v1087
    %v1107 = vunpack.c.l.b16 %v1088
    %v1108 = vunpack.c.h.b16 %v1088
    %v1109 = vunpack.c.l.b16 %v1089
    %v1110 = vunpack.c.h.b16 %v1089
    %v1111 = vunpack.c.l.b16 %v1090
    %v1112 = vunpack.c.h.b16 %v1090
    %v1113 = vunpack.c.l.b16 %v1091
    %v1114 = vunpack.c.h.b16 %v1091
    %v1115 = vunpack.c.l.b16 %v1092
    %v1116 = vunpack.c.h.b16 %v1092
    %v1117 = vpack.c.b16 %v1103, %v1101
    %v1118 = vpack.c.b16 %v1104, %v1102
    %v1119 = vpack.c.b16 %v1107, %v1105
    %v1120 = vpack.c.b16 %v1108, %v1106
    %v1121 = vpack.c.b16 %v1111, %v1109
    %v1122 = vpack.c.b16 %v1112, %v1110
    %v1123 = vpack.c.b16 %v1115, %v1113
    %v1124 = vpack.c.b16 %v1116, %v1114
    %v1134 = vsel %vm613, %v1081, 0
    %v1137 = vsel %vm613, %v1082, 0
    %v1140 = vsel %vm613, %v1083, 0
    %v1143 = vsel %vm613, %v1084, 0
    %1145 = vmatpush.bf16.msra.mxu0 0
    %1146 = vmatpush.bf16.msra.mxu0 0
    %1147 = vmatpush.bf16.msra.mxu0 0
    %1148 = vmatpush.bf16.msra.mxu0 0
    %1149 = vmatpush.bf16.msra.mxu0 %v1123
    %1150 = vmatpush.bf16.msra.mxu0 %v1121
    %1151 = vmatpush.bf16.msra.mxu0 %v1119
    %1152 = vmatpush.bf16.msra.mxu0 %v1117
    %1153 = vmatmul.bf16.gmra.mxu0 %v1134
    %v1154 = vpop.f32.mrf.mxu0
    %v1155 = vadd.f32 0.0, %v1154
    %v1156 = vpop.f32.mrf.mxu0
    %v1157 = vadd.f32 0.0, %v1156
    %1158 = vmatmul.bf16.gmra.mxu0 %v1137
    %v1159 = vpop.f32.mrf.mxu0
    %v1160 = vadd.f32 0.0, %v1159
    %v1161 = vpop.f32.mrf.mxu0
    %v1162 = vadd.f32 0.0, %v1161
    %1163 = vmatmul.bf16.gmra.mxu0 %v1140
    %v1164 = vpop.f32.mrf.mxu0
    %v1165 = vadd.f32 0.0, %v1164
    %v1166 = vpop.f32.mrf.mxu0
    %v1167 = vadd.f32 0.0, %v1166
    %1168 = vmatmul.bf16.gmra.mxu0 %v1143
    %v1169 = vpop.f32.mrf.mxu0
    %v1170 = vadd.f32 0.0, %v1169
    %v1171 = vpop.f32.mrf.mxu0
    %v1172 = vadd.f32 0.0, %v1171
    %1173 = vdwg.mxu0
    %1174 = vmatpush.bf16.msra.mxu0 0
    %1175 = vmatpush.bf16.msra.mxu0 0
    %1176 = vmatpush.bf16.msra.mxu0 0
    %1177 = vmatpush.bf16.msra.mxu0 0
    %1178 = vmatpush.bf16.msra.mxu0 %v1124
    %1179 = vmatpush.bf16.msra.mxu0 %v1122
    %1180 = vmatpush.bf16.msra.mxu0 %v1120
    %1181 = vmatpush.bf16.msra.mxu0 %v1118
    %1182 = vmatmul.bf16.gmra.mxu0 %v1134
    %v1183 = vpop.f32.mrf.mxu0
    %v1184 = vadd.f32 0.0, %v1183
    %v1185 = vpop.f32.mrf.mxu0
    %v1186 = vadd.f32 0.0, %v1185
    %1187 = vmatmul.bf16.gmra.mxu0 %v1137
    %v1188 = vpop.f32.mrf.mxu0
    %v1189 = vadd.f32 0.0, %v1188
    %v1190 = vpop.f32.mrf.mxu0
    %v1191 = vadd.f32 0.0, %v1190
    %1192 = vmatmul.bf16.gmra.mxu0 %v1140
    %v1193 = vpop.f32.mrf.mxu0
    %v1194 = vadd.f32 0.0, %v1193
    %v1195 = vpop.f32.mrf.mxu0
    %v1196 = vadd.f32 0.0, %v1195
    %1197 = vmatmul.bf16.gmra.mxu0 %v1143
    %v1198 = vpop.f32.mrf.mxu0
    %v1199 = vadd.f32 0.0, %v1198
    %v1200 = vpop.f32.mrf.mxu0
    %v1201 = vadd.f32 0.0, %v1200
    %1202 = vdwg.mxu0
    %v1203 = vld [vmem:[#allocation12] sm:$0x3]
    %v1205 = vperm.slane %v1203, 0
    %v1206 = vperm.slane %v1203, 1
    %v1209 = vsel %vm404, %v1155, %v1172
    %v1210 = vsel %vm405, %v1184, %v1201
    %v1211 = vadd.f32 %v1209, %v1205
    %v1212 = vadd.f32 %v1210, %v1206
    %1213 = vst [vmem:[#allocation2] sm:$0xff] %v1211
    %1214 = vst [vmem:[#allocation2 + $0x8] sm:$0xff] %v1212
    %v1215 = vsel %vm404, %v1157, %v1170
    %v1216 = vsel %vm405, %v1186, %v1199
    %v1217 = vadd.f32 %v1215, %v1205
    %v1218 = vadd.f32 %v1216, %v1206
    %1219 = vst [vmem:[#allocation2 + $0x10] sm:$0xff] %v1217
    %1220 = vst [vmem:[#allocation2 + $0x18] sm:$0xff] %v1218
    %v1221 = vsel %vm404, %v1160, %v1167
    %v1222 = vsel %vm405, %v1189, %v1196
    %v1223 = vadd.f32 %v1221, %v1205
    %v1224 = vadd.f32 %v1222, %v1206
    %1225 = vst [vmem:[#allocation2 + $0x20] sm:$0xff] %v1223
    %1226 = vst [vmem:[#allocation2 + $0x28] sm:$0xff] %v1224
    %v1227 = vsel %vm404, %v1162, %v1165
    %v1228 = vsel %vm405, %v1191, %v1194
    %v1229 = vadd.f32 %v1227, %v1205
    %v1230 = vadd.f32 %v1228, %v1206
    %1231 = vst [vmem:[#allocation2 + $0x30] sm:$0xff] %v1229
    %1232 = vst [vmem:[#allocation2 + $0x38] sm:$0xff] %v1230
    %v1233 = vsel %vm404, %v1165, %v1162
    %v1234 = vsel %vm405, %v1194, %v1191
    %v1235 = vadd.f32 %v1233, %v1205
    %v1236 = vadd.f32 %v1234, %v1206
    %1237 = vst [vmem:[#allocation2 + $0x40] sm:$0xff] %v1235
    %1238 = vst [vmem:[#allocation2 + $0x48] sm:$0xff] %v1236
    %v1239 = vsel %vm404, %v1167, %v1160
    %v1240 = vsel %vm405, %v1196, %v1189
    %v1241 = vadd.f32 %v1239, %v1205
    %v1242 = vadd.f32 %v1240, %v1206
    %1243 = vst [vmem:[#allocation2 + $0x50] sm:$0xff] %v1241
    %1244 = vst [vmem:[#allocation2 + $0x58] sm:$0xff] %v1242
    %v1245 = vsel %vm404, %v1170, %v1157
    %v1246 = vsel %vm405, %v1199, %v1186
    %v1247 = vadd.f32 %v1245, %v1205
    %v1248 = vadd.f32 %v1246, %v1206
    %1249 = vst [vmem:[#allocation2 + $0x60] sm:$0xff] %v1247
    %1250 = vst [vmem:[#allocation2 + $0x68] sm:$0xff] %v1248
    %v1251 = vsel %vm404, %v1172, %v1155
    %v1252 = vsel %vm405, %v1201, %v1184
    %v1253 = vadd.f32 %v1251, %v1205
    %v1254 = vadd.f32 %v1252, %v1206
    %1255 = vst [vmem:[#allocation2 + $0x70] sm:$0xff] %v1253
    %1256 = vst [vmem:[#allocation2 + $0x78] sm:$0xff] %v1254
    %v1257 = vld [vmem:[#allocation13] sm:$0xff]
    %v1258 = vld [vmem:[#allocation13 + $0x8] sm:$0xff]
    %v1259 = vld [vmem:[#allocation13 + $0x10] sm:$0xff]
    %v1260 = vld [vmem:[#allocation13 + $0x18] sm:$0xff]
    %v1261 = vld [vmem:[#allocation13 + $0x20] sm:$0xff]
    %v1262 = vld [vmem:[#allocation13 + $0x28] sm:$0xff]
    %v1263 = vld [vmem:[#allocation13 + $0x30] sm:$0xff]
    %v1264 = vld [vmem:[#allocation13 + $0x38] sm:$0xff]
    %v1265 = vld [vmem:[#allocation2] sm:$0xff]
    %v1266 = vld [vmem:[#allocation2 + $0x8] sm:$0xff]
    %v1275 = vunpack.c.l.b16 %v1257
    %v1276 = vunpack.c.h.b16 %v1257
    %v1277 = vunpack.c.l.b16 %v1258
    %v1278 = vunpack.c.h.b16 %v1258
    %v1279 = vunpack.c.l.b16 %v1259
    %v1280 = vunpack.c.h.b16 %v1259
    %v1281 = vunpack.c.l.b16 %v1260
    %v1282 = vunpack.c.h.b16 %v1260
    %v1283 = vunpack.c.l.b16 %v1261
    %v1284 = vunpack.c.h.b16 %v1261
    %v1285 = vunpack.c.l.b16 %v1262
    %v1286 = vunpack.c.h.b16 %v1262
    %v1287 = vunpack.c.l.b16 %v1263
    %v1288 = vunpack.c.h.b16 %v1263
    %v1289 = vunpack.c.l.b16 %v1264
    %v1290 = vunpack.c.h.b16 %v1264
    %v1291 = vpack.c.b16 %v1277, %v1275
    %v1292 = vpack.c.b16 %v1278, %v1276
    %v1293 = vpack.c.b16 %v1281, %v1279
    %v1294 = vpack.c.b16 %v1282, %v1280
    %v1295 = vpack.c.b16 %v1285, %v1283
    %v1296 = vpack.c.b16 %v1286, %v1284
    %v1297 = vpack.c.b16 %v1289, %v1287
    %v1298 = vpack.c.b16 %v1290, %v1288
    %1307 = vmatpush.bf16.msra.mxu0 0
    %1308 = vmatpush.bf16.msra.mxu0 0
    %1309 = vmatpush.bf16.msra.mxu0 0
    %1310 = vmatpush.bf16.msra.mxu0 0
    %1311 = vmatpush.bf16.msra.mxu0 %v1297
    %1312 = vmatpush.bf16.msra.mxu0 %v1295
    %1313 = vmatpush.bf16.msra.mxu0 %v1293
    %1314 = vmatpush.bf16.msra.mxu0 %v1291
    %1315 = vmatmul.bf16.gmra.mxu0 %v615
    %v1316 = vpop.f32.mrf.mxu0
    %v1317 = vadd.f32 0.0, %v1316
    %v1318 = vpop.f32.mrf.mxu0
    %1319 = vdwg.mxu0
    %1320 = vmatpush.bf16.msra.mxu0 0
    %1321 = vmatpush.bf16.msra.mxu0 0
    %1322 = vmatpush.bf16.msra.mxu0 0
    %1323 = vmatpush.bf16.msra.mxu0 0
    %1324 = vmatpush.bf16.msra.mxu0 %v1298
    %1325 = vmatpush.bf16.msra.mxu0 %v1296
    %1326 = vmatpush.bf16.msra.mxu0 %v1294
    %1327 = vmatpush.bf16.msra.mxu0 %v1292
    %1328 = vmatmul.bf16.gmra.mxu0 %v615
    %v1329 = vpop.f32.mrf.mxu0
    %v1330 = vadd.f32 0.0, %v1329
    %v1331 = vpop.f32.mrf.mxu0
    %1332 = vdwg.mxu0
    %v1333 = vadd.f32 %v1265, %v1317
    %v1334 = vadd.f32 %v1266, %v1330
    %v1335 = vtanh.pop %v1333
    %v1336 = vtanh.pop %v1334
    %v1337 = vmul.f32 %v1335, %v406
    %v1338 = vmul.f32 %v1336, %v407
    %v1339 = vadd.f32 %v1337, %v408
    %v1340 = vadd.f32 %v1338, %v409
    %v1341 = vmul.f32 %v1339, 0.0
    %v1342 = vmul.f32 %v1339, %v1340
    %1344 = vrot.lane.b32.xlu0 %v1342, 64
    %v1345 = vpop.permute.xlu0 %1344
    %v1347 = vadd.f32 %v1341, %v1345
    %v1348 = vtanh.pop %v1347
    %v1349 = vmul.f32 %v1340, %v1348
    %1351 = vrot.lane.b32.xlu0 %v1349, 64
    %v1352 = vpop.permute.xlu0 %1351
    %1354 = vst.msk [vmem:[#allocation3] sm:$0xff] %vm438, %v1352
    %1355 = vst.msk [vmem:[#allocation3 + $0x38] sm:$0xff] %vm665, %v1352
    %v1356 = vld [vmem:[#allocation2 + $0x10] sm:$0xff]
    %v1357 = vld [vmem:[#allocation2 + $0x18] sm:$0xff]
    %v1358 = vpack.c.bf16 %v1349, %v1349
    %1360 = vrot.lane.b32.xlu0 %v1358, 64
    %v1361 = vpop.permute.xlu0 %1360
    %v1363 = vsel %vm613, %v1361, 0
    %1365 = vmatpush.bf16.msra.mxu0 0
    %1366 = vmatpush.bf16.msra.mxu0 0
    %1367 = vmatpush.bf16.msra.mxu0 0
    %1368 = vmatpush.bf16.msra.mxu0 0
    %1369 = vmatpush.bf16.msra.mxu0 %v1297
    %1370 = vmatpush.bf16.msra.mxu0 %v1295
    %1371 = vmatpush.bf16.msra.mxu0 %v1293
    %1372 = vmatpush.bf16.msra.mxu0 %v1291
    %1373 = vmatmul.bf16.gmra.mxu0 %v1363
    %v1374 = vpop.f32.mrf.mxu0
    %v1375 = vadd.f32 0.0, %v1374
    %v1376 = vpop.f32.mrf.mxu0
    %1377 = vdwg.mxu0
    %1378 = vmatpush.bf16.msra.mxu0 0
    %1379 = vmatpush.bf16.msra.mxu0 0
    %1380 = vmatpush.bf16.msra.mxu0 0
    %1381 = vmatpush.bf16.msra.mxu0 0
    %1382 = vmatpush.bf16.msra.mxu0 %v1298
    %1383 = vmatpush.bf16.msra.mxu0 %v1296
    %1384 = vmatpush.bf16.msra.mxu0 %v1294
    %1385 = vmatpush.bf16.msra.mxu0 %v1292
    %1386 = vmatmul.bf16.gmra.mxu0 %v1363
    %v1387 = vpop.f32.mrf.mxu0
    %v1388 = vadd.f32 0.0, %v1387
    %v1389 = vpop.f32.mrf.mxu0
    %1390 = vdwg.mxu0
    %v1391 = vadd.f32 %v1356, %v1375
    %v1392 = vadd.f32 %v1357, %v1388
    %v1393 = vtanh.pop %v1391
    %v1394 = vtanh.pop %v1392
    %v1395 = vmul.f32 %v1393, %v406
    %v1396 = vmul.f32 %v1394, %v407
    %v1397 = vadd.f32 %v1395, %v408
    %v1398 = vadd.f32 %v1396, %v409
    %v1399 = vmul.f32 %v1397, %v1347
    %v1400 = vmul.f32 %v1397, %v1398
    %1402 = vrot.lane.b32.xlu0 %v1400, 64
    %v1403 = vpop.permute.xlu0 %1402
    %v1405 = vadd.f32 %v1399, %v1403
    %v1406 = vtanh.pop %v1405
    %v1407 = vmul.f32 %v1398, %v1406
    %1409 = vrot.lane.b32.xlu0 %v1407, 64
    %v1410 = vpop.permute.xlu0 %1409
    %1412 = vst.msk [vmem:[#allocation3 + $0x8] sm:$0xff] %vm438, %v1410
    %1413 = vst.msk [vmem:[#allocation3 + $0x30] sm:$0xff] %vm665, %v1410
    %v1414 = vld [vmem:[#allocation2 + $0x20] sm:$0xff]
    %v1415 = vld [vmem:[#allocation2 + $0x28] sm:$0xff]
    %v1416 = vpack.c.bf16 %v1407, %v1407
    %1418 = vrot.lane.b32.xlu0 %v1416, 64
    %v1419 = vpop.permute.xlu0 %1418
    %v1421 = vsel %vm613, %v1419, 0
    %1423 = vmatpush.bf16.msra.mxu0 0
    %1424 = vmatpush.bf16.msra.mxu0 0
    %1425 = vmatpush.bf16.msra.mxu0 0
    %1426 = vmatpush.bf16.msra.mxu0 0
    %1427 = vmatpush.bf16.msra.mxu0 %v1297
    %1428 = vmatpush.bf16.msra.mxu0 %v1295
    %1429 = vmatpush.bf16.msra.mxu0 %v1293
    %1430 = vmatpush.bf16.msra.mxu0 %v1291
    %1431 = vmatmul.bf16.gmra.mxu0 %v1421
    %v1432 = vpop.f32.mrf.mxu0
    %v1433 = vadd.f32 0.0, %v1432
    %v1434 = vpop.f32.mrf.mxu0
    %1435 = vdwg.mxu0
    %1436 = vmatpush.bf16.msra.mxu0 0
    %1437 = vmatpush.bf16.msra.mxu0 0
    %1438 = vmatpush.bf16.msra.mxu0 0
    %1439 = vmatpush.bf16.msra.mxu0 0
    %1440 = vmatpush.bf16.msra.mxu0 %v1298
    %1441 = vmatpush.bf16.msra.mxu0 %v1296
    %1442 = vmatpush.bf16.msra.mxu0 %v1294
    %1443 = vmatpush.bf16.msra.mxu0 %v1292
    %1444 = vmatmul.bf16.gmra.mxu0 %v1421
    %v1445 = vpop.f32.mrf.mxu0
    %v1446 = vadd.f32 0.0, %v1445
    %v1447 = vpop.f32.mrf.mxu0
    %1448 = vdwg.mxu0
    %v1449 = vadd.f32 %v1414, %v1433
    %v1450 = vadd.f32 %v1415, %v1446
    %v1451 = vtanh.pop %v1449
    %v1452 = vtanh.pop %v1450
    %v1453 = vmul.f32 %v1451, %v406
    %v1454 = vmul.f32 %v1452, %v407
    %v1455 = vadd.f32 %v1453, %v408
    %v1456 = vadd.f32 %v1454, %v409
    %v1457 = vmul.f32 %v1455, %v1405
    %v1458 = vmul.f32 %v1455, %v1456
    %1460 = vrot.lane.b32.xlu0 %v1458, 64
    %v1461 = vpop.permute.xlu0 %1460
    %v1463 = vadd.f32 %v1457, %v1461
    %v1464 = vtanh.pop %v1463
    %v1465 = vmul.f32 %v1456, %v1464
    %1467 = vrot.lane.b32.xlu0 %v1465, 64
    %v1468 = vpop.permute.xlu0 %1467
    %1470 = vst.msk [vmem:[#allocation3 + $0x10] sm:$0xff] %vm438, %v1468
    %1471 = vst.msk [vmem:[#allocation3 + $0x28] sm:$0xff] %vm665, %v1468
    %v1472 = vld [vmem:[#allocation2 + $0x30] sm:$0xff]
    %v1473 = vld [vmem:[#allocation2 + $0x38] sm:$0xff]
    %v1474 = vpack.c.bf16 %v1465, %v1465
    %1476 = vrot.lane.b32.xlu0 %v1474, 64
    %v1477 = vpop.permute.xlu0 %1476
    %v1479 = vsel %vm613, %v1477, 0
    %1481 = vmatpush.bf16.msra.mxu0 0
    %1482 = vmatpush.bf16.msra.mxu0 0
    %1483 = vmatpush.bf16.msra.mxu0 0
    %1484 = vmatpush.bf16.msra.mxu0 0
    %1485 = vmatpush.bf16.msra.mxu0 %v1297
    %1486 = vmatpush.bf16.msra.mxu0 %v1295
    %1487 = vmatpush.bf16.msra.mxu0 %v1293
    %1488 = vmatpush.bf16.msra.mxu0 %v1291
    %1489 = vmatmul.bf16.gmra.mxu0 %v1479
    %v1490 = vpop.f32.mrf.mxu0
    %v1491 = vadd.f32 0.0, %v1490
    %v1492 = vpop.f32.mrf.mxu0
    %1493 = vdwg.mxu0
    %1494 = vmatpush.bf16.msra.mxu0 0
    %1495 = vmatpush.bf16.msra.mxu0 0
    %1496 = vmatpush.bf16.msra.mxu0 0
    %1497 = vmatpush.bf16.msra.mxu0 0
    %1498 = vmatpush.bf16.msra.mxu0 %v1298
    %1499 = vmatpush.bf16.msra.mxu0 %v1296
    %1500 = vmatpush.bf16.msra.mxu0 %v1294
    %1501 = vmatpush.bf16.msra.mxu0 %v1292
    %1502 = vmatmul.bf16.gmra.mxu0 %v1479
    %v1503 = vpop.f32.mrf.mxu0
    %v1504 = vadd.f32 0.0, %v1503
    %v1505 = vpop.f32.mrf.mxu0
    %1506 = vdwg.mxu0
    %v1507 = vadd.f32 %v1472, %v1491
    %v1508 = vadd.f32 %v1473, %v1504
    %v1509 = vtanh.pop %v1507
    %v1510 = vtanh.pop %v1508
    %v1511 = vmul.f32 %v1509, %v406
    %v1512 = vmul.f32 %v1510, %v407
    %v1513 = vadd.f32 %v1511, %v408
    %v1514 = vadd.f32 %v1512, %v409
    %v1515 = vmul.f32 %v1513, %v1463
    %v1516 = vmul.f32 %v1513, %v1514
    %1518 = vrot.lane.b32.xlu0 %v1516, 64
    %v1519 = vpop.permute.xlu0 %1518
    %v1521 = vadd.f32 %v1515, %v1519
    %v1522 = vtanh.pop %v1521
    %v1523 = vmul.f32 %v1514, %v1522
    %1525 = vrot.lane.b32.xlu0 %v1523, 64
    %v1526 = vpop.permute.xlu0 %1525
    %1528 = vst.msk [vmem:[#allocation3 + $0x18] sm:$0xff] %vm438, %v1526
    %1529 = vst.msk [vmem:[#allocation3 + $0x20] sm:$0xff] %vm665, %v1526
    %v1530 = vld [vmem:[#allocation2 + $0x40] sm:$0xff]
    %v1531 = vld [vmem:[#allocation2 + $0x48] sm:$0xff]
    %v1532 = vpack.c.bf16 %v1523, %v1523
    %1534 = vrot.lane.b32.xlu0 %v1532, 64
    %v1535 = vpop.permute.xlu0 %1534
    %v1537 = vsel %vm613, %v1535, 0
    %1539 = vmatpush.bf16.msra.mxu0 0
    %1540 = vmatpush.bf16.msra.mxu0 0
    %1541 = vmatpush.bf16.msra.mxu0 0
    %1542 = vmatpush.bf16.msra.mxu0 0
    %1543 = vmatpush.bf16.msra.mxu0 %v1297
    %1544 = vmatpush.bf16.msra.mxu0 %v1295
    %1545 = vmatpush.bf16.msra.mxu0 %v1293
    %1546 = vmatpush.bf16.msra.mxu0 %v1291
    %1547 = vmatmul.bf16.gmra.mxu0 %v1537
    %v1548 = vpop.f32.mrf.mxu0
    %v1549 = vadd.f32 0.0, %v1548
    %v1550 = vpop.f32.mrf.mxu0
    %1551 = vdwg.mxu0
    %1552 = vmatpush.bf16.msra.mxu0 0
    %1553 = vmatpush.bf16.msra.mxu0 0
    %1554 = vmatpush.bf16.msra.mxu0 0
    %1555 = vmatpush.bf16.msra.mxu0 0
    %1556 = vmatpush.bf16.msra.mxu0 %v1298
    %1557 = vmatpush.bf16.msra.mxu0 %v1296
    %1558 = vmatpush.bf16.msra.mxu0 %v1294
    %1559 = vmatpush.bf16.msra.mxu0 %v1292
    %1560 = vmatmul.bf16.gmra.mxu0 %v1537
    %v1561 = vpop.f32.mrf.mxu0
    %v1562 = vadd.f32 0.0, %v1561
    %v1563 = vpop.f32.mrf.mxu0
    %1564 = vdwg.mxu0
    %v1565 = vadd.f32 %v1530, %v1549
    %v1566 = vadd.f32 %v1531, %v1562
    %v1567 = vtanh.pop %v1565
    %v1568 = vtanh.pop %v1566
    %v1569 = vmul.f32 %v1567, %v406
    %v1570 = vmul.f32 %v1568, %v407
    %v1571 = vadd.f32 %v1569, %v408
    %v1572 = vadd.f32 %v1570, %v409
    %v1573 = vmul.f32 %v1571, %v1521
    %v1574 = vmul.f32 %v1571, %v1572
    %1576 = vrot.lane.b32.xlu0 %v1574, 64
    %v1577 = vpop.permute.xlu0 %1576
    %v1579 = vadd.f32 %v1573, %v1577
    %v1580 = vtanh.pop %v1579
    %v1581 = vmul.f32 %v1572, %v1580
    %1583 = vrot.lane.b32.xlu0 %v1581, 64
    %v1584 = vpop.permute.xlu0 %1583
    %1586 = vst.msk [vmem:[#allocation3 + $0x20] sm:$0xff] %vm438, %v1584
    %1587 = vst.msk [vmem:[#allocation3 + $0x18] sm:$0xff] %vm665, %v1584
    %v1588 = vld [vmem:[#allocation2 + $0x50] sm:$0xff]
    %v1589 = vld [vmem:[#allocation2 + $0x58] sm:$0xff]
    %v1590 = vpack.c.bf16 %v1581, %v1581
    %1592 = vrot.lane.b32.xlu0 %v1590, 64
    %v1593 = vpop.permute.xlu0 %1592
    %v1595 = vsel %vm613, %v1593, 0
    %1597 = vmatpush.bf16.msra.mxu0 0
    %1598 = vmatpush.bf16.msra.mxu0 0
    %1599 = vmatpush.bf16.msra.mxu0 0
    %1600 = vmatpush.bf16.msra.mxu0 0
    %1601 = vmatpush.bf16.msra.mxu0 %v1297
    %1602 = vmatpush.bf16.msra.mxu0 %v1295
    %1603 = vmatpush.bf16.msra.mxu0 %v1293
    %1604 = vmatpush.bf16.msra.mxu0 %v1291
    %1605 = vmatmul.bf16.gmra.mxu0 %v1595
    %v1606 = vpop.f32.mrf.mxu0
    %v1607 = vadd.f32 0.0, %v1606
    %v1608 = vpop.f32.mrf.mxu0
    %1609 = vdwg.mxu0
    %1610 = vmatpush.bf16.msra.mxu0 0
    %1611 = vmatpush.bf16.msra.mxu0 0
    %1612 = vmatpush.bf16.msra.mxu0 0
    %1613 = vmatpush.bf16.msra.mxu0 0
    %1614 = vmatpush.bf16.msra.mxu0 %v1298
    %1615 = vmatpush.bf16.msra.mxu0 %v1296
    %1616 = vmatpush.bf16.msra.mxu0 %v1294
    %1617 = vmatpush.bf16.msra.mxu0 %v1292
    %1618 = vmatmul.bf16.gmra.mxu0 %v1595
    %v1619 = vpop.f32.mrf.mxu0
    %v1620 = vadd.f32 0.0, %v1619
    %v1621 = vpop.f32.mrf.mxu0
    %1622 = vdwg.mxu0
    %v1623 = vadd.f32 %v1588, %v1607
    %v1624 = vadd.f32 %v1589, %v1620
    %v1625 = vtanh.pop %v1623
    %v1626 = vtanh.pop %v1624
    %v1627 = vmul.f32 %v1625, %v406
    %v1628 = vmul.f32 %v1626, %v407
    %v1629 = vadd.f32 %v1627, %v408
    %v1630 = vadd.f32 %v1628, %v409
    %v1631 = vmul.f32 %v1629, %v1579
    %v1632 = vmul.f32 %v1629, %v1630
    %1634 = vrot.lane.b32.xlu0 %v1632, 64
    %v1635 = vpop.permute.xlu0 %1634
    %v1637 = vadd.f32 %v1631, %v1635
    %v1638 = vtanh.pop %v1637
    %v1639 = vmul.f32 %v1630, %v1638
    %1641 = vrot.lane.b32.xlu0 %v1639, 64
    %v1642 = vpop.permute.xlu0 %1641
    %1644 = vst.msk [vmem:[#allocation3 + $0x28] sm:$0xff] %vm438, %v1642
    %1645 = vst.msk [vmem:[#allocation3 + $0x10] sm:$0xff] %vm665, %v1642
    %v1646 = vld [vmem:[#allocation2 + $0x60] sm:$0xff]
    %v1647 = vld [vmem:[#allocation2 + $0x68] sm:$0xff]
    %v1648 = vpack.c.bf16 %v1639, %v1639
    %1650 = vrot.lane.b32.xlu0 %v1648, 64
    %v1651 = vpop.permute.xlu0 %1650
    %v1653 = vsel %vm613, %v1651, 0
    %1655 = vmatpush.bf16.msra.mxu0 0
    %1656 = vmatpush.bf16.msra.mxu0 0
    %1657 = vmatpush.bf16.msra.mxu0 0
    %1658 = vmatpush.bf16.msra.mxu0 0
    %1659 = vmatpush.bf16.msra.mxu0 %v1297
    %1660 = vmatpush.bf16.msra.mxu0 %v1295
    %1661 = vmatpush.bf16.msra.mxu0 %v1293
    %1662 = vmatpush.bf16.msra.mxu0 %v1291
    %1663 = vmatmul.bf16.gmra.mxu0 %v1653
    %v1664 = vpop.f32.mrf.mxu0
    %v1665 = vadd.f32 0.0, %v1664
    %v1666 = vpop.f32.mrf.mxu0
    %1667 = vdwg.mxu0
    %1668 = vmatpush.bf16.msra.mxu0 0
    %1669 = vmatpush.bf16.msra.mxu0 0
    %1670 = vmatpush.bf16.msra.mxu0 0
    %1671 = vmatpush.bf16.msra.mxu0 0
    %1672 = vmatpush.bf16.msra.mxu0 %v1298
    %1673 = vmatpush.bf16.msra.mxu0 %v1296
    %1674 = vmatpush.bf16.msra.mxu0 %v1294
    %1675 = vmatpush.bf16.msra.mxu0 %v1292
    %1676 = vmatmul.bf16.gmra.mxu0 %v1653
    %v1677 = vpop.f32.mrf.mxu0
    %v1678 = vadd.f32 0.0, %v1677
    %v1679 = vpop.f32.mrf.mxu0
    %1680 = vdwg.mxu0
    %v1681 = vadd.f32 %v1646, %v1665
    %v1682 = vadd.f32 %v1647, %v1678
    %v1683 = vtanh.pop %v1681
    %v1684 = vtanh.pop %v1682
    %v1685 = vmul.f32 %v1683, %v406
    %v1686 = vmul.f32 %v1684, %v407
    %v1687 = vadd.f32 %v1685, %v408
    %v1688 = vadd.f32 %v1686, %v409
    %v1689 = vmul.f32 %v1687, %v1637
    %v1690 = vmul.f32 %v1687, %v1688
    %1692 = vrot.lane.b32.xlu0 %v1690, 64
    %v1693 = vpop.permute.xlu0 %1692
    %v1695 = vadd.f32 %v1689, %v1693
    %v1696 = vtanh.pop %v1695
    %v1697 = vmul.f32 %v1688, %v1696
    %1699 = vrot.lane.b32.xlu0 %v1697, 64
    %v1700 = vpop.permute.xlu0 %1699
    %1702 = vst.msk [vmem:[#allocation3 + $0x30] sm:$0xff] %vm438, %v1700
    %1703 = vst.msk [vmem:[#allocation3 + $0x8] sm:$0xff] %vm665, %v1700
    %v1704 = vld [vmem:[#allocation2 + $0x70] sm:$0xff]
    %v1705 = vld [vmem:[#allocation2 + $0x78] sm:$0xff]
    %v1706 = vpack.c.bf16 %v1697, %v1697
    %1708 = vrot.lane.b32.xlu0 %v1706, 64
    %v1709 = vpop.permute.xlu0 %1708
    %v1711 = vsel %vm613, %v1709, 0
    %1713 = vmatpush.bf16.msra.mxu0 0
    %1714 = vmatpush.bf16.msra.mxu0 0
    %1715 = vmatpush.bf16.msra.mxu0 0
    %1716 = vmatpush.bf16.msra.mxu0 0
    %1717 = vmatpush.bf16.msra.mxu0 %v1297
    %1718 = vmatpush.bf16.msra.mxu0 %v1295
    %1719 = vmatpush.bf16.msra.mxu0 %v1293
    %1720 = vmatpush.bf16.msra.mxu0 %v1291
    %1721 = vmatmul.bf16.gmra.mxu0 %v1711
    %v1722 = vpop.f32.mrf.mxu0
    %v1723 = vadd.f32 0.0, %v1722
    %v1724 = vpop.f32.mrf.mxu0
    %1725 = vdwg.mxu0
    %1726 = vmatpush.bf16.msra.mxu0 0
    %1727 = vmatpush.bf16.msra.mxu0 0
    %1728 = vmatpush.bf16.msra.mxu0 0
    %1729 = vmatpush.bf16.msra.mxu0 0
    %1730 = vmatpush.bf16.msra.mxu0 %v1298
    %1731 = vmatpush.bf16.msra.mxu0 %v1296
    %1732 = vmatpush.bf16.msra.mxu0 %v1294
    %1733 = vmatpush.bf16.msra.mxu0 %v1292
    %1734 = vmatmul.bf16.gmra.mxu0 %v1711
    %v1735 = vpop.f32.mrf.mxu0
    %v1736 = vadd.f32 0.0, %v1735
    %v1737 = vpop.f32.mrf.mxu0
    %1738 = vdwg.mxu0
    %v1739 = vadd.f32 %v1704, %v1723
    %v1740 = vadd.f32 %v1705, %v1736
    %v1741 = vtanh.pop %v1739
    %v1742 = vtanh.pop %v1740
    %v1743 = vmul.f32 %v1741, %v406
    %v1744 = vmul.f32 %v1742, %v407
    %v1745 = vadd.f32 %v1743, %v408
    %v1746 = vadd.f32 %v1744, %v409
    %v1747 = vmul.f32 %v1745, %v1695
    %v1748 = vmul.f32 %v1745, %v1746
    %1750 = vrot.lane.b32.xlu0 %v1748, 64
    %v1751 = vpop.permute.xlu0 %1750
    %v1753 = vadd.f32 %v1747, %v1751
    %v1754 = vtanh.pop %v1753
    %v1755 = vmul.f32 %v1746, %v1754
    %1757 = vrot.lane.b32.xlu0 %v1755, 64
    %v1758 = vpop.permute.xlu0 %1757
    %1760 = vst.msk [vmem:[#allocation3 + $0x38] sm:$0xff] %vm438, %v1758
    %1761 = vst.msk [vmem:[#allocation3] sm:$0xff] %vm665, %v1758
    %v1762 = vld [vmem:[#allocation3] sm:$0xff]
    %v1763 = vld [vmem:[#allocation3 + $0x8] sm:$0xff]
    %v1764 = vld [vmem:[#allocation3 + $0x10] sm:$0xff]
    %v1765 = vld [vmem:[#allocation3 + $0x18] sm:$0xff]
    %v1766 = vld [vmem:[#allocation3 + $0x20] sm:$0xff]
    %v1767 = vld [vmem:[#allocation3 + $0x28] sm:$0xff]
    %v1768 = vld [vmem:[#allocation3 + $0x30] sm:$0xff]
    %v1769 = vld [vmem:[#allocation3 + $0x38] sm:$0xff]
    %v1770 = vld [vmem:[#allocation15] sm:$0x1]
    %v1772 = vperm.slane %v1770, 0
    %v1774 = vmul.f32 %v1762, %v1772
    %v1775 = vmul.f32 %v1763, %v1772
    %v1776 = vmul.f32 %v1764, %v1772
    %v1777 = vmul.f32 %v1765, %v1772
    %v1778 = vmul.f32 %v1766, %v1772
    %v1779 = vmul.f32 %v1767, %v1772
    %v1780 = vmul.f32 %v1768, %v1772
    %v1781 = vmul.f32 %v1769, %v1772
    %v1782 = vsel %vm613, %v1774, 0.0
    %1783 = vadd.xlane.f32.xlu0 %v1782
    %v1784 = vpop.xlane.xlu0 %1783
    %v1785 = vsel %vm613, %v1775, 0.0
    %1786 = vadd.xlane.f32.xlu0 %v1785
    %v1787 = vpop.xlane.xlu0 %1786
    %v1788 = vsel %vm613, %v1776, 0.0
    %1789 = vadd.xlane.f32.xlu0 %v1788
    %v1790 = vpop.xlane.xlu0 %1789
    %v1791 = vsel %vm613, %v1777, 0.0
    %1792 = vadd.xlane.f32.xlu0 %v1791
    %v1793 = vpop.xlane.xlu0 %1792
    %v1794 = vsel %vm613, %v1778, 0.0
    %1795 = vadd.xlane.f32.xlu0 %v1794
    %v1796 = vpop.xlane.xlu0 %1795
    %v1797 = vsel %vm613, %v1779, 0.0
    %1798 = vadd.xlane.f32.xlu0 %v1797
    %v1799 = vpop.xlane.xlu0 %1798
    %v1800 = vsel %vm613, %v1780, 0.0
    %1801 = vadd.xlane.f32.xlu0 %v1800
    %v1802 = vpop.xlane.xlu0 %1801
    %v1803 = vsel %vm613, %v1781, 0.0
    %1804 = vadd.xlane.f32.xlu0 %v1803
    %v1805 = vpop.xlane.xlu0 %1804
    %v1806 = vld [vmem:[#allocation4] sm:$0x1]
    %v1808 = vperm.slane %v1806, 0
    %v1810 = vadd.f32 %v1784, %v1808
    %v1811 = vadd.f32 %v1787, %v1808
    %v1812 = vadd.f32 %v1790, %v1808
    %v1813 = vadd.f32 %v1793, %v1808
    %v1814 = vadd.f32 %v1796, %v1808
    %v1815 = vadd.f32 %v1799, %v1808
    %v1816 = vadd.f32 %v1802, %v1808
    %v1817 = vadd.f32 %v1805, %v1808
    %v1818 = vtanh.pop %v1810
    %v1819 = vtanh.pop %v1811
    %v1820 = vtanh.pop %v1812
    %v1821 = vtanh.pop %v1813
    %v1822 = vtanh.pop %v1814
    %v1823 = vtanh.pop %v1815
    %v1824 = vtanh.pop %v1816
    %v1825 = vtanh.pop %v1817
    %vm1826 = vcmask 7168
    %v1827 = vsel %vm1826, %v1818, -inf
    %v1828 = vsel %vm1826, %v1819, -inf
    %v1829 = vsel %vm1826, %v1820, -inf
    %v1830 = vsel %vm1826, %v1821, -inf
    %v1831 = vsel %vm1826, %v1822, -inf
    %v1832 = vmax.f32 %v1827, %v1831
    %v1833 = vsel %vm1826, %v1823, -inf
    %v1834 = vmax.f32 %v1828, %v1833
    %v1835 = vsel %vm1826, %v1824, -inf
    %v1836 = vmax.f32 %v1829, %v1835
    %v1837 = vsel %vm1826, %v1825, -inf
    %v1838 = vmax.f32 %v1830, %v1837
    %v1839 = vmax.f32 %v1832, %v1834
    %v1840 = vmax.f32 %v1836, %v1838
    %v1841 = vmax.f32 %v1839, %v1840
    %v1842 = vsub.f32 %v1818, %v1841
    %v1843 = vsub.f32 %v1819, %v1841
    %v1844 = vsub.f32 %v1820, %v1841
    %v1845 = vsub.f32 %v1821, %v1841
    %v1846 = vsub.f32 %v1822, %v1841
    %v1847 = vsub.f32 %v1823, %v1841
    %v1848 = vsub.f32 %v1824, %v1841
    %v1849 = vsub.f32 %v1825, %v1841
    %v1850 = vmul.f32 %v1842, 1.442695
    %v1851 = vpow.pop %v1850
    %v1852 = vmul.f32 %v1843, 1.442695
    %v1853 = vpow.pop %v1852
    %v1854 = vmul.f32 %v1844, 1.442695
    %v1855 = vpow.pop %v1854
    %v1856 = vmul.f32 %v1845, 1.442695
    %v1857 = vpow.pop %v1856
    %v1858 = vmul.f32 %v1846, 1.442695
    %v1859 = vpow.pop %v1858
    %v1860 = vmul.f32 %v1847, 1.442695
    %v1861 = vpow.pop %v1860
    %v1862 = vmul.f32 %v1848, 1.442695
    %v1863 = vpow.pop %v1862
    %v1864 = vmul.f32 %v1849, 1.442695
    %v1865 = vpow.pop %v1864
    %v1866 = vsel %vm1826, %v1851, 0.0
    %v1867 = vsel %vm1826, %v1853, 0.0
    %v1868 = vadd.f32 %v1866, %v1867
    %v1869 = vsel %vm1826, %v1855, 0.0
    %v1870 = vadd.f32 %v1868, %v1869
    %v1871 = vsel %vm1826, %v1857, 0.0
    %v1872 = vadd.f32 %v1870, %v1871
    %v1873 = vsel %vm1826, %v1859, 0.0
    %v1874 = vadd.f32 %v1872, %v1873
    %v1875 = vsel %vm1826, %v1861, 0.0
    %v1876 = vadd.f32 %v1874, %v1875
    %v1877 = vsel %vm1826, %v1863, 0.0
    %v1878 = vadd.f32 %v1876, %v1877
    %v1879 = vsel %vm1826, %v1865, 0.0
    %v1880 = vadd.f32 %v1878, %v1879
    %v1881 = vrcp.pop %v1880
    %v1882 = vmul.f32 %v1851, %v1881
    %v1883 = vmul.f32 %v1853, %v1881
    %v1884 = vmul.f32 %v1855, %v1881
    %v1885 = vmul.f32 %v1857, %v1881
    %v1886 = vmul.f32 %v1859, %v1881
    %v1887 = vmul.f32 %v1861, %v1881
    %v1888 = vmul.f32 %v1863, %v1881
    %v1889 = vmul.f32 %v1865, %v1881
    %1891 = vset.pattern.permute.xlu0 0
    %1892 = vperm.xlu0 %1891, %v1882
    %v1893 = vpop.permute.xlu0 %1892
    %1896 = vset.pattern.permute.xlu0 0
    %1897 = vperm.xlu0 %1896, %v1883
    %v1898 = vpop.permute.xlu0 %1897
    %1901 = vset.pattern.permute.xlu0 0
    %1902 = vperm.xlu0 %1901, %v1884
    %v1903 = vpop.permute.xlu0 %1902
    %1906 = vset.pattern.permute.xlu0 0
    %1907 = vperm.xlu0 %1906, %v1885
    %v1908 = vpop.permute.xlu0 %1907
    %1911 = vset.pattern.permute.xlu0 0
    %1912 = vperm.xlu0 %1911, %v1886
    %v1913 = vpop.permute.xlu0 %1912
    %1916 = vset.pattern.permute.xlu0 0
    %1917 = vperm.xlu0 %1916, %v1887
    %v1918 = vpop.permute.xlu0 %1917
    %1921 = vset.pattern.permute.xlu0 0
    %1922 = vperm.xlu0 %1921, %v1888
    %v1923 = vpop.permute.xlu0 %1922
    %1926 = vset.pattern.permute.xlu0 0
    %1927 = vperm.xlu0 %1926, %v1889
    %v1928 = vpop.permute.xlu0 %1927
    %v1930 = vmul.f32 %v1893, %v1762
    %v1931 = vmul.f32 %v1898, %v1763
    %v1932 = vmul.f32 %v1903, %v1764
    %v1933 = vmul.f32 %v1908, %v1765
    %v1934 = vmul.f32 %v1913, %v1766
    %v1935 = vmul.f32 %v1918, %v1767
    %v1936 = vmul.f32 %v1923, %v1768
    %v1937 = vmul.f32 %v1928, %v1769
    %v1938 = vsel %vm613, %v1930, 0.0
    %v1939 = vsel %vm613, %v1931, 0.0
    %v1940 = vadd.f32 %v1938, %v1939
    %v1941 = vsel %vm613, %v1932, 0.0
    %v1942 = vadd.f32 %v1940, %v1941
    %v1943 = vsel %vm613, %v1933, 0.0
    %v1944 = vadd.f32 %v1942, %v1943
    %v1945 = vsel %vm613, %v1934, 0.0
    %v1946 = vadd.f32 %v1944, %v1945
    %v1947 = vsel %vm613, %v1935, 0.0
    %v1948 = vadd.f32 %v1946, %v1947
    %v1949 = vsel %vm613, %v1936, 0.0
    %v1950 = vadd.f32 %v1948, %v1949
    %v1951 = vsel %vm613, %v1937, 0.0
    %v1952 = vadd.f32 %v1950, %v1951
    %v1953 = vpack.c.bf16 %v1952, %v1952
    %v1954 = vld [vmem:[%s13] sm:$0xf]
    %v1955 = vld [vmem:[%s13 + $0x4] sm:$0xf]
    %v1956 = vld [vmem:[%s13 + $0x8] sm:$0xf]
    %v1957 = vld [vmem:[%s13 + $0xc] sm:$0xf]
    %v1958 = vld [vmem:[%s13 + $0x10] sm:$0xf]
    %v1959 = vld [vmem:[%s13 + $0x14] sm:$0xf]
    %v1960 = vld [vmem:[%s13 + $0x18] sm:$0xf]
    %v1961 = vld [vmem:[%s13 + $0x1c] sm:$0xf]
    %v1962 = vld [vmem:[#allocation16] sm:$0x1]
    %v1964 = vperm.slane %v1962, 0
    %v1974 = vunpack.c.l.b16 %v1954
    %v1975 = vunpack.c.l.b16 %v1955
    %v1976 = vunpack.c.l.b16 %v1956
    %v1977 = vunpack.c.l.b16 %v1957
    %v1978 = vunpack.c.l.b16 %v1958
    %v1979 = vunpack.c.l.b16 %v1959
    %v1980 = vunpack.c.l.b16 %v1960
    %v1981 = vunpack.c.l.b16 %v1961
    %v1982 = vpack.c.b16 %v1975, %v1974
    %v1983 = vpack.c.b16 %v1977, %v1976
    %v1984 = vpack.c.b16 %v1979, %v1978
    %v1985 = vpack.c.b16 %v1981, %v1980
    %v1991 = vsel %vm613, %v1953, 0
    %1993 = vmatpush.bf16.msra.mxu0 0
    %1994 = vmatpush.bf16.msra.mxu0 0
    %1995 = vmatpush.bf16.msra.mxu0 0
    %1996 = vmatpush.bf16.msra.mxu0 0
    %1997 = vmatpush.bf16.msra.mxu0 %v1985
    %1998 = vmatpush.bf16.msra.mxu0 %v1984
    %1999 = vmatpush.bf16.msra.mxu0 %v1983
    %2000 = vmatpush.bf16.msra.mxu0 %v1982
    %2001 = vmatmul.bf16.gmra.mxu0 %v1991
    %v2002 = vpop.f32.mrf.mxu0
    %v2003 = vadd.f32 %v1964, %v2002
    %v2004 = vpop.f32.mrf.mxu0
    %2005 = vdwg.mxu0
    %v2006 = vmax.f32 %v2003, 0.0
    %v2007 = vpack.c.bf16 %v2006, %v2006
    %v2008 = vld [vmem:[%s15] sm:$0xf]
    %v2009 = vld [vmem:[%s15 + $0x4] sm:$0xf]
    %v2010 = vld [vmem:[%s15 + $0x8] sm:$0xf]
    %v2011 = vld [vmem:[%s15 + $0xc] sm:$0xf]
    %v2012 = vld [vmem:[#allocation18] sm:$0x1]
    %v2014 = vperm.slane %v2012, 0
    %v2020 = vunpack.c.l.b16 %v2008
    %v2021 = vunpack.c.l.b16 %v2009
    %v2022 = vunpack.c.l.b16 %v2010
    %v2023 = vunpack.c.l.b16 %v2011
    %v2024 = vpack.c.b16 %v2021, %v2020
    %v2025 = vpack.c.b16 %v2023, %v2022
    %v2029 = vsel %vm438, %v2007, 0
    %2031 = vmatpush.bf16.msra.mxu0 0
    %2032 = vmatpush.bf16.msra.mxu0 0
    %2033 = vmatpush.bf16.msra.mxu0 0
    %2034 = vmatpush.bf16.msra.mxu0 0
    %2035 = vmatpush.bf16.msra.mxu0 0
    %2036 = vmatpush.bf16.msra.mxu0 0
    %2037 = vmatpush.bf16.msra.mxu0 %v2025
    %2038 = vmatpush.bf16.msra.mxu0 %v2024
    %2039 = vmatmul.bf16.gmra.mxu0 %v2029
    %v2040 = vpop.f32.mrf.mxu0
    %v2041 = vadd.f32 %v2014, %v2040
    %v2042 = vpop.f32.mrf.mxu0
    %2043 = vdwg.mxu0
    %vm2044 = vcmask 31744
    %2045 = vst.msk [vmem:[%s17] sm:$0xff] %vm2044, %v2041
    // Predicated region
    $region106: #{_lambda_.1} parent=1 // pred_check
      _
    $region107: #{_lambda_.1} parent=1 // pred_check_branch
      %2047 = sbr.rel (0) target = $region109
    $region108: #{_lambda_.1} parent=1 // pred_region
      _
    $region109: #{_lambda_.1} parent=1 // pred_fallthru
      _
    // Predicated region
    $region110: #{_lambda_.1} parent=1 // pred_check
      _
    $region111: #{_lambda_.1} parent=1 // pred_check_branch
      %2049 = sbr.rel (0) target = $region113
    $region112: #{_lambda_.1} parent=1 // pred_region
      _
    $region113: #{_lambda_.1} parent=1 // pred_fallthru
      _
    %2050 = vsyncpa [#allocation6], 1
    %2051 = vsyncpa [#allocation8], 1
    %2052 = vsyncpa [#allocation11], 1
    %2053 = vsyncpa [#allocation14], 1
    %2054 = vsyncpa [#allocation17], 1

</llo_original>
